<compile_context>
chip_gen: v7x
topology: tpu7x:2x2x1
jax: 0.10.0
libtpu: 0.0.40
codegen_flags: <defaults>
</compile_context>

<pallas_src>
import numpy as np
import jax
import jax.numpy as jnp
from jax import lax
from jax.experimental import pallas as pl
from jax.experimental.pallas import tpu as pltpu

WINDOW_SIZE = 11
SIGMA = 1.5
C1 = 0.01 ** 2
C2 = 0.03 ** 2


def gaussian_1d(window_size: int, sigma: float) -> np.ndarray:
    # Matches gaussian() in the PyTorch module (normalized to sum 1).
    xs = np.arange(window_size, dtype=np.float64)
    g = np.exp(-((xs - window_size // 2) ** 2) / (2.0 * sigma ** 2))
    return (g / g.sum()).astype(np.float32)


def _band_matrix(n: int, window_size: int, g1d: np.ndarray) -> np.ndarray:
    # M[i_in, i_out] = g[i_in - i_out + pad] if |i_in - i_out| <= pad else 0.
    # x @ M (contraction over i_in) performs the 1-D Gaussian conv along that
    # axis with the zero padding folded in (out-of-range taps hit zeros).
    pad = window_size // 2
    idx = np.arange(n)
    d = idx[:, None] - idx[None, :]               # i_in - i_out
    coeff = g1d[np.clip(d + pad, 0, window_size - 1)]
    return np.where(np.abs(d) <= pad, coeff, 0.0).astype(np.float32)


def _ssim_block_kernel(x1_ref, x2_ref, a_ref, b_ref, o_ref):
    # x1_ref, x2_ref: (BP, H, W) block of planes of each image.
    # a_ref: (H, H) height band matrix A[h_out, h_in] (left multiplication).
    # b_ref: (W, W) width  band matrix B[w_in, w_out] (right multiplication).
    # o_ref: (1, 8, 128) lane-dense partial-sum block for this plane block.
    bp, h, w = x1_ref.shape
    x1 = x1_ref[...]
    x2 = x2_ref[...]

    # Fuse the five Gaussian blurs: stack along the leading dim so each band
    # matrix is pushed to the MXU once per grid step (not once per blur).
    stacked = jnp.concatenate([x1, x2, x1 * x1, x2 * x2, x1 * x2], axis=0)  # (5*BP,H,W)
    m = 5 * bp

    # Width pass: one 2-D MXU matmul over all planes and all five channels.
    t = jnp.dot(stacked.reshape(m * h, w), b_ref[...],
                preferred_element_type=jnp.float32).reshape(m, h, w)

    # Height pass: batched MXU matmul (A broadcast across the batch dim).
    a_b = jnp.broadcast_to(a_ref[...], (m, h, h))
    blurred = jnp.einsum('pij,pjk->pik', a_b, t,
                         preferred_element_type=jnp.float32)                # (5*BP,H,W)

    mu1 = blurred[0 * bp:1 * bp]
    mu2 = blurred[1 * bp:2 * bp]
    e11 = blurred[2 * bp:3 * bp]
    e22 = blurred[3 * bp:4 * bp]
    e12 = blurred[4 * bp:5 * bp]

    mu1_sq = mu1 * mu1
    mu2_sq = mu2 * mu2
    mu1_mu2 = mu1 * mu2
    sigma1_sq = e11 - mu1_sq
    sigma2_sq = e22 - mu2_sq
    sigma12 = e12 - mu1_mu2

    num = (2.0 * mu1_mu2 + C1) * (2.0 * sigma12 + C2)
    den = (mu1_sq + mu2_sq + C1) * (sigma1_sq + sigma2_sq + C2)
    ssim_map = num / den

    partial = jnp.sum(ssim_map)                   # per-block partial sum (XLU reduce)
    o_ref[...] = jnp.broadcast_to(partial, o_ref.shape).astype(jnp.float32)


def _pick_block_planes(p: int, h: int, w: int,
                       max_block_bytes: int = 2 * 1024 * 1024,
                       max_bp: int = 64) -> int:
    # Largest divisor of P such that one plane block stays comfortably in VMEM
    # (inputs + stacked/blurred intermediates are ~12x one plane block).
    cap = max(1, min(max_bp, max_block_bytes // max(1, h * w * 4)))
    bp = 1
    for d in range(1, min(p, cap) + 1):
        if p % d == 0:
            bp = d
    return bp


def ssim_pallas(img1, img2, window_size: int = WINDOW_SIZE, sigma: float = SIGMA):
    # img1, img2: (N, C, H, W) float32 (NCHW like the PyTorch module).
    n, c, h, w = img1.shape
    p = n * c
    g1d = gaussian_1d(window_size, sigma)

    # Band matrices (trace-time constants, small untiled inputs).
    b_mat = jnp.asarray(_band_matrix(w, window_size, g1d))        # (W, W): x @ B
    a_mat = jnp.asarray(_band_matrix(h, window_size, g1d).T)      # (H, H): A @ t

    x1 = img1.reshape(p, h, w).astype(jnp.float32)
    x2 = img2.reshape(p, h, w).astype(jnp.float32)

    bp = _pick_block_planes(p, h, w)
    g = p // bp

    flops = p * (10 * h * w * (h + w) + 30 * h * w)
    bytes_accessed = 2 * p * h * w * 4 + (h * h + w * w) * 4 + g * 8 * 128 * 4

    partials = pl.pallas_call(
        _ssim_block_kernel,
        out_shape=jax.ShapeDtypeStruct((g, 8, 128), jnp.float32),
        grid_spec=pltpu.PrefetchScalarGridSpec(
            num_scalar_prefetch=0,
            grid=(g,),
            in_specs=[
                pl.BlockSpec((bp, h, w), lambda i: (i, 0, 0)),    # img1 plane block
                pl.BlockSpec((bp, h, w), lambda i: (i, 0, 0)),    # img2 plane block
                pl.BlockSpec((h, h), lambda i: (0, 0)),           # A (fetched once)
                pl.BlockSpec((w, w), lambda i: (0, 0)),           # B (fetched once)
            ],
            out_specs=pl.BlockSpec((1, 8, 128), lambda i: (i, 0, 0)),
        ),
        compiler_params=pltpu.CompilerParams(
            dimension_semantics=("parallel",),
            vmem_limit_bytes=32 * 1024 * 1024,
        ),
        cost_estimate=pl.CostEstimate(
            flops=flops, transcendentals=0, bytes_accessed=bytes_accessed),
    )(x1, x2, a_mat, b_mat)

    # size_average=True -> mean over all elements of ssim_map.
    inv_count = 1.0 / float(p * h * w)
    return jnp.sum(partials[:, 0, 0]) * inv_count


def ssim_reference(img1, img2, window_size: int = WINDOW_SIZE, sigma: float = SIGMA):
    # Pure-JAX reference mirroring the PyTorch _ssim exactly (depthwise conv2d).
    n, c, h, w = img1.shape
    g1d = gaussian_1d(window_size, sigma)
    w2d = np.outer(g1d, g1d).astype(np.float32)
    window = jnp.asarray(np.broadcast_to(w2d, (c, 1, window_size, window_size)).copy())
    pad = window_size // 2

    def conv(x):
        return lax.conv_general_dilated(
            x, window, window_strides=(1, 1),
            padding=((pad, pad), (pad, pad)),
            dimension_numbers=("NCHW", "OIHW", "NCHW"),
            feature_group_count=c)

    mu1 = conv(img1)
    mu2 = conv(img2)
    mu1_sq = mu1 * mu1
    mu2_sq = mu2 * mu2
    mu1_mu2 = mu1 * mu2
    sigma1_sq = conv(img1 * img1) - mu1_sq
    sigma2_sq = conv(img2 * img2) - mu2_sq
    sigma12 = conv(img1 * img2) - mu1_mu2
    ssim_map = ((2 * mu1_mu2 + C1) * (2 * sigma12 + C2)) / (
        (mu1_sq + mu2_sq + C1) * (sigma1_sq + sigma2_sq + C2))
    return jnp.mean(ssim_map)


if __name__ == "__main__":
    key = jax.random.PRNGKey(0)
    k1, k2 = jax.random.split(key)
    N, C, H, W = 2, 3, 16, 16
    img1 = jax.random.uniform(k1, (N, C, H, W), dtype=jnp.float32)
    # img2 = noisy version of img1 so SSIM is a meaningful positive value.
    img2 = jnp.clip(img1 + 0.1 * jax.random.normal(k2, (N, C, H, W), dtype=jnp.float32),
                    0.0, 1.0)

    out = ssim_pallas(img1, img2)
    out = jax.block_until_ready(out)

    ref = jax.block_until_ready(ssim_reference(img1, img2))
    if not np.allclose(np.asarray(out), np.asarray(ref), rtol=1e-4, atol=1e-5):
        raise AssertionError(f"mismatch: pallas={float(out)} ref={float(ref)}")

    print("KERNEL_OK")
</pallas_src>

<mosaic_0001>
module attributes {stable_mosaic.version = 11 : i64} {
  func.func @_ssim_block_kernel(%arg0: i32, %arg1: memref<6x16x16xf32, #tpu.memory_space<vmem>>, %arg2: memref<6x16x16xf32, #tpu.memory_space<vmem>>, %arg3: memref<16x16xf32, #tpu.memory_space<vmem>>, %arg4: memref<16x16xf32, #tpu.memory_space<vmem>>, %arg5: memref<1x8x128xf32, #tpu.memory_space<vmem>>) attributes {dimension_semantics = [#tpu.dimension_semantics<parallel>], iteration_bounds = array<i64: 1>, scalar_prefetch = 0 : i64, scratch_operands = 0 : i64, tpu.core_type = #tpu.core_type<tc>, window_params = [{transform_indices = @transform_0, window_bounds = array<i64: 6, 16, 16>}, {transform_indices = @transform_1, window_bounds = array<i64: 6, 16, 16>}, {pipeline_mode = #tpu.pipeline_mode<synchronous>, transform_indices = @transform_2, window_bounds = array<i64: 16, 16>}, {pipeline_mode = #tpu.pipeline_mode<synchronous>, transform_indices = @transform_3, window_bounds = array<i64: 16, 16>}, {transform_indices = @transform_4, window_bounds = array<i64: 1, 8, 128>}]} {
    %c0 = arith.constant 0 : index
    %c0_0 = arith.constant 0 : index
    %c0_1 = arith.constant 0 : index
    %0 = vector.load %arg1[%c0, %c0_0, %c0_1] : memref<6x16x16xf32, #tpu.memory_space<vmem>>, vector<6x16x16xf32>
    %c0_2 = arith.constant 0 : index
    %c0_3 = arith.constant 0 : index
    %c0_4 = arith.constant 0 : index
    %1 = vector.load %arg2[%c0_2, %c0_3, %c0_4] : memref<6x16x16xf32, #tpu.memory_space<vmem>>, vector<6x16x16xf32>
    %2 = arith.mulf %0, %0 : vector<6x16x16xf32>
    %3 = arith.mulf %1, %1 : vector<6x16x16xf32>
    %4 = arith.mulf %0, %1 : vector<6x16x16xf32>
    %5 = tpu.concatenate %0, %1, %2, %3, %4 in 0 : vector<6x16x16xf32>, vector<6x16x16xf32>, vector<6x16x16xf32>, vector<6x16x16xf32>, vector<6x16x16xf32> -> vector<30x16x16xf32>
    %6 = vector.shape_cast %5 : vector<30x16x16xf32> to vector<480x16xf32>
    %c0_5 = arith.constant 0 : index
    %c0_6 = arith.constant 0 : index
    %7 = vector.load %arg4[%c0_5, %c0_6] : memref<16x16xf32, #tpu.memory_space<vmem>>, vector<16x16xf32>
    %cst = arith.constant dense<0.000000e+00> : vector<480x16xf32>
    %8 = tpu.matmul %6, %7, %cst {dimension_numbers = #tpu.dot_dimension_numbers<[1], [0], [0], [1], [0, 0, 1, 1], [], []>} : vector<480x16xf32>, vector<16x16xf32>, vector<480x16xf32> -> vector<480x16xf32>
    %9 = vector.shape_cast %8 : vector<480x16xf32> to vector<30x16x16xf32>
    %c0_7 = arith.constant 0 : index
    %c0_8 = arith.constant 0 : index
    %10 = vector.load %arg3[%c0_7, %c0_8] : memref<16x16xf32, #tpu.memory_space<vmem>>, vector<16x16xf32>
    %11 = vector.shape_cast %10 : vector<16x16xf32> to vector<1x16x16xf32>
    %12 = vector.broadcast %11 : vector<1x16x16xf32> to vector<30x16x16xf32>
    "tpu.trace_start"() <{level = 10 : i32, message = "pij,pjk->pik"}> : () -> ()
    %cst_9 = arith.constant dense<0.000000e+00> : vector<30x16x16xf32>
    %13 = tpu.matmul %12, %9, %cst_9 {dimension_numbers = #tpu.dot_dimension_numbers<[2], [1], [1], [2], [0, 0, 0, 1, 1, 2], [0], [0]>} : vector<30x16x16xf32>, vector<30x16x16xf32>, vector<30x16x16xf32> -> vector<30x16x16xf32>
    "tpu.trace_stop"() : () -> ()
    %14 = vector.extract_strided_slice %13 {offsets = [0, 0, 0], sizes = [6, 16, 16], strides = [1, 1, 1]} : vector<30x16x16xf32> to vector<6x16x16xf32>
    %15 = vector.extract_strided_slice %13 {offsets = [6, 0, 0], sizes = [6, 16, 16], strides = [1, 1, 1]} : vector<30x16x16xf32> to vector<6x16x16xf32>
    %16 = vector.extract_strided_slice %13 {offsets = [12, 0, 0], sizes = [6, 16, 16], strides = [1, 1, 1]} : vector<30x16x16xf32> to vector<6x16x16xf32>
    %17 = vector.extract_strided_slice %13 {offsets = [18, 0, 0], sizes = [6, 16, 16], strides = [1, 1, 1]} : vector<30x16x16xf32> to vector<6x16x16xf32>
    %18 = vector.extract_strided_slice %13 {offsets = [24, 0, 0], sizes = [6, 16, 16], strides = [1, 1, 1]} : vector<30x16x16xf32> to vector<6x16x16xf32>
    %19 = arith.mulf %14, %14 : vector<6x16x16xf32>
    %20 = arith.mulf %15, %15 : vector<6x16x16xf32>
    %21 = arith.mulf %14, %15 : vector<6x16x16xf32>
    %22 = arith.subf %16, %19 : vector<6x16x16xf32>
    %23 = arith.subf %17, %20 : vector<6x16x16xf32>
    %24 = arith.subf %18, %21 : vector<6x16x16xf32>
    %cst_10 = arith.constant 2.000000e+00 : f32
    %25 = vector.broadcast %cst_10 : f32 to vector<6x16x16xf32>
    %26 = arith.mulf %25, %21 : vector<6x16x16xf32>
    %cst_11 = arith.constant 9.99999974E-5 : f32
    %27 = vector.broadcast %cst_11 : f32 to vector<6x16x16xf32>
    %28 = arith.addf %26, %27 : vector<6x16x16xf32>
    %cst_12 = arith.constant 2.000000e+00 : f32
    %29 = vector.broadcast %cst_12 : f32 to vector<6x16x16xf32>
    %30 = arith.mulf %29, %24 : vector<6x16x16xf32>
    %cst_13 = arith.constant 8.99999984E-4 : f32
    %31 = vector.broadcast %cst_13 : f32 to vector<6x16x16xf32>
    %32 = arith.addf %30, %31 : vector<6x16x16xf32>
    %33 = arith.mulf %28, %32 : vector<6x16x16xf32>
    %34 = arith.addf %19, %20 : vector<6x16x16xf32>
    %cst_14 = arith.constant 9.99999974E-5 : f32
    %35 = vector.broadcast %cst_14 : f32 to vector<6x16x16xf32>
    %36 = arith.addf %34, %35 : vector<6x16x16xf32>
    %37 = arith.addf %22, %23 : vector<6x16x16xf32>
    %cst_15 = arith.constant 8.99999984E-4 : f32
    %38 = vector.broadcast %cst_15 : f32 to vector<6x16x16xf32>
    %39 = arith.addf %37, %38 : vector<6x16x16xf32>
    %40 = arith.mulf %36, %39 : vector<6x16x16xf32>
    %41 = arith.divf %33, %40 : vector<6x16x16xf32>
    %42 = vector.shape_cast %41 : vector<6x16x16xf32> to vector<1x6x16x16xf32>
    %cst_16 = arith.constant dense<0.000000e+00> : vector<1xf32>
    %43 = vector.multi_reduction <add>, %42, %cst_16 [1, 2, 3] : vector<1x6x16x16xf32> to vector<1xf32>
    %44 = vector.shape_cast %43 : vector<1xf32> to vector<1x1x1x1xf32>
    %45 = vector.extract %44[0, 0, 0, 0] : f32 from vector<1x1x1x1xf32>
    %46 = vector.broadcast %45 : f32 to vector<1x8x128xf32>
    %c0_17 = arith.constant 0 : index
    %c0_18 = arith.constant 0 : index
    %c0_19 = arith.constant 0 : index
    %47 = vector.load %arg5[%c0_17, %c0_18, %c0_19] : memref<1x8x128xf32, #tpu.memory_space<vmem>>, vector<1x8x128xf32>
    tpu.vector_store %arg5[%c0_17, %c0_18, %c0_19], %46 {strides = array<i32>} : memref<1x8x128xf32, #tpu.memory_space<vmem>>, vector<1x8x128xf32>,
    return
  }
  func.func @transform_0(%arg0: i32) -> (i32, i32, i32) {
    %c0_i32 = arith.constant 0 : i32
    %c0_i32_0 = arith.constant 0 : i32
    %c0_i32_1 = arith.constant 0 : i32
    return %arg0, %c0_i32, %c0_i32_0 : i32, i32, i32
  }
  func.func @transform_1(%arg0: i32) -> (i32, i32, i32) {
    %c0_i32 = arith.constant 0 : i32
    %c0_i32_0 = arith.constant 0 : i32
    %c0_i32_1 = arith.constant 0 : i32
    return %arg0, %c0_i32, %c0_i32_0 : i32, i32, i32
  }
  func.func @transform_2(%arg0: i32) -> (i32, i32) {
    %c0_i32 = arith.constant 0 : i32
    %c0_i32_0 = arith.constant 0 : i32
    %c0_i32_1 = arith.constant 0 : i32
    return %c0_i32, %c0_i32_0 : i32, i32
  }
  func.func @transform_3(%arg0: i32) -> (i32, i32) {
    %c0_i32 = arith.constant 0 : i32
    %c0_i32_0 = arith.constant 0 : i32
    %c0_i32_1 = arith.constant 0 : i32
    return %c0_i32, %c0_i32_0 : i32, i32
  }
  func.func @transform_4(%arg0: i32) -> (i32, i32, i32) {
    %c0_i32 = arith.constant 0 : i32
    %c0_i32_0 = arith.constant 0 : i32
    %c0_i32_1 = arith.constant 0 : i32
    return %arg0, %c0_i32, %c0_i32_0 : i32, i32, i32
  }
}

</mosaic_0001>

<llo_original>
// kernel: tpu_custom_call.1
$region0: #{tpu_custom_call.1}
  #allocation0 [shape = 'u32[]', space=smem, size = 0x4, offset = 0x4, fixed_abs, tag = 'smem constant byte address 0x4 - core index']
  #allocation1 [shape = 'u32[144,128]{1,0:T(1,128)}', space=vmem, size = 0x12000, scoped, tag = 'internal scratch']
  %s0 = inlined_call_operand.hbm [shape: f32[6,16,16], index: 0, kind: input, shape index: {}]
  %s1 = inlined_call_operand.hbm [shape: f32[6,16,16], index: 1, kind: input, shape index: {}]
  %s2 = inlined_call_operand.hbm [shape: f32[16,16], index: 2, kind: input, shape index: {}]
  %s3 = inlined_call_operand.hbm [shape: f32[16,16], index: 3, kind: input, shape index: {}]
  %s4 = inlined_call_operand.hbm [shape: f32[1,8,128], index: 4, kind: output, shape index: {}]
  %s5 = sld [smem:[#allocation0]]
  $region42: #{tpu_custom_call.1} parent=0
    _
  %s7 = ssub.s32 1, %s5
  %s8 = scalar_select 0, %s7, %s5
  $region1: #{tpu_custom_call.1} parent=0
    #allocation2 [shape = 'u8[49152]{0}', space=vmem, size = 0xc000, scoped, tag = 'input window, operand 0, single buffered']
    #allocation3 [shape = 's32[1]{0}', space=sflag, size = 0x4, scoped, tag = 'scoped memory for tpu_custom_call.1']
    #allocation4 [shape = 's32[1]{0}', space=sflag, size = 0x4, scoped, tag = 'scoped memory for tpu_custom_call.1']
    #allocation5 [shape = 'u8[49152]{0}', space=vmem, size = 0xc000, scoped, tag = 'input window, operand 1, single buffered']
    #allocation6 [shape = 's32[1]{0}', space=sflag, size = 0x4, scoped, tag = 'scoped memory for tpu_custom_call.1']
    #allocation7 [shape = 'u8[8192]{0}', space=vmem, size = 0x2000, scoped, tag = 'input window, operand 2, single buffered']
    #allocation8 [shape = 'u8[8192]{0}', space=vmem, size = 0x2000, scoped, tag = 'input window, operand 3, single buffered']
    #allocation9 [shape = 's32[1]{0}', space=sflag, size = 0x4, scoped, tag = 'scoped memory for tpu_custom_call.1']
    #allocation10 [shape = 'u8[4096]{0}', space=vmem, size = 0x1000, scoped, tag = 'output window, operand 0, single buffered']
    %9 = vsyncpa [#allocation3], 0
    %10 = vsyncpa [#allocation6], 0
    %11 = vsyncpa [#allocation9], 0
    %12 = vsyncpa [#allocation4], 0
    // Predicated region
    $region2: #{tpu_custom_call.1} parent=1 // pred_check
      _
    $region3: #{tpu_custom_call.1} parent=1 // pred_check_branch
      %14 = sbr.rel (0) target = $region5
    $region4: #{tpu_custom_call.1} parent=1 // pred_region
      %s16 = ssub.s32 1536, 1536
      %17 = vsyncadd [#allocation3], %s16
      %s18 = sshll.u32 [#allocation2], 4
      %s19 = int_to_ptr.vmem [resolvable:$true] %s18
      %24 = dma.hbm_to_vmem [thread:$0]  %s0, 1536, %s19, [#allocation3], 128, 128, 8
    $region5: #{tpu_custom_call.1} parent=1 // pred_fallthru
      _
    // Predicated region
    $region6: #{tpu_custom_call.1} parent=1 // pred_check
      _
    $region7: #{tpu_custom_call.1} parent=1 // pred_check_branch
      %26 = sbr.rel (0) target = $region9
    $region8: #{tpu_custom_call.1} parent=1 // pred_region
      %s28 = ssub.s32 1536, 1536
      %29 = vsyncadd [#allocation6], %s28
      %s30 = sshll.u32 [#allocation5], 4
      %s31 = int_to_ptr.vmem [resolvable:$true] %s30
      %36 = dma.hbm_to_vmem [thread:$0]  %s1, 1536, %s31, [#allocation6], 128, 128, 8
    $region9: #{tpu_custom_call.1} parent=1 // pred_fallthru
      _
    // Predicated region
    $region10: #{tpu_custom_call.1} parent=1 // pred_check
      _
    $region11: #{tpu_custom_call.1} parent=1 // pred_check_branch
      %38 = sbr.rel (0) target = $region13
    $region12: #{tpu_custom_call.1} parent=1 // pred_region
      %s40 = ssub.s32 256, 256
      %41 = vsyncadd [#allocation6], %s40
      %s42 = sshll.u32 [#allocation7], 4
      %s43 = int_to_ptr.vmem [resolvable:$true] %s42
      %48 = dma.hbm_to_vmem [thread:$0]  %s2, 256, %s43, [#allocation6], 128, 128, 8
    $region13: #{tpu_custom_call.1} parent=1 // pred_fallthru
      _
    // Predicated region
    $region14: #{tpu_custom_call.1} parent=1 // pred_check
      _
    $region15: #{tpu_custom_call.1} parent=1 // pred_check_branch
      %50 = sbr.rel (0) target = $region17
    $region16: #{tpu_custom_call.1} parent=1 // pred_region
      %s52 = ssub.s32 256, 256
      %53 = vsyncadd [#allocation9], %s52
      %s54 = sshll.u32 [#allocation8], 4
      %s55 = int_to_ptr.vmem [resolvable:$true] %s54
      %60 = dma.hbm_to_vmem [thread:$0]  %s3, 256, %s55, [#allocation9], 128, 128, 8
    $region17: #{tpu_custom_call.1} parent=1 // pred_fallthru
      _
    // Predicated region
    $region18: #{tpu_custom_call.1} parent=1 // pred_check
      _
    $region19: #{tpu_custom_call.1} parent=1 // pred_check_branch
      %62 = sbr.rel (0) target = $region21
    $region20: #{tpu_custom_call.1} parent=1 // pred_region
      %63 = dma.done [#allocation3], 1536
    $region21: #{tpu_custom_call.1} parent=1 // pred_fallthru
      _
    // Predicated region
    $region22: #{tpu_custom_call.1} parent=1 // pred_check
      _
    $region23: #{tpu_custom_call.1} parent=1 // pred_check_branch
      %65 = sbr.rel (0) target = $region25
    $region24: #{tpu_custom_call.1} parent=1 // pred_region
      %66 = dma.done [#allocation6], 1536
    $region25: #{tpu_custom_call.1} parent=1 // pred_fallthru
      _
    // Predicated region
    $region26: #{tpu_custom_call.1} parent=1 // pred_check
      _
    $region27: #{tpu_custom_call.1} parent=1 // pred_check_branch
      %68 = sbr.rel (0) target = $region29
    $region28: #{tpu_custom_call.1} parent=1 // pred_region
      %69 = dma.done [#allocation6], 256
    $region29: #{tpu_custom_call.1} parent=1 // pred_fallthru
      _
    // Predicated region
    $region30: #{tpu_custom_call.1} parent=1 // pred_check
      _
    $region31: #{tpu_custom_call.1} parent=1 // pred_check_branch
      %71 = sbr.rel (0) target = $region33
    $region32: #{tpu_custom_call.1} parent=1 // pred_region
      %72 = dma.done [#allocation9], 256
    $region33: #{tpu_custom_call.1} parent=1 // pred_fallthru
      _
    %v73 = vld [vmem:[#allocation2] sm:$0xff]
    %v74 = vld [vmem:[#allocation2 + $0x8] sm:$0xff]
    %v75 = vld [vmem:[#allocation2 + $0x10] sm:$0xff]
    %v76 = vld [vmem:[#allocation2 + $0x18] sm:$0xff]
    %v77 = vld [vmem:[#allocation2 + $0x20] sm:$0xff]
    %v78 = vld [vmem:[#allocation2 + $0x28] sm:$0xff]
    %v79 = vld [vmem:[#allocation2 + $0x30] sm:$0xff]
    %v80 = vld [vmem:[#allocation2 + $0x38] sm:$0xff]
    %v81 = vld [vmem:[#allocation2 + $0x40] sm:$0xff]
    %v82 = vld [vmem:[#allocation2 + $0x48] sm:$0xff]
    %v83 = vld [vmem:[#allocation2 + $0x50] sm:$0xff]
    %v84 = vld [vmem:[#allocation2 + $0x58] sm:$0xff]
    %v85 = vld [vmem:[#allocation5] sm:$0xff]
    %v86 = vld [vmem:[#allocation5 + $0x8] sm:$0xff]
    %v87 = vld [vmem:[#allocation5 + $0x10] sm:$0xff]
    %v88 = vld [vmem:[#allocation5 + $0x18] sm:$0xff]
    %v89 = vld [vmem:[#allocation5 + $0x20] sm:$0xff]
    %v90 = vld [vmem:[#allocation5 + $0x28] sm:$0xff]
    %v91 = vld [vmem:[#allocation5 + $0x30] sm:$0xff]
    %v92 = vld [vmem:[#allocation5 + $0x38] sm:$0xff]
    %v93 = vld [vmem:[#allocation5 + $0x40] sm:$0xff]
    %v94 = vld [vmem:[#allocation5 + $0x48] sm:$0xff]
    %v95 = vld [vmem:[#allocation5 + $0x50] sm:$0xff]
    %v96 = vld [vmem:[#allocation5 + $0x58] sm:$0xff]
    %v97 = vmul.f32 %v73, %v73
    %v98 = vmul.f32 %v74, %v74
    %v99 = vmul.f32 %v75, %v75
    %v100 = vmul.f32 %v76, %v76
    %v101 = vmul.f32 %v77, %v77
    %v102 = vmul.f32 %v78, %v78
    %v103 = vmul.f32 %v79, %v79
    %v104 = vmul.f32 %v80, %v80
    %v105 = vmul.f32 %v81, %v81
    %v106 = vmul.f32 %v82, %v82
    %v107 = vmul.f32 %v83, %v83
    %v108 = vmul.f32 %v84, %v84
    %v109 = vmul.f32 %v85, %v85
    %v110 = vmul.f32 %v86, %v86
    %v111 = vmul.f32 %v87, %v87
    %v112 = vmul.f32 %v88, %v88
    %v113 = vmul.f32 %v89, %v89
    %v114 = vmul.f32 %v90, %v90
    %v115 = vmul.f32 %v91, %v91
    %v116 = vmul.f32 %v92, %v92
    %v117 = vmul.f32 %v93, %v93
    %v118 = vmul.f32 %v94, %v94
    %v119 = vmul.f32 %v95, %v95
    %v120 = vmul.f32 %v96, %v96
    %v121 = vmul.f32 %v73, %v85
    %v122 = vmul.f32 %v74, %v86
    %v123 = vmul.f32 %v75, %v87
    %v124 = vmul.f32 %v76, %v88
    %v125 = vmul.f32 %v77, %v89
    %v126 = vmul.f32 %v78, %v90
    %v127 = vmul.f32 %v79, %v91
    %v128 = vmul.f32 %v80, %v92
    %v129 = vmul.f32 %v81, %v93
    %v130 = vmul.f32 %v82, %v94
    %v131 = vmul.f32 %v83, %v95
    %v132 = vmul.f32 %v84, %v96
    %v133 = vld [vmem:[#allocation8] sm:$0xff]
    %v134 = vld [vmem:[#allocation8 + $0x8] sm:$0xff]
    %vm135 = vcmask 130048
    %v137 = vsel %vm135, %v73, 0
    %v140 = vsel %vm135, %v74, 0
    %v143 = vsel %vm135, %v75, 0
    %v146 = vsel %vm135, %v76, 0
    %v149 = vsel %vm135, %v77, 0
    %v152 = vsel %vm135, %v78, 0
    %v155 = vsel %vm135, %v79, 0
    %v158 = vsel %vm135, %v80, 0
    %v161 = vsel %vm135, %v81, 0
    %v164 = vsel %vm135, %v82, 0
    %v167 = vsel %vm135, %v83, 0
    %v170 = vsel %vm135, %v84, 0
    %v173 = vsel %vm135, %v85, 0
    %v176 = vsel %vm135, %v86, 0
    %v179 = vsel %vm135, %v87, 0
    %v182 = vsel %vm135, %v88, 0
    %v185 = vsel %vm135, %v89, 0
    %v188 = vsel %vm135, %v90, 0
    %v191 = vsel %vm135, %v91, 0
    %v194 = vsel %vm135, %v92, 0
    %v197 = vsel %vm135, %v93, 0
    %v200 = vsel %vm135, %v94, 0
    %v203 = vsel %vm135, %v95, 0
    %v206 = vsel %vm135, %v96, 0
    %v209 = vsel %vm135, %v97, 0
    %v212 = vsel %vm135, %v98, 0
    %v215 = vsel %vm135, %v99, 0
    %v218 = vsel %vm135, %v100, 0
    %v221 = vsel %vm135, %v101, 0
    %v224 = vsel %vm135, %v102, 0
    %v227 = vsel %vm135, %v103, 0
    %v230 = vsel %vm135, %v104, 0
    %v233 = vsel %vm135, %v105, 0
    %v236 = vsel %vm135, %v106, 0
    %v239 = vsel %vm135, %v107, 0
    %v242 = vsel %vm135, %v108, 0
    %v245 = vsel %vm135, %v109, 0
    %v248 = vsel %vm135, %v110, 0
    %v251 = vsel %vm135, %v111, 0
    %v254 = vsel %vm135, %v112, 0
    %v257 = vsel %vm135, %v113, 0
    %v260 = vsel %vm135, %v114, 0
    %v263 = vsel %vm135, %v115, 0
    %v266 = vsel %vm135, %v116, 0
    %v269 = vsel %vm135, %v117, 0
    %v272 = vsel %vm135, %v118, 0
    %v275 = vsel %vm135, %v119, 0
    %v278 = vsel %vm135, %v120, 0
    %v281 = vsel %vm135, %v121, 0
    %v284 = vsel %vm135, %v122, 0
    %v287 = vsel %vm135, %v123, 0
    %v290 = vsel %vm135, %v124, 0
    %v293 = vsel %vm135, %v125, 0
    %v296 = vsel %vm135, %v126, 0
    %v299 = vsel %vm135, %v127, 0
    %v302 = vsel %vm135, %v128, 0
    %v305 = vsel %vm135, %v129, 0
    %v308 = vsel %vm135, %v130, 0
    %v311 = vsel %vm135, %v131, 0
    %v314 = vsel %vm135, %v132, 0
    %316 = vmatprep.subr.mxu0 0.0
    %317 = vmatpush1.msra.mxu0 %v133
    %318 = vmatprep.subr.mxu0 0.0
    %319 = vmatpush1.msra.mxu0 %v134
    %320 = vmatprep.subr.mxu0 0.0
    %321 = vmatpush1.msra.mxu0 0.0
    %322 = vmatprep.subr.mxu0 0.0
    %323 = vmatpush1.msra.mxu0 0.0
    %324 = vmatprep.subr.mxu0 0.0
    %325 = vmatpush1.msra.mxu0 0.0
    %326 = vmatprep.subr.mxu0 0.0
    %327 = vmatpush1.msra.mxu0 0.0
    %328 = vmatprep.subr.mxu0 0.0
    %329 = vmatpush1.msra.mxu0 0.0
    %330 = vmatprep.subr.mxu0 0.0
    %331 = vmatpush1.msra.mxu0 0.0
    %332 = vmatprep.subr.mxu0 0.0
    %333 = vmatpush1.msra.mxu0 0.0
    %334 = vmatprep.subr.mxu0 0.0
    %335 = vmatpush1.msra.mxu0 0.0
    %336 = vmatprep.subr.mxu0 0.0
    %337 = vmatpush1.msra.mxu0 0.0
    %338 = vmatprep.subr.mxu0 0.0
    %339 = vmatpush1.msra.mxu0 0.0
    %340 = vmatprep.subr.mxu0 0.0
    %341 = vmatpush1.msra.mxu0 0.0
    %342 = vmatprep.subr.mxu0 0.0
    %343 = vmatpush1.msra.mxu0 0.0
    %344 = vmatprep.subr.mxu0 0.0
    %345 = vmatpush1.msra.mxu0 0.0
    %346 = vmatprep.subr.mxu0 0.0
    %347 = vmatpush1.msra.mxu0 0.0
    %348 = vmatprep.subr.mxu0 0.0
    %349 = vmatpush1.msra.mxu0 0.0
    %350 = vmatprep.subr.mxu0 0.0
    %351 = vmatpush1.msra.mxu0 0.0
    %352 = vmatprep.subr.mxu0 0.0
    %353 = vmatpush1.msra.mxu0 0.0
    %354 = vmatprep.subr.mxu0 0.0
    %355 = vmatpush1.msra.mxu0 0.0
    %356 = vmatprep.subr.mxu0 0.0
    %357 = vmatpush1.msra.mxu0 0.0
    %358 = vmatprep.subr.mxu0 0.0
    %359 = vmatpush1.msra.mxu0 0.0
    %360 = vmatprep.subr.mxu0 0.0
    %361 = vmatpush1.msra.mxu0 0.0
    %362 = vmatprep.subr.mxu0 0.0
    %363 = vmatpush1.msra.mxu0 0.0
    %364 = vmatprep.subr.mxu0 0.0
    %365 = vmatpush1.msra.mxu0 0.0
    %366 = vmatprep.subr.mxu0 0.0
    %367 = vmatpush1.msra.mxu0 0.0
    %368 = vmatprep.subr.mxu0 0.0
    %369 = vmatpush1.msra.mxu0 0.0
    %370 = vmatprep.subr.mxu0 0.0
    %371 = vmatpush1.msra.mxu0 0.0
    %372 = vmatprep.subr.mxu0 0.0
    %373 = vmatpush1.msra.mxu0 0.0
    %374 = vmatprep.subr.mxu0 0.0
    %375 = vmatpush1.msra.mxu0 0.0
    %376 = vmatprep.subr.mxu0 0.0
    %377 = vmatpush1.msra.mxu0 0.0
    %378 = vmatprep.subr.mxu0 0.0
    %379 = vmatpush1.msra.mxu0 0.0
    %380 = vmatprep.mubr.f32.mxu0 0.0
    %381 = vmatmul.mubr.f32.gmra.mrb[0].mxu0 %v137
    %v382 = vpop.f32.mrb[0].mxu0
    %v383 = vadd.f32 0.0, %v382
    %v384 = vpop.f32.mrb[0].mxu0
    %385 = vmatprep.mubr.f32.mxu0 0.0
    %386 = vmatmul.mubr.f32.gmra.mrb[0].mxu0 %v140
    %v387 = vpop.f32.mrb[0].mxu0
    %v388 = vadd.f32 0.0, %v387
    %v389 = vpop.f32.mrb[0].mxu0
    %390 = vmatprep.mubr.f32.mxu0 0.0
    %391 = vmatmul.mubr.f32.gmra.mrb[0].mxu0 %v143
    %v392 = vpop.f32.mrb[0].mxu0
    %v393 = vadd.f32 0.0, %v392
    %v394 = vpop.f32.mrb[0].mxu0
    %395 = vmatprep.mubr.f32.mxu0 0.0
    %396 = vmatmul.mubr.f32.gmra.mrb[0].mxu0 %v146
    %v397 = vpop.f32.mrb[0].mxu0
    %v398 = vadd.f32 0.0, %v397
    %v399 = vpop.f32.mrb[0].mxu0
    %400 = vmatprep.mubr.f32.mxu0 0.0
    %401 = vmatmul.mubr.f32.gmra.mrb[0].mxu0 %v149
    %v402 = vpop.f32.mrb[0].mxu0
    %v403 = vadd.f32 0.0, %v402
    %v404 = vpop.f32.mrb[0].mxu0
    %405 = vmatprep.mubr.f32.mxu0 0.0
    %406 = vmatmul.mubr.f32.gmra.mrb[0].mxu0 %v152
    %v407 = vpop.f32.mrb[0].mxu0
    %v408 = vadd.f32 0.0, %v407
    %v409 = vpop.f32.mrb[0].mxu0
    %410 = vmatprep.mubr.f32.mxu0 0.0
    %411 = vmatmul.mubr.f32.gmra.mrb[0].mxu0 %v155
    %v412 = vpop.f32.mrb[0].mxu0
    %v413 = vadd.f32 0.0, %v412
    %v414 = vpop.f32.mrb[0].mxu0
    %415 = vmatprep.mubr.f32.mxu0 0.0
    %416 = vmatmul.mubr.f32.gmra.mrb[0].mxu0 %v158
    %v417 = vpop.f32.mrb[0].mxu0
    %v418 = vadd.f32 0.0, %v417
    %v419 = vpop.f32.mrb[0].mxu0
    %420 = vmatprep.mubr.f32.mxu0 0.0
    %421 = vmatmul.mubr.f32.gmra.mrb[0].mxu0 %v161
    %v422 = vpop.f32.mrb[0].mxu0
    %v423 = vadd.f32 0.0, %v422
    %v424 = vpop.f32.mrb[0].mxu0
    %425 = vmatprep.mubr.f32.mxu0 0.0
    %426 = vmatmul.mubr.f32.gmra.mrb[0].mxu0 %v164
    %v427 = vpop.f32.mrb[0].mxu0
    %v428 = vadd.f32 0.0, %v427
    %v429 = vpop.f32.mrb[0].mxu0
    %430 = vmatprep.mubr.f32.mxu0 0.0
    %431 = vmatmul.mubr.f32.gmra.mrb[0].mxu0 %v167
    %v432 = vpop.f32.mrb[0].mxu0
    %v433 = vadd.f32 0.0, %v432
    %v434 = vpop.f32.mrb[0].mxu0
    %435 = vmatprep.mubr.f32.mxu0 0.0
    %436 = vmatmul.mubr.f32.gmra.mrb[0].mxu0 %v170
    %v437 = vpop.f32.mrb[0].mxu0
    %v438 = vadd.f32 0.0, %v437
    %v439 = vpop.f32.mrb[0].mxu0
    %440 = vmatprep.mubr.f32.mxu0 0.0
    %441 = vmatmul.mubr.f32.gmra.mrb[0].mxu0 %v173
    %v442 = vpop.f32.mrb[0].mxu0
    %v443 = vadd.f32 0.0, %v442
    %v444 = vpop.f32.mrb[0].mxu0
    %445 = vmatprep.mubr.f32.mxu0 0.0
    %446 = vmatmul.mubr.f32.gmra.mrb[0].mxu0 %v176
    %v447 = vpop.f32.mrb[0].mxu0
    %v448 = vadd.f32 0.0, %v447
    %v449 = vpop.f32.mrb[0].mxu0
    %450 = vmatprep.mubr.f32.mxu0 0.0
    %451 = vmatmul.mubr.f32.gmra.mrb[0].mxu0 %v179
    %v452 = vpop.f32.mrb[0].mxu0
    %v453 = vadd.f32 0.0, %v452
    %v454 = vpop.f32.mrb[0].mxu0
    %455 = vmatprep.mubr.f32.mxu0 0.0
    %456 = vmatmul.mubr.f32.gmra.mrb[0].mxu0 %v182
    %v457 = vpop.f32.mrb[0].mxu0
    %v458 = vadd.f32 0.0, %v457
    %v459 = vpop.f32.mrb[0].mxu0
    %460 = vmatprep.mubr.f32.mxu0 0.0
    %461 = vmatmul.mubr.f32.gmra.mrb[0].mxu0 %v185
    %v462 = vpop.f32.mrb[0].mxu0
    %v463 = vadd.f32 0.0, %v462
    %v464 = vpop.f32.mrb[0].mxu0
    %465 = vmatprep.mubr.f32.mxu0 0.0
    %466 = vmatmul.mubr.f32.gmra.mrb[0].mxu0 %v188
    %v467 = vpop.f32.mrb[0].mxu0
    %v468 = vadd.f32 0.0, %v467
    %v469 = vpop.f32.mrb[0].mxu0
    %470 = vmatprep.mubr.f32.mxu0 0.0
    %471 = vmatmul.mubr.f32.gmra.mrb[0].mxu0 %v191
    %v472 = vpop.f32.mrb[0].mxu0
    %v473 = vadd.f32 0.0, %v472
    %v474 = vpop.f32.mrb[0].mxu0
    %475 = vmatprep.mubr.f32.mxu0 0.0
    %476 = vmatmul.mubr.f32.gmra.mrb[0].mxu0 %v194
    %v477 = vpop.f32.mrb[0].mxu0
    %v478 = vadd.f32 0.0, %v477
    %v479 = vpop.f32.mrb[0].mxu0
    %480 = vmatprep.mubr.f32.mxu0 0.0
    %481 = vmatmul.mubr.f32.gmra.mrb[0].mxu0 %v197
    %v482 = vpop.f32.mrb[0].mxu0
    %v483 = vadd.f32 0.0, %v482
    %v484 = vpop.f32.mrb[0].mxu0
    %485 = vmatprep.mubr.f32.mxu0 0.0
    %486 = vmatmul.mubr.f32.gmra.mrb[0].mxu0 %v200
    %v487 = vpop.f32.mrb[0].mxu0
    %v488 = vadd.f32 0.0, %v487
    %v489 = vpop.f32.mrb[0].mxu0
    %490 = vmatprep.mubr.f32.mxu0 0.0
    %491 = vmatmul.mubr.f32.gmra.mrb[0].mxu0 %v203
    %v492 = vpop.f32.mrb[0].mxu0
    %v493 = vadd.f32 0.0, %v492
    %v494 = vpop.f32.mrb[0].mxu0
    %495 = vmatprep.mubr.f32.mxu0 0.0
    %496 = vmatmul.mubr.f32.gmra.mrb[0].mxu0 %v206
    %v497 = vpop.f32.mrb[0].mxu0
    %v498 = vadd.f32 0.0, %v497
    %v499 = vpop.f32.mrb[0].mxu0
    %500 = vmatprep.mubr.f32.mxu0 0.0
    %501 = vmatmul.mubr.f32.gmra.mrb[0].mxu0 %v209
    %v502 = vpop.f32.mrb[0].mxu0
    %v503 = vadd.f32 0.0, %v502
    %v504 = vpop.f32.mrb[0].mxu0
    %505 = vmatprep.mubr.f32.mxu0 0.0
    %506 = vmatmul.mubr.f32.gmra.mrb[0].mxu0 %v212
    %v507 = vpop.f32.mrb[0].mxu0
    %v508 = vadd.f32 0.0, %v507
    %v509 = vpop.f32.mrb[0].mxu0
    %510 = vmatprep.mubr.f32.mxu0 0.0
    %511 = vmatmul.mubr.f32.gmra.mrb[0].mxu0 %v215
    %v512 = vpop.f32.mrb[0].mxu0
    %v513 = vadd.f32 0.0, %v512
    %v514 = vpop.f32.mrb[0].mxu0
    %515 = vmatprep.mubr.f32.mxu0 0.0
    %516 = vmatmul.mubr.f32.gmra.mrb[0].mxu0 %v218
    %v517 = vpop.f32.mrb[0].mxu0
    %v518 = vadd.f32 0.0, %v517
    %v519 = vpop.f32.mrb[0].mxu0
    %520 = vmatprep.mubr.f32.mxu0 0.0
    %521 = vmatmul.mubr.f32.gmra.mrb[0].mxu0 %v221
    %v522 = vpop.f32.mrb[0].mxu0
    %v523 = vadd.f32 0.0, %v522
    %v524 = vpop.f32.mrb[0].mxu0
    %525 = vmatprep.mubr.f32.mxu0 0.0
    %526 = vmatmul.mubr.f32.gmra.mrb[0].mxu0 %v224
    %v527 = vpop.f32.mrb[0].mxu0
    %v528 = vadd.f32 0.0, %v527
    %v529 = vpop.f32.mrb[0].mxu0
    %530 = vmatprep.mubr.f32.mxu0 0.0
    %531 = vmatmul.mubr.f32.gmra.mrb[0].mxu0 %v227
    %v532 = vpop.f32.mrb[0].mxu0
    %v533 = vadd.f32 0.0, %v532
    %v534 = vpop.f32.mrb[0].mxu0
    %535 = vmatprep.mubr.f32.mxu0 0.0
    %536 = vmatmul.mubr.f32.gmra.mrb[0].mxu0 %v230
    %v537 = vpop.f32.mrb[0].mxu0
    %v538 = vadd.f32 0.0, %v537
    %v539 = vpop.f32.mrb[0].mxu0
    %540 = vmatprep.mubr.f32.mxu0 0.0
    %541 = vmatmul.mubr.f32.gmra.mrb[0].mxu0 %v233
    %v542 = vpop.f32.mrb[0].mxu0
    %v543 = vadd.f32 0.0, %v542
    %v544 = vpop.f32.mrb[0].mxu0
    %545 = vmatprep.mubr.f32.mxu0 0.0
    %546 = vmatmul.mubr.f32.gmra.mrb[0].mxu0 %v236
    %v547 = vpop.f32.mrb[0].mxu0
    %v548 = vadd.f32 0.0, %v547
    %v549 = vpop.f32.mrb[0].mxu0
    %550 = vmatprep.mubr.f32.mxu0 0.0
    %551 = vmatmul.mubr.f32.gmra.mrb[0].mxu0 %v239
    %v552 = vpop.f32.mrb[0].mxu0
    %v553 = vadd.f32 0.0, %v552
    %v554 = vpop.f32.mrb[0].mxu0
    %555 = vmatprep.mubr.f32.mxu0 0.0
    %556 = vmatmul.mubr.f32.gmra.mrb[0].mxu0 %v242
    %v557 = vpop.f32.mrb[0].mxu0
    %v558 = vadd.f32 0.0, %v557
    %v559 = vpop.f32.mrb[0].mxu0
    %560 = vmatprep.mubr.f32.mxu0 0.0
    %561 = vmatmul.mubr.f32.gmra.mrb[0].mxu0 %v245
    %v562 = vpop.f32.mrb[0].mxu0
    %v563 = vadd.f32 0.0, %v562
    %v564 = vpop.f32.mrb[0].mxu0
    %565 = vmatprep.mubr.f32.mxu0 0.0
    %566 = vmatmul.mubr.f32.gmra.mrb[0].mxu0 %v248
    %v567 = vpop.f32.mrb[0].mxu0
    %v568 = vadd.f32 0.0, %v567
    %v569 = vpop.f32.mrb[0].mxu0
    %570 = vmatprep.mubr.f32.mxu0 0.0
    %571 = vmatmul.mubr.f32.gmra.mrb[0].mxu0 %v251
    %v572 = vpop.f32.mrb[0].mxu0
    %v573 = vadd.f32 0.0, %v572
    %v574 = vpop.f32.mrb[0].mxu0
    %575 = vmatprep.mubr.f32.mxu0 0.0
    %576 = vmatmul.mubr.f32.gmra.mrb[0].mxu0 %v254
    %v577 = vpop.f32.mrb[0].mxu0
    %v578 = vadd.f32 0.0, %v577
    %v579 = vpop.f32.mrb[0].mxu0
    %580 = vmatprep.mubr.f32.mxu0 0.0
    %581 = vmatmul.mubr.f32.gmra.mrb[0].mxu0 %v257
    %v582 = vpop.f32.mrb[0].mxu0
    %v583 = vadd.f32 0.0, %v582
    %v584 = vpop.f32.mrb[0].mxu0
    %585 = vmatprep.mubr.f32.mxu0 0.0
    %586 = vmatmul.mubr.f32.gmra.mrb[0].mxu0 %v260
    %v587 = vpop.f32.mrb[0].mxu0
    %v588 = vadd.f32 0.0, %v587
    %v589 = vpop.f32.mrb[0].mxu0
    %590 = vmatprep.mubr.f32.mxu0 0.0
    %591 = vmatmul.mubr.f32.gmra.mrb[0].mxu0 %v263
    %v592 = vpop.f32.mrb[0].mxu0
    %v593 = vadd.f32 0.0, %v592
    %v594 = vpop.f32.mrb[0].mxu0
    %595 = vmatprep.mubr.f32.mxu0 0.0
    %596 = vmatmul.mubr.f32.gmra.mrb[0].mxu0 %v266
    %v597 = vpop.f32.mrb[0].mxu0
    %v598 = vadd.f32 0.0, %v597
    %v599 = vpop.f32.mrb[0].mxu0
    %600 = vmatprep.mubr.f32.mxu0 0.0
    %601 = vmatmul.mubr.f32.gmra.mrb[0].mxu0 %v269
    %v602 = vpop.f32.mrb[0].mxu0
    %v603 = vadd.f32 0.0, %v602
    %v604 = vpop.f32.mrb[0].mxu0
    %605 = vmatprep.mubr.f32.mxu0 0.0
    %606 = vmatmul.mubr.f32.gmra.mrb[0].mxu0 %v272
    %v607 = vpop.f32.mrb[0].mxu0
    %v608 = vadd.f32 0.0, %v607
    %v609 = vpop.f32.mrb[0].mxu0
    %610 = vmatprep.mubr.f32.mxu0 0.0
    %611 = vmatmul.mubr.f32.gmra.mrb[0].mxu0 %v275
    %v612 = vpop.f32.mrb[0].mxu0
    %v613 = vadd.f32 0.0, %v612
    %v614 = vpop.f32.mrb[0].mxu0
    %615 = vmatprep.mubr.f32.mxu0 0.0
    %616 = vmatmul.mubr.f32.gmra.mrb[0].mxu0 %v278
    %v617 = vpop.f32.mrb[0].mxu0
    %v618 = vadd.f32 0.0, %v617
    %v619 = vpop.f32.mrb[0].mxu0
    %620 = vmatprep.mubr.f32.mxu0 0.0
    %621 = vmatmul.mubr.f32.gmra.mrb[0].mxu0 %v281
    %v622 = vpop.f32.mrb[0].mxu0
    %v623 = vadd.f32 0.0, %v622
    %v624 = vpop.f32.mrb[0].mxu0
    %625 = vmatprep.mubr.f32.mxu0 0.0
    %626 = vmatmul.mubr.f32.gmra.mrb[0].mxu0 %v284
    %v627 = vpop.f32.mrb[0].mxu0
    %v628 = vadd.f32 0.0, %v627
    %v629 = vpop.f32.mrb[0].mxu0
    %630 = vmatprep.mubr.f32.mxu0 0.0
    %631 = vmatmul.mubr.f32.gmra.mrb[0].mxu0 %v287
    %v632 = vpop.f32.mrb[0].mxu0
    %v633 = vadd.f32 0.0, %v632
    %v634 = vpop.f32.mrb[0].mxu0
    %635 = vmatprep.mubr.f32.mxu0 0.0
    %636 = vmatmul.mubr.f32.gmra.mrb[0].mxu0 %v290
    %v637 = vpop.f32.mrb[0].mxu0
    %v638 = vadd.f32 0.0, %v637
    %v639 = vpop.f32.mrb[0].mxu0
    %640 = vmatprep.mubr.f32.mxu0 0.0
    %641 = vmatmul.mubr.f32.gmra.mrb[0].mxu0 %v293
    %v642 = vpop.f32.mrb[0].mxu0
    %v643 = vadd.f32 0.0, %v642
    %v644 = vpop.f32.mrb[0].mxu0
    %645 = vmatprep.mubr.f32.mxu0 0.0
    %646 = vmatmul.mubr.f32.gmra.mrb[0].mxu0 %v296
    %v647 = vpop.f32.mrb[0].mxu0
    %v648 = vadd.f32 0.0, %v647
    %v649 = vpop.f32.mrb[0].mxu0
    %650 = vmatprep.mubr.f32.mxu0 0.0
    %651 = vmatmul.mubr.f32.gmra.mrb[0].mxu0 %v299
    %v652 = vpop.f32.mrb[0].mxu0
    %v653 = vadd.f32 0.0, %v652
    %v654 = vpop.f32.mrb[0].mxu0
    %655 = vmatprep.mubr.f32.mxu0 0.0
    %656 = vmatmul.mubr.f32.gmra.mrb[0].mxu0 %v302
    %v657 = vpop.f32.mrb[0].mxu0
    %v658 = vadd.f32 0.0, %v657
    %v659 = vpop.f32.mrb[0].mxu0
    %660 = vmatprep.mubr.f32.mxu0 0.0
    %661 = vmatmul.mubr.f32.gmra.mrb[0].mxu0 %v305
    %v662 = vpop.f32.mrb[0].mxu0
    %v663 = vadd.f32 0.0, %v662
    %v664 = vpop.f32.mrb[0].mxu0
    %665 = vmatprep.mubr.f32.mxu0 0.0
    %666 = vmatmul.mubr.f32.gmra.mrb[0].mxu0 %v308
    %v667 = vpop.f32.mrb[0].mxu0
    %v668 = vadd.f32 0.0, %v667
    %v669 = vpop.f32.mrb[0].mxu0
    %670 = vmatprep.mubr.f32.mxu0 0.0
    %671 = vmatmul.mubr.f32.gmra.mrb[0].mxu0 %v311
    %v672 = vpop.f32.mrb[0].mxu0
    %v673 = vadd.f32 0.0, %v672
    %v674 = vpop.f32.mrb[0].mxu0
    %675 = vmatprep.mubr.f32.mxu0 0.0
    %676 = vmatmul.mubr.f32.gmra.mrb[0].mxu0 %v314
    %v677 = vpop.f32.mrb[0].mxu0
    %v678 = vadd.f32 0.0, %v677
    %v679 = vpop.f32.mrb[0].mxu0
    %680 = vdwg.mxu0
    %v681 = vld [vmem:[#allocation7] sm:$0xff]
    %v682 = vld [vmem:[#allocation7 + $0x8] sm:$0xff]
    %v684 = vsel %vm135, %v681, 0
    %v687 = vsel %vm135, %v682, 0
    %689 = vmatprep.subr.mxu0 0.0
    %690 = vmatpush1.msra.mxu0 %v383
    %691 = vmatprep.subr.mxu0 0.0
    %692 = vmatpush1.msra.mxu0 %v388
    %693 = vmatprep.subr.mxu0 0.0
    %694 = vmatpush1.msra.mxu0 0.0
    %695 = vmatprep.subr.mxu0 0.0
    %696 = vmatpush1.msra.mxu0 0.0
    %697 = vmatprep.subr.mxu0 0.0
    %698 = vmatpush1.msra.mxu0 0.0
    %699 = vmatprep.subr.mxu0 0.0
    %700 = vmatpush1.msra.mxu0 0.0
    %701 = vmatprep.subr.mxu0 0.0
    %702 = vmatpush1.msra.mxu0 0.0
    %703 = vmatprep.subr.mxu0 0.0
    %704 = vmatpush1.msra.mxu0 0.0
    %705 = vmatprep.subr.mxu0 0.0
    %706 = vmatpush1.msra.mxu0 0.0
    %707 = vmatprep.subr.mxu0 0.0
    %708 = vmatpush1.msra.mxu0 0.0
    %709 = vmatprep.subr.mxu0 0.0
    %710 = vmatpush1.msra.mxu0 0.0
    %711 = vmatprep.subr.mxu0 0.0
    %712 = vmatpush1.msra.mxu0 0.0
    %713 = vmatprep.subr.mxu0 0.0
    %714 = vmatpush1.msra.mxu0 0.0
    %715 = vmatprep.subr.mxu0 0.0
    %716 = vmatpush1.msra.mxu0 0.0
    %717 = vmatprep.subr.mxu0 0.0
    %718 = vmatpush1.msra.mxu0 0.0
    %719 = vmatprep.subr.mxu0 0.0
    %720 = vmatpush1.msra.mxu0 0.0
    %721 = vmatprep.subr.mxu0 0.0
    %722 = vmatpush1.msra.mxu0 0.0
    %723 = vmatprep.subr.mxu0 0.0
    %724 = vmatpush1.msra.mxu0 0.0
    %725 = vmatprep.subr.mxu0 0.0
    %726 = vmatpush1.msra.mxu0 0.0
    %727 = vmatprep.subr.mxu0 0.0
    %728 = vmatpush1.msra.mxu0 0.0
    %729 = vmatprep.subr.mxu0 0.0
    %730 = vmatpush1.msra.mxu0 0.0
    %731 = vmatprep.subr.mxu0 0.0
    %732 = vmatpush1.msra.mxu0 0.0
    %733 = vmatprep.subr.mxu0 0.0
    %734 = vmatpush1.msra.mxu0 0.0
    %735 = vmatprep.subr.mxu0 0.0
    %736 = vmatpush1.msra.mxu0 0.0
    %737 = vmatprep.subr.mxu0 0.0
    %738 = vmatpush1.msra.mxu0 0.0
    %739 = vmatprep.subr.mxu0 0.0
    %740 = vmatpush1.msra.mxu0 0.0
    %741 = vmatprep.subr.mxu0 0.0
    %742 = vmatpush1.msra.mxu0 0.0
    %743 = vmatprep.subr.mxu0 0.0
    %744 = vmatpush1.msra.mxu0 0.0
    %745 = vmatprep.subr.mxu0 0.0
    %746 = vmatpush1.msra.mxu0 0.0
    %747 = vmatprep.subr.mxu0 0.0
    %748 = vmatpush1.msra.mxu0 0.0
    %749 = vmatprep.subr.mxu0 0.0
    %750 = vmatpush1.msra.mxu0 0.0
    %751 = vmatprep.subr.mxu0 0.0
    %752 = vmatpush1.msra.mxu0 0.0
    %753 = vmatprep.mubr.f32.mxu0 0.0
    %754 = vmatmul.mubr.f32.gmra.mrb[0].mxu0 %v684
    %v755 = vpop.f32.mrb[0].mxu0
    %v756 = vadd.f32 0.0, %v755
    %v757 = vpop.f32.mrb[0].mxu0
    %758 = vmatprep.mubr.f32.mxu0 0.0
    %759 = vmatmul.mubr.f32.gmra.mrb[0].mxu0 %v687
    %v760 = vpop.f32.mrb[0].mxu0
    %v761 = vadd.f32 0.0, %v760
    %v762 = vpop.f32.mrb[0].mxu0
    %763 = vdwg.mxu0
    %764 = vmatprep.subr.mxu0 0.0
    %765 = vmatpush1.msra.mxu0 %v393
    %766 = vmatprep.subr.mxu0 0.0
    %767 = vmatpush1.msra.mxu0 %v398
    %768 = vmatprep.subr.mxu0 0.0
    %769 = vmatpush1.msra.mxu0 0.0
    %770 = vmatprep.subr.mxu0 0.0
    %771 = vmatpush1.msra.mxu0 0.0
    %772 = vmatprep.subr.mxu0 0.0
    %773 = vmatpush1.msra.mxu0 0.0
    %774 = vmatprep.subr.mxu0 0.0
    %775 = vmatpush1.msra.mxu0 0.0
    %776 = vmatprep.subr.mxu0 0.0
    %777 = vmatpush1.msra.mxu0 0.0
    %778 = vmatprep.subr.mxu0 0.0
    %779 = vmatpush1.msra.mxu0 0.0
    %780 = vmatprep.subr.mxu0 0.0
    %781 = vmatpush1.msra.mxu0 0.0
    %782 = vmatprep.subr.mxu0 0.0
    %783 = vmatpush1.msra.mxu0 0.0
    %784 = vmatprep.subr.mxu0 0.0
    %785 = vmatpush1.msra.mxu0 0.0
    %786 = vmatprep.subr.mxu0 0.0
    %787 = vmatpush1.msra.mxu0 0.0
    %788 = vmatprep.subr.mxu0 0.0
    %789 = vmatpush1.msra.mxu0 0.0
    %790 = vmatprep.subr.mxu0 0.0
    %791 = vmatpush1.msra.mxu0 0.0
    %792 = vmatprep.subr.mxu0 0.0
    %793 = vmatpush1.msra.mxu0 0.0
    %794 = vmatprep.subr.mxu0 0.0
    %795 = vmatpush1.msra.mxu0 0.0
    %796 = vmatprep.subr.mxu0 0.0
    %797 = vmatpush1.msra.mxu0 0.0
    %798 = vmatprep.subr.mxu0 0.0
    %799 = vmatpush1.msra.mxu0 0.0
    %800 = vmatprep.subr.mxu0 0.0
    %801 = vmatpush1.msra.mxu0 0.0
    %802 = vmatprep.subr.mxu0 0.0
    %803 = vmatpush1.msra.mxu0 0.0
    %804 = vmatprep.subr.mxu0 0.0
    %805 = vmatpush1.msra.mxu0 0.0
    %806 = vmatprep.subr.mxu0 0.0
    %807 = vmatpush1.msra.mxu0 0.0
    %808 = vmatprep.subr.mxu0 0.0
    %809 = vmatpush1.msra.mxu0 0.0
    %810 = vmatprep.subr.mxu0 0.0
    %811 = vmatpush1.msra.mxu0 0.0
    %812 = vmatprep.subr.mxu0 0.0
    %813 = vmatpush1.msra.mxu0 0.0
    %814 = vmatprep.subr.mxu0 0.0
    %815 = vmatpush1.msra.mxu0 0.0
    %816 = vmatprep.subr.mxu0 0.0
    %817 = vmatpush1.msra.mxu0 0.0
    %818 = vmatprep.subr.mxu0 0.0
    %819 = vmatpush1.msra.mxu0 0.0
    %820 = vmatprep.subr.mxu0 0.0
    %821 = vmatpush1.msra.mxu0 0.0
    %822 = vmatprep.subr.mxu0 0.0
    %823 = vmatpush1.msra.mxu0 0.0
    %824 = vmatprep.subr.mxu0 0.0
    %825 = vmatpush1.msra.mxu0 0.0
    %826 = vmatprep.subr.mxu0 0.0
    %827 = vmatpush1.msra.mxu0 0.0
    %828 = vmatprep.mubr.f32.mxu0 0.0
    %829 = vmatmul.mubr.f32.gmra.mrb[0].mxu0 %v684
    %v830 = vpop.f32.mrb[0].mxu0
    %v831 = vadd.f32 0.0, %v830
    %v832 = vpop.f32.mrb[0].mxu0
    %833 = vmatprep.mubr.f32.mxu0 0.0
    %834 = vmatmul.mubr.f32.gmra.mrb[0].mxu0 %v687
    %v835 = vpop.f32.mrb[0].mxu0
    %v836 = vadd.f32 0.0, %v835
    %v837 = vpop.f32.mrb[0].mxu0
    %838 = vdwg.mxu0
    %839 = vmatprep.subr.mxu0 0.0
    %840 = vmatpush1.msra.mxu0 %v403
    %841 = vmatprep.subr.mxu0 0.0
    %842 = vmatpush1.msra.mxu0 %v408
    %843 = vmatprep.subr.mxu0 0.0
    %844 = vmatpush1.msra.mxu0 0.0
    %845 = vmatprep.subr.mxu0 0.0
    %846 = vmatpush1.msra.mxu0 0.0
    %847 = vmatprep.subr.mxu0 0.0
    %848 = vmatpush1.msra.mxu0 0.0
    %849 = vmatprep.subr.mxu0 0.0
    %850 = vmatpush1.msra.mxu0 0.0
    %851 = vmatprep.subr.mxu0 0.0
    %852 = vmatpush1.msra.mxu0 0.0
    %853 = vmatprep.subr.mxu0 0.0
    %854 = vmatpush1.msra.mxu0 0.0
    %855 = vmatprep.subr.mxu0 0.0
    %856 = vmatpush1.msra.mxu0 0.0
    %857 = vmatprep.subr.mxu0 0.0
    %858 = vmatpush1.msra.mxu0 0.0
    %859 = vmatprep.subr.mxu0 0.0
    %860 = vmatpush1.msra.mxu0 0.0
    %861 = vmatprep.subr.mxu0 0.0
    %862 = vmatpush1.msra.mxu0 0.0
    %863 = vmatprep.subr.mxu0 0.0
    %864 = vmatpush1.msra.mxu0 0.0
    %865 = vmatprep.subr.mxu0 0.0
    %866 = vmatpush1.msra.mxu0 0.0
    %867 = vmatprep.subr.mxu0 0.0
    %868 = vmatpush1.msra.mxu0 0.0
    %869 = vmatprep.subr.mxu0 0.0
    %870 = vmatpush1.msra.mxu0 0.0
    %871 = vmatprep.subr.mxu0 0.0
    %872 = vmatpush1.msra.mxu0 0.0
    %873 = vmatprep.subr.mxu0 0.0
    %874 = vmatpush1.msra.mxu0 0.0
    %875 = vmatprep.subr.mxu0 0.0
    %876 = vmatpush1.msra.mxu0 0.0
    %877 = vmatprep.subr.mxu0 0.0
    %878 = vmatpush1.msra.mxu0 0.0
    %879 = vmatprep.subr.mxu0 0.0
    %880 = vmatpush1.msra.mxu0 0.0
    %881 = vmatprep.subr.mxu0 0.0
    %882 = vmatpush1.msra.mxu0 0.0
    %883 = vmatprep.subr.mxu0 0.0
    %884 = vmatpush1.msra.mxu0 0.0
    %885 = vmatprep.subr.mxu0 0.0
    %886 = vmatpush1.msra.mxu0 0.0
    %887 = vmatprep.subr.mxu0 0.0
    %888 = vmatpush1.msra.mxu0 0.0
    %889 = vmatprep.subr.mxu0 0.0
    %890 = vmatpush1.msra.mxu0 0.0
    %891 = vmatprep.subr.mxu0 0.0
    %892 = vmatpush1.msra.mxu0 0.0
    %893 = vmatprep.subr.mxu0 0.0
    %894 = vmatpush1.msra.mxu0 0.0
    %895 = vmatprep.subr.mxu0 0.0
    %896 = vmatpush1.msra.mxu0 0.0
    %897 = vmatprep.subr.mxu0 0.0
    %898 = vmatpush1.msra.mxu0 0.0
    %899 = vmatprep.subr.mxu0 0.0
    %900 = vmatpush1.msra.mxu0 0.0
    %901 = vmatprep.subr.mxu0 0.0
    %902 = vmatpush1.msra.mxu0 0.0
    %903 = vmatprep.mubr.f32.mxu0 0.0
    %904 = vmatmul.mubr.f32.gmra.mrb[0].mxu0 %v684
    %v905 = vpop.f32.mrb[0].mxu0
    %v906 = vadd.f32 0.0, %v905
    %v907 = vpop.f32.mrb[0].mxu0
    %908 = vmatprep.mubr.f32.mxu0 0.0
    %909 = vmatmul.mubr.f32.gmra.mrb[0].mxu0 %v687
    %v910 = vpop.f32.mrb[0].mxu0
    %v911 = vadd.f32 0.0, %v910
    %v912 = vpop.f32.mrb[0].mxu0
    %913 = vdwg.mxu0
    %914 = vmatprep.subr.mxu0 0.0
    %915 = vmatpush1.msra.mxu0 %v413
    %916 = vmatprep.subr.mxu0 0.0
    %917 = vmatpush1.msra.mxu0 %v418
    %918 = vmatprep.subr.mxu0 0.0
    %919 = vmatpush1.msra.mxu0 0.0
    %920 = vmatprep.subr.mxu0 0.0
    %921 = vmatpush1.msra.mxu0 0.0
    %922 = vmatprep.subr.mxu0 0.0
    %923 = vmatpush1.msra.mxu0 0.0
    %924 = vmatprep.subr.mxu0 0.0
    %925 = vmatpush1.msra.mxu0 0.0
    %926 = vmatprep.subr.mxu0 0.0
    %927 = vmatpush1.msra.mxu0 0.0
    %928 = vmatprep.subr.mxu0 0.0
    %929 = vmatpush1.msra.mxu0 0.0
    %930 = vmatprep.subr.mxu0 0.0
    %931 = vmatpush1.msra.mxu0 0.0
    %932 = vmatprep.subr.mxu0 0.0
    %933 = vmatpush1.msra.mxu0 0.0
    %934 = vmatprep.subr.mxu0 0.0
    %935 = vmatpush1.msra.mxu0 0.0
    %936 = vmatprep.subr.mxu0 0.0
    %937 = vmatpush1.msra.mxu0 0.0
    %938 = vmatprep.subr.mxu0 0.0
    %939 = vmatpush1.msra.mxu0 0.0
    %940 = vmatprep.subr.mxu0 0.0
    %941 = vmatpush1.msra.mxu0 0.0
    %942 = vmatprep.subr.mxu0 0.0
    %943 = vmatpush1.msra.mxu0 0.0
    %944 = vmatprep.subr.mxu0 0.0
    %945 = vmatpush1.msra.mxu0 0.0
    %946 = vmatprep.subr.mxu0 0.0
    %947 = vmatpush1.msra.mxu0 0.0
    %948 = vmatprep.subr.mxu0 0.0
    %949 = vmatpush1.msra.mxu0 0.0
    %950 = vmatprep.subr.mxu0 0.0
    %951 = vmatpush1.msra.mxu0 0.0
    %952 = vmatprep.subr.mxu0 0.0
    %953 = vmatpush1.msra.mxu0 0.0
    %954 = vmatprep.subr.mxu0 0.0
    %955 = vmatpush1.msra.mxu0 0.0
    %956 = vmatprep.subr.mxu0 0.0
    %957 = vmatpush1.msra.mxu0 0.0
    %958 = vmatprep.subr.mxu0 0.0
    %959 = vmatpush1.msra.mxu0 0.0
    %960 = vmatprep.subr.mxu0 0.0
    %961 = vmatpush1.msra.mxu0 0.0
    %962 = vmatprep.subr.mxu0 0.0
    %963 = vmatpush1.msra.mxu0 0.0
    %964 = vmatprep.subr.mxu0 0.0
    %965 = vmatpush1.msra.mxu0 0.0
    %966 = vmatprep.subr.mxu0 0.0
    %967 = vmatpush1.msra.mxu0 0.0
    %968 = vmatprep.subr.mxu0 0.0
    %969 = vmatpush1.msra.mxu0 0.0
    %970 = vmatprep.subr.mxu0 0.0
    %971 = vmatpush1.msra.mxu0 0.0
    %972 = vmatprep.subr.mxu0 0.0
    %973 = vmatpush1.msra.mxu0 0.0
    %974 = vmatprep.subr.mxu0 0.0
    %975 = vmatpush1.msra.mxu0 0.0
    %976 = vmatprep.subr.mxu0 0.0
    %977 = vmatpush1.msra.mxu0 0.0
    %978 = vmatprep.mubr.f32.mxu0 0.0
    %979 = vmatmul.mubr.f32.gmra.mrb[0].mxu0 %v684
    %v980 = vpop.f32.mrb[0].mxu0
    %v981 = vadd.f32 0.0, %v980
    %v982 = vpop.f32.mrb[0].mxu0
    %983 = vmatprep.mubr.f32.mxu0 0.0
    %984 = vmatmul.mubr.f32.gmra.mrb[0].mxu0 %v687
    %v985 = vpop.f32.mrb[0].mxu0
    %v986 = vadd.f32 0.0, %v985
    %v987 = vpop.f32.mrb[0].mxu0
    %988 = vdwg.mxu0
    %989 = vmatprep.subr.mxu0 0.0
    %990 = vmatpush1.msra.mxu0 %v423
    %991 = vmatprep.subr.mxu0 0.0
    %992 = vmatpush1.msra.mxu0 %v428
    %993 = vmatprep.subr.mxu0 0.0
    %994 = vmatpush1.msra.mxu0 0.0
    %995 = vmatprep.subr.mxu0 0.0
    %996 = vmatpush1.msra.mxu0 0.0
    %997 = vmatprep.subr.mxu0 0.0
    %998 = vmatpush1.msra.mxu0 0.0
    %999 = vmatprep.subr.mxu0 0.0
    %1000 = vmatpush1.msra.mxu0 0.0
    %1001 = vmatprep.subr.mxu0 0.0
    %1002 = vmatpush1.msra.mxu0 0.0
    %1003 = vmatprep.subr.mxu0 0.0
    %1004 = vmatpush1.msra.mxu0 0.0
    %1005 = vmatprep.subr.mxu0 0.0
    %1006 = vmatpush1.msra.mxu0 0.0
    %1007 = vmatprep.subr.mxu0 0.0
    %1008 = vmatpush1.msra.mxu0 0.0
    %1009 = vmatprep.subr.mxu0 0.0
    %1010 = vmatpush1.msra.mxu0 0.0
    %1011 = vmatprep.subr.mxu0 0.0
    %1012 = vmatpush1.msra.mxu0 0.0
    %1013 = vmatprep.subr.mxu0 0.0
    %1014 = vmatpush1.msra.mxu0 0.0
    %1015 = vmatprep.subr.mxu0 0.0
    %1016 = vmatpush1.msra.mxu0 0.0
    %1017 = vmatprep.subr.mxu0 0.0
    %1018 = vmatpush1.msra.mxu0 0.0
    %1019 = vmatprep.subr.mxu0 0.0
    %1020 = vmatpush1.msra.mxu0 0.0
    %1021 = vmatprep.subr.mxu0 0.0
    %1022 = vmatpush1.msra.mxu0 0.0
    %1023 = vmatprep.subr.mxu0 0.0
    %1024 = vmatpush1.msra.mxu0 0.0
    %1025 = vmatprep.subr.mxu0 0.0
    %1026 = vmatpush1.msra.mxu0 0.0
    %1027 = vmatprep.subr.mxu0 0.0
    %1028 = vmatpush1.msra.mxu0 0.0
    %1029 = vmatprep.subr.mxu0 0.0
    %1030 = vmatpush1.msra.mxu0 0.0
    %1031 = vmatprep.subr.mxu0 0.0
    %1032 = vmatpush1.msra.mxu0 0.0
    %1033 = vmatprep.subr.mxu0 0.0
    %1034 = vmatpush1.msra.mxu0 0.0
    %1035 = vmatprep.subr.mxu0 0.0
    %1036 = vmatpush1.msra.mxu0 0.0
    %1037 = vmatprep.subr.mxu0 0.0
    %1038 = vmatpush1.msra.mxu0 0.0
    %1039 = vmatprep.subr.mxu0 0.0
    %1040 = vmatpush1.msra.mxu0 0.0
    %1041 = vmatprep.subr.mxu0 0.0
    %1042 = vmatpush1.msra.mxu0 0.0
    %1043 = vmatprep.subr.mxu0 0.0
    %1044 = vmatpush1.msra.mxu0 0.0
    %1045 = vmatprep.subr.mxu0 0.0
    %1046 = vmatpush1.msra.mxu0 0.0
    %1047 = vmatprep.subr.mxu0 0.0
    %1048 = vmatpush1.msra.mxu0 0.0
    %1049 = vmatprep.subr.mxu0 0.0
    %1050 = vmatpush1.msra.mxu0 0.0
    %1051 = vmatprep.subr.mxu0 0.0
    %1052 = vmatpush1.msra.mxu0 0.0
    %1053 = vmatprep.mubr.f32.mxu0 0.0
    %1054 = vmatmul.mubr.f32.gmra.mrb[0].mxu0 %v684
    %v1055 = vpop.f32.mrb[0].mxu0
    %v1056 = vadd.f32 0.0, %v1055
    %v1057 = vpop.f32.mrb[0].mxu0
    %1058 = vmatprep.mubr.f32.mxu0 0.0
    %1059 = vmatmul.mubr.f32.gmra.mrb[0].mxu0 %v687
    %v1060 = vpop.f32.mrb[0].mxu0
    %v1061 = vadd.f32 0.0, %v1060
    %v1062 = vpop.f32.mrb[0].mxu0
    %1063 = vdwg.mxu0
    %1064 = vmatprep.subr.mxu0 0.0
    %1065 = vmatpush1.msra.mxu0 %v433
    %1066 = vmatprep.subr.mxu0 0.0
    %1067 = vmatpush1.msra.mxu0 %v438
    %1068 = vmatprep.subr.mxu0 0.0
    %1069 = vmatpush1.msra.mxu0 0.0
    %1070 = vmatprep.subr.mxu0 0.0
    %1071 = vmatpush1.msra.mxu0 0.0
    %1072 = vmatprep.subr.mxu0 0.0
    %1073 = vmatpush1.msra.mxu0 0.0
    %1074 = vmatprep.subr.mxu0 0.0
    %1075 = vmatpush1.msra.mxu0 0.0
    %1076 = vmatprep.subr.mxu0 0.0
    %1077 = vmatpush1.msra.mxu0 0.0
    %1078 = vmatprep.subr.mxu0 0.0
    %1079 = vmatpush1.msra.mxu0 0.0
    %1080 = vmatprep.subr.mxu0 0.0
    %1081 = vmatpush1.msra.mxu0 0.0
    %1082 = vmatprep.subr.mxu0 0.0
    %1083 = vmatpush1.msra.mxu0 0.0
    %1084 = vmatprep.subr.mxu0 0.0
    %1085 = vmatpush1.msra.mxu0 0.0
    %1086 = vmatprep.subr.mxu0 0.0
    %1087 = vmatpush1.msra.mxu0 0.0
    %1088 = vmatprep.subr.mxu0 0.0
    %1089 = vmatpush1.msra.mxu0 0.0
    %1090 = vmatprep.subr.mxu0 0.0
    %1091 = vmatpush1.msra.mxu0 0.0
    %1092 = vmatprep.subr.mxu0 0.0
    %1093 = vmatpush1.msra.mxu0 0.0
    %1094 = vmatprep.subr.mxu0 0.0
    %1095 = vmatpush1.msra.mxu0 0.0
    %1096 = vmatprep.subr.mxu0 0.0
    %1097 = vmatpush1.msra.mxu0 0.0
    %1098 = vmatprep.subr.mxu0 0.0
    %1099 = vmatpush1.msra.mxu0 0.0
    %1100 = vmatprep.subr.mxu0 0.0
    %1101 = vmatpush1.msra.mxu0 0.0
    %1102 = vmatprep.subr.mxu0 0.0
    %1103 = vmatpush1.msra.mxu0 0.0
    %1104 = vmatprep.subr.mxu0 0.0
    %1105 = vmatpush1.msra.mxu0 0.0
    %1106 = vmatprep.subr.mxu0 0.0
    %1107 = vmatpush1.msra.mxu0 0.0
    %1108 = vmatprep.subr.mxu0 0.0
    %1109 = vmatpush1.msra.mxu0 0.0
    %1110 = vmatprep.subr.mxu0 0.0
    %1111 = vmatpush1.msra.mxu0 0.0
    %1112 = vmatprep.subr.mxu0 0.0
    %1113 = vmatpush1.msra.mxu0 0.0
    %1114 = vmatprep.subr.mxu0 0.0
    %1115 = vmatpush1.msra.mxu0 0.0
    %1116 = vmatprep.subr.mxu0 0.0
    %1117 = vmatpush1.msra.mxu0 0.0
    %1118 = vmatprep.subr.mxu0 0.0
    %1119 = vmatpush1.msra.mxu0 0.0
    %1120 = vmatprep.subr.mxu0 0.0
    %1121 = vmatpush1.msra.mxu0 0.0
    %1122 = vmatprep.subr.mxu0 0.0
    %1123 = vmatpush1.msra.mxu0 0.0
    %1124 = vmatprep.subr.mxu0 0.0
    %1125 = vmatpush1.msra.mxu0 0.0
    %1126 = vmatprep.subr.mxu0 0.0
    %1127 = vmatpush1.msra.mxu0 0.0
    %1128 = vmatprep.mubr.f32.mxu0 0.0
    %1129 = vmatmul.mubr.f32.gmra.mrb[0].mxu0 %v684
    %v1130 = vpop.f32.mrb[0].mxu0
    %v1131 = vadd.f32 0.0, %v1130
    %v1132 = vpop.f32.mrb[0].mxu0
    %1133 = vmatprep.mubr.f32.mxu0 0.0
    %1134 = vmatmul.mubr.f32.gmra.mrb[0].mxu0 %v687
    %v1135 = vpop.f32.mrb[0].mxu0
    %v1136 = vadd.f32 0.0, %v1135
    %v1137 = vpop.f32.mrb[0].mxu0
    %1138 = vdwg.mxu0
    %1139 = vmatprep.subr.mxu0 0.0
    %1140 = vmatpush1.msra.mxu0 %v443
    %1141 = vmatprep.subr.mxu0 0.0
    %1142 = vmatpush1.msra.mxu0 %v448
    %1143 = vmatprep.subr.mxu0 0.0
    %1144 = vmatpush1.msra.mxu0 0.0
    %1145 = vmatprep.subr.mxu0 0.0
    %1146 = vmatpush1.msra.mxu0 0.0
    %1147 = vmatprep.subr.mxu0 0.0
    %1148 = vmatpush1.msra.mxu0 0.0
    %1149 = vmatprep.subr.mxu0 0.0
    %1150 = vmatpush1.msra.mxu0 0.0
    %1151 = vmatprep.subr.mxu0 0.0
    %1152 = vmatpush1.msra.mxu0 0.0
    %1153 = vmatprep.subr.mxu0 0.0
    %1154 = vmatpush1.msra.mxu0 0.0
    %1155 = vmatprep.subr.mxu0 0.0
    %1156 = vmatpush1.msra.mxu0 0.0
    %1157 = vmatprep.subr.mxu0 0.0
    %1158 = vmatpush1.msra.mxu0 0.0
    %1159 = vmatprep.subr.mxu0 0.0
    %1160 = vmatpush1.msra.mxu0 0.0
    %1161 = vmatprep.subr.mxu0 0.0
    %1162 = vmatpush1.msra.mxu0 0.0
    %1163 = vmatprep.subr.mxu0 0.0
    %1164 = vmatpush1.msra.mxu0 0.0
    %1165 = vmatprep.subr.mxu0 0.0
    %1166 = vmatpush1.msra.mxu0 0.0
    %1167 = vmatprep.subr.mxu0 0.0
    %1168 = vmatpush1.msra.mxu0 0.0
    %1169 = vmatprep.subr.mxu0 0.0
    %1170 = vmatpush1.msra.mxu0 0.0
    %1171 = vmatprep.subr.mxu0 0.0
    %1172 = vmatpush1.msra.mxu0 0.0
    %1173 = vmatprep.subr.mxu0 0.0
    %1174 = vmatpush1.msra.mxu0 0.0
    %1175 = vmatprep.subr.mxu0 0.0
    %1176 = vmatpush1.msra.mxu0 0.0
    %1177 = vmatprep.subr.mxu0 0.0
    %1178 = vmatpush1.msra.mxu0 0.0
    %1179 = vmatprep.subr.mxu0 0.0
    %1180 = vmatpush1.msra.mxu0 0.0
    %1181 = vmatprep.subr.mxu0 0.0
    %1182 = vmatpush1.msra.mxu0 0.0
    %1183 = vmatprep.subr.mxu0 0.0
    %1184 = vmatpush1.msra.mxu0 0.0
    %1185 = vmatprep.subr.mxu0 0.0
    %1186 = vmatpush1.msra.mxu0 0.0
    %1187 = vmatprep.subr.mxu0 0.0
    %1188 = vmatpush1.msra.mxu0 0.0
    %1189 = vmatprep.subr.mxu0 0.0
    %1190 = vmatpush1.msra.mxu0 0.0
    %1191 = vmatprep.subr.mxu0 0.0
    %1192 = vmatpush1.msra.mxu0 0.0
    %1193 = vmatprep.subr.mxu0 0.0
    %1194 = vmatpush1.msra.mxu0 0.0
    %1195 = vmatprep.subr.mxu0 0.0
    %1196 = vmatpush1.msra.mxu0 0.0
    %1197 = vmatprep.subr.mxu0 0.0
    %1198 = vmatpush1.msra.mxu0 0.0
    %1199 = vmatprep.subr.mxu0 0.0
    %1200 = vmatpush1.msra.mxu0 0.0
    %1201 = vmatprep.subr.mxu0 0.0
    %1202 = vmatpush1.msra.mxu0 0.0
    %1203 = vmatprep.mubr.f32.mxu0 0.0
    %1204 = vmatmul.mubr.f32.gmra.mrb[0].mxu0 %v684
    %v1205 = vpop.f32.mrb[0].mxu0
    %v1206 = vadd.f32 0.0, %v1205
    %v1207 = vpop.f32.mrb[0].mxu0
    %1208 = vmatprep.mubr.f32.mxu0 0.0
    %1209 = vmatmul.mubr.f32.gmra.mrb[0].mxu0 %v687
    %v1210 = vpop.f32.mrb[0].mxu0
    %v1211 = vadd.f32 0.0, %v1210
    %v1212 = vpop.f32.mrb[0].mxu0
    %1213 = vdwg.mxu0
    %1214 = vmatprep.subr.mxu0 0.0
    %1215 = vmatpush1.msra.mxu0 %v453
    %1216 = vmatprep.subr.mxu0 0.0
    %1217 = vmatpush1.msra.mxu0 %v458
    %1218 = vmatprep.subr.mxu0 0.0
    %1219 = vmatpush1.msra.mxu0 0.0
    %1220 = vmatprep.subr.mxu0 0.0
    %1221 = vmatpush1.msra.mxu0 0.0
    %1222 = vmatprep.subr.mxu0 0.0
    %1223 = vmatpush1.msra.mxu0 0.0
    %1224 = vmatprep.subr.mxu0 0.0
    %1225 = vmatpush1.msra.mxu0 0.0
    %1226 = vmatprep.subr.mxu0 0.0
    %1227 = vmatpush1.msra.mxu0 0.0
    %1228 = vmatprep.subr.mxu0 0.0
    %1229 = vmatpush1.msra.mxu0 0.0
    %1230 = vmatprep.subr.mxu0 0.0
    %1231 = vmatpush1.msra.mxu0 0.0
    %1232 = vmatprep.subr.mxu0 0.0
    %1233 = vmatpush1.msra.mxu0 0.0
    %1234 = vmatprep.subr.mxu0 0.0
    %1235 = vmatpush1.msra.mxu0 0.0
    %1236 = vmatprep.subr.mxu0 0.0
    %1237 = vmatpush1.msra.mxu0 0.0
    %1238 = vmatprep.subr.mxu0 0.0
    %1239 = vmatpush1.msra.mxu0 0.0
    %1240 = vmatprep.subr.mxu0 0.0
    %1241 = vmatpush1.msra.mxu0 0.0
    %1242 = vmatprep.subr.mxu0 0.0
    %1243 = vmatpush1.msra.mxu0 0.0
    %1244 = vmatprep.subr.mxu0 0.0
    %1245 = vmatpush1.msra.mxu0 0.0
    %1246 = vmatprep.subr.mxu0 0.0
    %1247 = vmatpush1.msra.mxu0 0.0
    %1248 = vmatprep.subr.mxu0 0.0
    %1249 = vmatpush1.msra.mxu0 0.0
    %1250 = vmatprep.subr.mxu0 0.0
    %1251 = vmatpush1.msra.mxu0 0.0
    %1252 = vmatprep.subr.mxu0 0.0
    %1253 = vmatpush1.msra.mxu0 0.0
    %1254 = vmatprep.subr.mxu0 0.0
    %1255 = vmatpush1.msra.mxu0 0.0
    %1256 = vmatprep.subr.mxu0 0.0
    %1257 = vmatpush1.msra.mxu0 0.0
    %1258 = vmatprep.subr.mxu0 0.0
    %1259 = vmatpush1.msra.mxu0 0.0
    %1260 = vmatprep.subr.mxu0 0.0
    %1261 = vmatpush1.msra.mxu0 0.0
    %1262 = vmatprep.subr.mxu0 0.0
    %1263 = vmatpush1.msra.mxu0 0.0
    %1264 = vmatprep.subr.mxu0 0.0
    %1265 = vmatpush1.msra.mxu0 0.0
    %1266 = vmatprep.subr.mxu0 0.0
    %1267 = vmatpush1.msra.mxu0 0.0
    %1268 = vmatprep.subr.mxu0 0.0
    %1269 = vmatpush1.msra.mxu0 0.0
    %1270 = vmatprep.subr.mxu0 0.0
    %1271 = vmatpush1.msra.mxu0 0.0
    %1272 = vmatprep.subr.mxu0 0.0
    %1273 = vmatpush1.msra.mxu0 0.0
    %1274 = vmatprep.subr.mxu0 0.0
    %1275 = vmatpush1.msra.mxu0 0.0
    %1276 = vmatprep.subr.mxu0 0.0
    %1277 = vmatpush1.msra.mxu0 0.0
    %1278 = vmatprep.mubr.f32.mxu0 0.0
    %1279 = vmatmul.mubr.f32.gmra.mrb[0].mxu0 %v684
    %v1280 = vpop.f32.mrb[0].mxu0
    %v1281 = vadd.f32 0.0, %v1280
    %v1282 = vpop.f32.mrb[0].mxu0
    %1283 = vmatprep.mubr.f32.mxu0 0.0
    %1284 = vmatmul.mubr.f32.gmra.mrb[0].mxu0 %v687
    %v1285 = vpop.f32.mrb[0].mxu0
    %v1286 = vadd.f32 0.0, %v1285
    %v1287 = vpop.f32.mrb[0].mxu0
    %1288 = vdwg.mxu0
    %1289 = vmatprep.subr.mxu0 0.0
    %1290 = vmatpush1.msra.mxu0 %v463
    %1291 = vmatprep.subr.mxu0 0.0
    %1292 = vmatpush1.msra.mxu0 %v468
    %1293 = vmatprep.subr.mxu0 0.0
    %1294 = vmatpush1.msra.mxu0 0.0
    %1295 = vmatprep.subr.mxu0 0.0
    %1296 = vmatpush1.msra.mxu0 0.0
    %1297 = vmatprep.subr.mxu0 0.0
    %1298 = vmatpush1.msra.mxu0 0.0
    %1299 = vmatprep.subr.mxu0 0.0
    %1300 = vmatpush1.msra.mxu0 0.0
    %1301 = vmatprep.subr.mxu0 0.0
    %1302 = vmatpush1.msra.mxu0 0.0
    %1303 = vmatprep.subr.mxu0 0.0
    %1304 = vmatpush1.msra.mxu0 0.0
    %1305 = vmatprep.subr.mxu0 0.0
    %1306 = vmatpush1.msra.mxu0 0.0
    %1307 = vmatprep.subr.mxu0 0.0
    %1308 = vmatpush1.msra.mxu0 0.0
    %1309 = vmatprep.subr.mxu0 0.0
    %1310 = vmatpush1.msra.mxu0 0.0
    %1311 = vmatprep.subr.mxu0 0.0
    %1312 = vmatpush1.msra.mxu0 0.0
    %1313 = vmatprep.subr.mxu0 0.0
    %1314 = vmatpush1.msra.mxu0 0.0
    %1315 = vmatprep.subr.mxu0 0.0
    %1316 = vmatpush1.msra.mxu0 0.0
    %1317 = vmatprep.subr.mxu0 0.0
    %1318 = vmatpush1.msra.mxu0 0.0
    %1319 = vmatprep.subr.mxu0 0.0
    %1320 = vmatpush1.msra.mxu0 0.0
    %1321 = vmatprep.subr.mxu0 0.0
    %1322 = vmatpush1.msra.mxu0 0.0
    %1323 = vmatprep.subr.mxu0 0.0
    %1324 = vmatpush1.msra.mxu0 0.0
    %1325 = vmatprep.subr.mxu0 0.0
    %1326 = vmatpush1.msra.mxu0 0.0
    %1327 = vmatprep.subr.mxu0 0.0
    %1328 = vmatpush1.msra.mxu0 0.0
    %1329 = vmatprep.subr.mxu0 0.0
    %1330 = vmatpush1.msra.mxu0 0.0
    %1331 = vmatprep.subr.mxu0 0.0
    %1332 = vmatpush1.msra.mxu0 0.0
    %1333 = vmatprep.subr.mxu0 0.0
    %1334 = vmatpush1.msra.mxu0 0.0
    %1335 = vmatprep.subr.mxu0 0.0
    %1336 = vmatpush1.msra.mxu0 0.0
    %1337 = vmatprep.subr.mxu0 0.0
    %1338 = vmatpush1.msra.mxu0 0.0
    %1339 = vmatprep.subr.mxu0 0.0
    %1340 = vmatpush1.msra.mxu0 0.0
    %1341 = vmatprep.subr.mxu0 0.0
    %1342 = vmatpush1.msra.mxu0 0.0
    %1343 = vmatprep.subr.mxu0 0.0
    %1344 = vmatpush1.msra.mxu0 0.0
    %1345 = vmatprep.subr.mxu0 0.0
    %1346 = vmatpush1.msra.mxu0 0.0
    %1347 = vmatprep.subr.mxu0 0.0
    %1348 = vmatpush1.msra.mxu0 0.0
    %1349 = vmatprep.subr.mxu0 0.0
    %1350 = vmatpush1.msra.mxu0 0.0
    %1351 = vmatprep.subr.mxu0 0.0
    %1352 = vmatpush1.msra.mxu0 0.0
    %1353 = vmatprep.mubr.f32.mxu0 0.0
    %1354 = vmatmul.mubr.f32.gmra.mrb[0].mxu0 %v684
    %v1355 = vpop.f32.mrb[0].mxu0
    %v1356 = vadd.f32 0.0, %v1355
    %v1357 = vpop.f32.mrb[0].mxu0
    %1358 = vmatprep.mubr.f32.mxu0 0.0
    %1359 = vmatmul.mubr.f32.gmra.mrb[0].mxu0 %v687
    %v1360 = vpop.f32.mrb[0].mxu0
    %v1361 = vadd.f32 0.0, %v1360
    %v1362 = vpop.f32.mrb[0].mxu0
    %1363 = vdwg.mxu0
    %1364 = vmatprep.subr.mxu0 0.0
    %1365 = vmatpush1.msra.mxu0 %v473
    %1366 = vmatprep.subr.mxu0 0.0
    %1367 = vmatpush1.msra.mxu0 %v478
    %1368 = vmatprep.subr.mxu0 0.0
    %1369 = vmatpush1.msra.mxu0 0.0
    %1370 = vmatprep.subr.mxu0 0.0
    %1371 = vmatpush1.msra.mxu0 0.0
    %1372 = vmatprep.subr.mxu0 0.0
    %1373 = vmatpush1.msra.mxu0 0.0
    %1374 = vmatprep.subr.mxu0 0.0
    %1375 = vmatpush1.msra.mxu0 0.0
    %1376 = vmatprep.subr.mxu0 0.0
    %1377 = vmatpush1.msra.mxu0 0.0
    %1378 = vmatprep.subr.mxu0 0.0
    %1379 = vmatpush1.msra.mxu0 0.0
    %1380 = vmatprep.subr.mxu0 0.0
    %1381 = vmatpush1.msra.mxu0 0.0
    %1382 = vmatprep.subr.mxu0 0.0
    %1383 = vmatpush1.msra.mxu0 0.0
    %1384 = vmatprep.subr.mxu0 0.0
    %1385 = vmatpush1.msra.mxu0 0.0
    %1386 = vmatprep.subr.mxu0 0.0
    %1387 = vmatpush1.msra.mxu0 0.0
    %1388 = vmatprep.subr.mxu0 0.0
    %1389 = vmatpush1.msra.mxu0 0.0
    %1390 = vmatprep.subr.mxu0 0.0
    %1391 = vmatpush1.msra.mxu0 0.0
    %1392 = vmatprep.subr.mxu0 0.0
    %1393 = vmatpush1.msra.mxu0 0.0
    %1394 = vmatprep.subr.mxu0 0.0
    %1395 = vmatpush1.msra.mxu0 0.0
    %1396 = vmatprep.subr.mxu0 0.0
    %1397 = vmatpush1.msra.mxu0 0.0
    %1398 = vmatprep.subr.mxu0 0.0
    %1399 = vmatpush1.msra.mxu0 0.0
    %1400 = vmatprep.subr.mxu0 0.0
    %1401 = vmatpush1.msra.mxu0 0.0
    %1402 = vmatprep.subr.mxu0 0.0
    %1403 = vmatpush1.msra.mxu0 0.0
    %1404 = vmatprep.subr.mxu0 0.0
    %1405 = vmatpush1.msra.mxu0 0.0
    %1406 = vmatprep.subr.mxu0 0.0
    %1407 = vmatpush1.msra.mxu0 0.0
    %1408 = vmatprep.subr.mxu0 0.0
    %1409 = vmatpush1.msra.mxu0 0.0
    %1410 = vmatprep.subr.mxu0 0.0
    %1411 = vmatpush1.msra.mxu0 0.0
    %1412 = vmatprep.subr.mxu0 0.0
    %1413 = vmatpush1.msra.mxu0 0.0
    %1414 = vmatprep.subr.mxu0 0.0
    %1415 = vmatpush1.msra.mxu0 0.0
    %1416 = vmatprep.subr.mxu0 0.0
    %1417 = vmatpush1.msra.mxu0 0.0
    %1418 = vmatprep.subr.mxu0 0.0
    %1419 = vmatpush1.msra.mxu0 0.0
    %1420 = vmatprep.subr.mxu0 0.0
    %1421 = vmatpush1.msra.mxu0 0.0
    %1422 = vmatprep.subr.mxu0 0.0
    %1423 = vmatpush1.msra.mxu0 0.0
    %1424 = vmatprep.subr.mxu0 0.0
    %1425 = vmatpush1.msra.mxu0 0.0
    %1426 = vmatprep.subr.mxu0 0.0
    %1427 = vmatpush1.msra.mxu0 0.0
    %1428 = vmatprep.mubr.f32.mxu0 0.0
    %1429 = vmatmul.mubr.f32.gmra.mrb[0].mxu0 %v684
    %v1430 = vpop.f32.mrb[0].mxu0
    %v1431 = vadd.f32 0.0, %v1430
    %v1432 = vpop.f32.mrb[0].mxu0
    %1433 = vmatprep.mubr.f32.mxu0 0.0
    %1434 = vmatmul.mubr.f32.gmra.mrb[0].mxu0 %v687
    %v1435 = vpop.f32.mrb[0].mxu0
    %v1436 = vadd.f32 0.0, %v1435
    %v1437 = vpop.f32.mrb[0].mxu0
    %1438 = vdwg.mxu0
    %1439 = vmatprep.subr.mxu0 0.0
    %1440 = vmatpush1.msra.mxu0 %v483
    %1441 = vmatprep.subr.mxu0 0.0
    %1442 = vmatpush1.msra.mxu0 %v488
    %1443 = vmatprep.subr.mxu0 0.0
    %1444 = vmatpush1.msra.mxu0 0.0
    %1445 = vmatprep.subr.mxu0 0.0
    %1446 = vmatpush1.msra.mxu0 0.0
    %1447 = vmatprep.subr.mxu0 0.0
    %1448 = vmatpush1.msra.mxu0 0.0
    %1449 = vmatprep.subr.mxu0 0.0
    %1450 = vmatpush1.msra.mxu0 0.0
    %1451 = vmatprep.subr.mxu0 0.0
    %1452 = vmatpush1.msra.mxu0 0.0
    %1453 = vmatprep.subr.mxu0 0.0
    %1454 = vmatpush1.msra.mxu0 0.0
    %1455 = vmatprep.subr.mxu0 0.0
    %1456 = vmatpush1.msra.mxu0 0.0
    %1457 = vmatprep.subr.mxu0 0.0
    %1458 = vmatpush1.msra.mxu0 0.0
    %1459 = vmatprep.subr.mxu0 0.0
    %1460 = vmatpush1.msra.mxu0 0.0
    %1461 = vmatprep.subr.mxu0 0.0
    %1462 = vmatpush1.msra.mxu0 0.0
    %1463 = vmatprep.subr.mxu0 0.0
    %1464 = vmatpush1.msra.mxu0 0.0
    %1465 = vmatprep.subr.mxu0 0.0
    %1466 = vmatpush1.msra.mxu0 0.0
    %1467 = vmatprep.subr.mxu0 0.0
    %1468 = vmatpush1.msra.mxu0 0.0
    %1469 = vmatprep.subr.mxu0 0.0
    %1470 = vmatpush1.msra.mxu0 0.0
    %1471 = vmatprep.subr.mxu0 0.0
    %1472 = vmatpush1.msra.mxu0 0.0
    %1473 = vmatprep.subr.mxu0 0.0
    %1474 = vmatpush1.msra.mxu0 0.0
    %1475 = vmatprep.subr.mxu0 0.0
    %1476 = vmatpush1.msra.mxu0 0.0
    %1477 = vmatprep.subr.mxu0 0.0
    %1478 = vmatpush1.msra.mxu0 0.0
    %1479 = vmatprep.subr.mxu0 0.0
    %1480 = vmatpush1.msra.mxu0 0.0
    %1481 = vmatprep.subr.mxu0 0.0
    %1482 = vmatpush1.msra.mxu0 0.0
    %1483 = vmatprep.subr.mxu0 0.0
    %1484 = vmatpush1.msra.mxu0 0.0
    %1485 = vmatprep.subr.mxu0 0.0
    %1486 = vmatpush1.msra.mxu0 0.0
    %1487 = vmatprep.subr.mxu0 0.0
    %1488 = vmatpush1.msra.mxu0 0.0
    %1489 = vmatprep.subr.mxu0 0.0
    %1490 = vmatpush1.msra.mxu0 0.0
    %1491 = vmatprep.subr.mxu0 0.0
    %1492 = vmatpush1.msra.mxu0 0.0
    %1493 = vmatprep.subr.mxu0 0.0
    %1494 = vmatpush1.msra.mxu0 0.0
    %1495 = vmatprep.subr.mxu0 0.0
    %1496 = vmatpush1.msra.mxu0 0.0
    %1497 = vmatprep.subr.mxu0 0.0
    %1498 = vmatpush1.msra.mxu0 0.0
    %1499 = vmatprep.subr.mxu0 0.0
    %1500 = vmatpush1.msra.mxu0 0.0
    %1501 = vmatprep.subr.mxu0 0.0
    %1502 = vmatpush1.msra.mxu0 0.0
    %1503 = vmatprep.mubr.f32.mxu0 0.0
    %1504 = vmatmul.mubr.f32.gmra.mrb[0].mxu0 %v684
    %v1505 = vpop.f32.mrb[0].mxu0
    %v1506 = vadd.f32 0.0, %v1505
    %v1507 = vpop.f32.mrb[0].mxu0
    %1508 = vmatprep.mubr.f32.mxu0 0.0
    %1509 = vmatmul.mubr.f32.gmra.mrb[0].mxu0 %v687
    %v1510 = vpop.f32.mrb[0].mxu0
    %v1511 = vadd.f32 0.0, %v1510
    %v1512 = vpop.f32.mrb[0].mxu0
    %1513 = vdwg.mxu0
    %1514 = vmatprep.subr.mxu0 0.0
    %1515 = vmatpush1.msra.mxu0 %v493
    %1516 = vmatprep.subr.mxu0 0.0
    %1517 = vmatpush1.msra.mxu0 %v498
    %1518 = vmatprep.subr.mxu0 0.0
    %1519 = vmatpush1.msra.mxu0 0.0
    %1520 = vmatprep.subr.mxu0 0.0
    %1521 = vmatpush1.msra.mxu0 0.0
    %1522 = vmatprep.subr.mxu0 0.0
    %1523 = vmatpush1.msra.mxu0 0.0
    %1524 = vmatprep.subr.mxu0 0.0
    %1525 = vmatpush1.msra.mxu0 0.0
    %1526 = vmatprep.subr.mxu0 0.0
    %1527 = vmatpush1.msra.mxu0 0.0
    %1528 = vmatprep.subr.mxu0 0.0
    %1529 = vmatpush1.msra.mxu0 0.0
    %1530 = vmatprep.subr.mxu0 0.0
    %1531 = vmatpush1.msra.mxu0 0.0
    %1532 = vmatprep.subr.mxu0 0.0
    %1533 = vmatpush1.msra.mxu0 0.0
    %1534 = vmatprep.subr.mxu0 0.0
    %1535 = vmatpush1.msra.mxu0 0.0
    %1536 = vmatprep.subr.mxu0 0.0
    %1537 = vmatpush1.msra.mxu0 0.0
    %1538 = vmatprep.subr.mxu0 0.0
    %1539 = vmatpush1.msra.mxu0 0.0
    %1540 = vmatprep.subr.mxu0 0.0
    %1541 = vmatpush1.msra.mxu0 0.0
    %1542 = vmatprep.subr.mxu0 0.0
    %1543 = vmatpush1.msra.mxu0 0.0
    %1544 = vmatprep.subr.mxu0 0.0
    %1545 = vmatpush1.msra.mxu0 0.0
    %1546 = vmatprep.subr.mxu0 0.0
    %1547 = vmatpush1.msra.mxu0 0.0
    %1548 = vmatprep.subr.mxu0 0.0
    %1549 = vmatpush1.msra.mxu0 0.0
    %1550 = vmatprep.subr.mxu0 0.0
    %1551 = vmatpush1.msra.mxu0 0.0
    %1552 = vmatprep.subr.mxu0 0.0
    %1553 = vmatpush1.msra.mxu0 0.0
    %1554 = vmatprep.subr.mxu0 0.0
    %1555 = vmatpush1.msra.mxu0 0.0
    %1556 = vmatprep.subr.mxu0 0.0
    %1557 = vmatpush1.msra.mxu0 0.0
    %1558 = vmatprep.subr.mxu0 0.0
    %1559 = vmatpush1.msra.mxu0 0.0
    %1560 = vmatprep.subr.mxu0 0.0
    %1561 = vmatpush1.msra.mxu0 0.0
    %1562 = vmatprep.subr.mxu0 0.0
    %1563 = vmatpush1.msra.mxu0 0.0
    %1564 = vmatprep.subr.mxu0 0.0
    %1565 = vmatpush1.msra.mxu0 0.0
    %1566 = vmatprep.subr.mxu0 0.0
    %1567 = vmatpush1.msra.mxu0 0.0
    %1568 = vmatprep.subr.mxu0 0.0
    %1569 = vmatpush1.msra.mxu0 0.0
    %1570 = vmatprep.subr.mxu0 0.0
    %1571 = vmatpush1.msra.mxu0 0.0
    %1572 = vmatprep.subr.mxu0 0.0
    %1573 = vmatpush1.msra.mxu0 0.0
    %1574 = vmatprep.subr.mxu0 0.0
    %1575 = vmatpush1.msra.mxu0 0.0
    %1576 = vmatprep.subr.mxu0 0.0
    %1577 = vmatpush1.msra.mxu0 0.0
    %1578 = vmatprep.mubr.f32.mxu0 0.0
    %1579 = vmatmul.mubr.f32.gmra.mrb[0].mxu0 %v684
    %v1580 = vpop.f32.mrb[0].mxu0
    %v1581 = vadd.f32 0.0, %v1580
    %v1582 = vpop.f32.mrb[0].mxu0
    %1583 = vmatprep.mubr.f32.mxu0 0.0
    %1584 = vmatmul.mubr.f32.gmra.mrb[0].mxu0 %v687
    %v1585 = vpop.f32.mrb[0].mxu0
    %v1586 = vadd.f32 0.0, %v1585
    %v1587 = vpop.f32.mrb[0].mxu0
    %1588 = vdwg.mxu0
    %1589 = vmatprep.subr.mxu0 0.0
    %1590 = vmatpush1.msra.mxu0 %v503
    %1591 = vmatprep.subr.mxu0 0.0
    %1592 = vmatpush1.msra.mxu0 %v508
    %1593 = vmatprep.subr.mxu0 0.0
    %1594 = vmatpush1.msra.mxu0 0.0
    %1595 = vmatprep.subr.mxu0 0.0
    %1596 = vmatpush1.msra.mxu0 0.0
    %1597 = vmatprep.subr.mxu0 0.0
    %1598 = vmatpush1.msra.mxu0 0.0
    %1599 = vmatprep.subr.mxu0 0.0
    %1600 = vmatpush1.msra.mxu0 0.0
    %1601 = vmatprep.subr.mxu0 0.0
    %1602 = vmatpush1.msra.mxu0 0.0
    %1603 = vmatprep.subr.mxu0 0.0
    %1604 = vmatpush1.msra.mxu0 0.0
    %1605 = vmatprep.subr.mxu0 0.0
    %1606 = vmatpush1.msra.mxu0 0.0
    %1607 = vmatprep.subr.mxu0 0.0
    %1608 = vmatpush1.msra.mxu0 0.0
    %1609 = vmatprep.subr.mxu0 0.0
    %1610 = vmatpush1.msra.mxu0 0.0
    %1611 = vmatprep.subr.mxu0 0.0
    %1612 = vmatpush1.msra.mxu0 0.0
    %1613 = vmatprep.subr.mxu0 0.0
    %1614 = vmatpush1.msra.mxu0 0.0
    %1615 = vmatprep.subr.mxu0 0.0
    %1616 = vmatpush1.msra.mxu0 0.0
    %1617 = vmatprep.subr.mxu0 0.0
    %1618 = vmatpush1.msra.mxu0 0.0
    %1619 = vmatprep.subr.mxu0 0.0
    %1620 = vmatpush1.msra.mxu0 0.0
    %1621 = vmatprep.subr.mxu0 0.0
    %1622 = vmatpush1.msra.mxu0 0.0
    %1623 = vmatprep.subr.mxu0 0.0
    %1624 = vmatpush1.msra.mxu0 0.0
    %1625 = vmatprep.subr.mxu0 0.0
    %1626 = vmatpush1.msra.mxu0 0.0
    %1627 = vmatprep.subr.mxu0 0.0
    %1628 = vmatpush1.msra.mxu0 0.0
    %1629 = vmatprep.subr.mxu0 0.0
    %1630 = vmatpush1.msra.mxu0 0.0
    %1631 = vmatprep.subr.mxu0 0.0
    %1632 = vmatpush1.msra.mxu0 0.0
    %1633 = vmatprep.subr.mxu0 0.0
    %1634 = vmatpush1.msra.mxu0 0.0
    %1635 = vmatprep.subr.mxu0 0.0
    %1636 = vmatpush1.msra.mxu0 0.0
    %1637 = vmatprep.subr.mxu0 0.0
    %1638 = vmatpush1.msra.mxu0 0.0
    %1639 = vmatprep.subr.mxu0 0.0
    %1640 = vmatpush1.msra.mxu0 0.0
    %1641 = vmatprep.subr.mxu0 0.0
    %1642 = vmatpush1.msra.mxu0 0.0
    %1643 = vmatprep.subr.mxu0 0.0
    %1644 = vmatpush1.msra.mxu0 0.0
    %1645 = vmatprep.subr.mxu0 0.0
    %1646 = vmatpush1.msra.mxu0 0.0
    %1647 = vmatprep.subr.mxu0 0.0
    %1648 = vmatpush1.msra.mxu0 0.0
    %1649 = vmatprep.subr.mxu0 0.0
    %1650 = vmatpush1.msra.mxu0 0.0
    %1651 = vmatprep.subr.mxu0 0.0
    %1652 = vmatpush1.msra.mxu0 0.0
    %1653 = vmatprep.mubr.f32.mxu0 0.0
    %1654 = vmatmul.mubr.f32.gmra.mrb[0].mxu0 %v684
    %v1655 = vpop.f32.mrb[0].mxu0
    %v1656 = vadd.f32 0.0, %v1655
    %v1657 = vpop.f32.mrb[0].mxu0
    %1658 = vmatprep.mubr.f32.mxu0 0.0
    %1659 = vmatmul.mubr.f32.gmra.mrb[0].mxu0 %v687
    %v1660 = vpop.f32.mrb[0].mxu0
    %v1661 = vadd.f32 0.0, %v1660
    %v1662 = vpop.f32.mrb[0].mxu0
    %1663 = vdwg.mxu0
    %1664 = vmatprep.subr.mxu0 0.0
    %1665 = vmatpush1.msra.mxu0 %v513
    %1666 = vmatprep.subr.mxu0 0.0
    %1667 = vmatpush1.msra.mxu0 %v518
    %1668 = vmatprep.subr.mxu0 0.0
    %1669 = vmatpush1.msra.mxu0 0.0
    %1670 = vmatprep.subr.mxu0 0.0
    %1671 = vmatpush1.msra.mxu0 0.0
    %1672 = vmatprep.subr.mxu0 0.0
    %1673 = vmatpush1.msra.mxu0 0.0
    %1674 = vmatprep.subr.mxu0 0.0
    %1675 = vmatpush1.msra.mxu0 0.0
    %1676 = vmatprep.subr.mxu0 0.0
    %1677 = vmatpush1.msra.mxu0 0.0
    %1678 = vmatprep.subr.mxu0 0.0
    %1679 = vmatpush1.msra.mxu0 0.0
    %1680 = vmatprep.subr.mxu0 0.0
    %1681 = vmatpush1.msra.mxu0 0.0
    %1682 = vmatprep.subr.mxu0 0.0
    %1683 = vmatpush1.msra.mxu0 0.0
    %1684 = vmatprep.subr.mxu0 0.0
    %1685 = vmatpush1.msra.mxu0 0.0
    %1686 = vmatprep.subr.mxu0 0.0
    %1687 = vmatpush1.msra.mxu0 0.0
    %1688 = vmatprep.subr.mxu0 0.0
    %1689 = vmatpush1.msra.mxu0 0.0
    %1690 = vmatprep.subr.mxu0 0.0
    %1691 = vmatpush1.msra.mxu0 0.0
    %1692 = vmatprep.subr.mxu0 0.0
    %1693 = vmatpush1.msra.mxu0 0.0
    %1694 = vmatprep.subr.mxu0 0.0
    %1695 = vmatpush1.msra.mxu0 0.0
    %1696 = vmatprep.subr.mxu0 0.0
    %1697 = vmatpush1.msra.mxu0 0.0
    %1698 = vmatprep.subr.mxu0 0.0
    %1699 = vmatpush1.msra.mxu0 0.0
    %1700 = vmatprep.subr.mxu0 0.0
    %1701 = vmatpush1.msra.mxu0 0.0
    %1702 = vmatprep.subr.mxu0 0.0
    %1703 = vmatpush1.msra.mxu0 0.0
    %1704 = vmatprep.subr.mxu0 0.0
    %1705 = vmatpush1.msra.mxu0 0.0
    %1706 = vmatprep.subr.mxu0 0.0
    %1707 = vmatpush1.msra.mxu0 0.0
    %1708 = vmatprep.subr.mxu0 0.0
    %1709 = vmatpush1.msra.mxu0 0.0
    %1710 = vmatprep.subr.mxu0 0.0
    %1711 = vmatpush1.msra.mxu0 0.0
    %1712 = vmatprep.subr.mxu0 0.0
    %1713 = vmatpush1.msra.mxu0 0.0
    %1714 = vmatprep.subr.mxu0 0.0
    %1715 = vmatpush1.msra.mxu0 0.0
    %1716 = vmatprep.subr.mxu0 0.0
    %1717 = vmatpush1.msra.mxu0 0.0
    %1718 = vmatprep.subr.mxu0 0.0
    %1719 = vmatpush1.msra.mxu0 0.0
    %1720 = vmatprep.subr.mxu0 0.0
    %1721 = vmatpush1.msra.mxu0 0.0
    %1722 = vmatprep.subr.mxu0 0.0
    %1723 = vmatpush1.msra.mxu0 0.0
    %1724 = vmatprep.subr.mxu0 0.0
    %1725 = vmatpush1.msra.mxu0 0.0
    %1726 = vmatprep.subr.mxu0 0.0
    %1727 = vmatpush1.msra.mxu0 0.0
    %1728 = vmatprep.mubr.f32.mxu0 0.0
    %1729 = vmatmul.mubr.f32.gmra.mrb[0].mxu0 %v684
    %v1730 = vpop.f32.mrb[0].mxu0
    %v1731 = vadd.f32 0.0, %v1730
    %v1732 = vpop.f32.mrb[0].mxu0
    %1733 = vmatprep.mubr.f32.mxu0 0.0
    %1734 = vmatmul.mubr.f32.gmra.mrb[0].mxu0 %v687
    %v1735 = vpop.f32.mrb[0].mxu0
    %v1736 = vadd.f32 0.0, %v1735
    %v1737 = vpop.f32.mrb[0].mxu0
    %1738 = vdwg.mxu0
    %1739 = vmatprep.subr.mxu0 0.0
    %1740 = vmatpush1.msra.mxu0 %v523
    %1741 = vmatprep.subr.mxu0 0.0
    %1742 = vmatpush1.msra.mxu0 %v528
    %1743 = vmatprep.subr.mxu0 0.0
    %1744 = vmatpush1.msra.mxu0 0.0
    %1745 = vmatprep.subr.mxu0 0.0
    %1746 = vmatpush1.msra.mxu0 0.0
    %1747 = vmatprep.subr.mxu0 0.0
    %1748 = vmatpush1.msra.mxu0 0.0
    %1749 = vmatprep.subr.mxu0 0.0
    %1750 = vmatpush1.msra.mxu0 0.0
    %1751 = vmatprep.subr.mxu0 0.0
    %1752 = vmatpush1.msra.mxu0 0.0
    %1753 = vmatprep.subr.mxu0 0.0
    %1754 = vmatpush1.msra.mxu0 0.0
    %1755 = vmatprep.subr.mxu0 0.0
    %1756 = vmatpush1.msra.mxu0 0.0
    %1757 = vmatprep.subr.mxu0 0.0
    %1758 = vmatpush1.msra.mxu0 0.0
    %1759 = vmatprep.subr.mxu0 0.0
    %1760 = vmatpush1.msra.mxu0 0.0
    %1761 = vmatprep.subr.mxu0 0.0
    %1762 = vmatpush1.msra.mxu0 0.0
    %1763 = vmatprep.subr.mxu0 0.0
    %1764 = vmatpush1.msra.mxu0 0.0
    %1765 = vmatprep.subr.mxu0 0.0
    %1766 = vmatpush1.msra.mxu0 0.0
    %1767 = vmatprep.subr.mxu0 0.0
    %1768 = vmatpush1.msra.mxu0 0.0
    %1769 = vmatprep.subr.mxu0 0.0
    %1770 = vmatpush1.msra.mxu0 0.0
    %1771 = vmatprep.subr.mxu0 0.0
    %1772 = vmatpush1.msra.mxu0 0.0
    %1773 = vmatprep.subr.mxu0 0.0
    %1774 = vmatpush1.msra.mxu0 0.0
    %1775 = vmatprep.subr.mxu0 0.0
    %1776 = vmatpush1.msra.mxu0 0.0
    %1777 = vmatprep.subr.mxu0 0.0
    %1778 = vmatpush1.msra.mxu0 0.0
    %1779 = vmatprep.subr.mxu0 0.0
    %1780 = vmatpush1.msra.mxu0 0.0
    %1781 = vmatprep.subr.mxu0 0.0
    %1782 = vmatpush1.msra.mxu0 0.0
    %1783 = vmatprep.subr.mxu0 0.0
    %1784 = vmatpush1.msra.mxu0 0.0
    %1785 = vmatprep.subr.mxu0 0.0
    %1786 = vmatpush1.msra.mxu0 0.0
    %1787 = vmatprep.subr.mxu0 0.0
    %1788 = vmatpush1.msra.mxu0 0.0
    %1789 = vmatprep.subr.mxu0 0.0
    %1790 = vmatpush1.msra.mxu0 0.0
    %1791 = vmatprep.subr.mxu0 0.0
    %1792 = vmatpush1.msra.mxu0 0.0
    %1793 = vmatprep.subr.mxu0 0.0
    %1794 = vmatpush1.msra.mxu0 0.0
    %1795 = vmatprep.subr.mxu0 0.0
    %1796 = vmatpush1.msra.mxu0 0.0
    %1797 = vmatprep.subr.mxu0 0.0
    %1798 = vmatpush1.msra.mxu0 0.0
    %1799 = vmatprep.subr.mxu0 0.0
    %1800 = vmatpush1.msra.mxu0 0.0
    %1801 = vmatprep.subr.mxu0 0.0
    %1802 = vmatpush1.msra.mxu0 0.0
    %1803 = vmatprep.mubr.f32.mxu0 0.0
    %1804 = vmatmul.mubr.f32.gmra.mrb[0].mxu0 %v684
    %v1805 = vpop.f32.mrb[0].mxu0
    %v1806 = vadd.f32 0.0, %v1805
    %v1807 = vpop.f32.mrb[0].mxu0
    %1808 = vmatprep.mubr.f32.mxu0 0.0
    %1809 = vmatmul.mubr.f32.gmra.mrb[0].mxu0 %v687
    %v1810 = vpop.f32.mrb[0].mxu0
    %v1811 = vadd.f32 0.0, %v1810
    %v1812 = vpop.f32.mrb[0].mxu0
    %1813 = vdwg.mxu0
    %1814 = vmatprep.subr.mxu0 0.0
    %1815 = vmatpush1.msra.mxu0 %v533
    %1816 = vmatprep.subr.mxu0 0.0
    %1817 = vmatpush1.msra.mxu0 %v538
    %1818 = vmatprep.subr.mxu0 0.0
    %1819 = vmatpush1.msra.mxu0 0.0
    %1820 = vmatprep.subr.mxu0 0.0
    %1821 = vmatpush1.msra.mxu0 0.0
    %1822 = vmatprep.subr.mxu0 0.0
    %1823 = vmatpush1.msra.mxu0 0.0
    %1824 = vmatprep.subr.mxu0 0.0
    %1825 = vmatpush1.msra.mxu0 0.0
    %1826 = vmatprep.subr.mxu0 0.0
    %1827 = vmatpush1.msra.mxu0 0.0
    %1828 = vmatprep.subr.mxu0 0.0
    %1829 = vmatpush1.msra.mxu0 0.0
    %1830 = vmatprep.subr.mxu0 0.0
    %1831 = vmatpush1.msra.mxu0 0.0
    %1832 = vmatprep.subr.mxu0 0.0
    %1833 = vmatpush1.msra.mxu0 0.0
    %1834 = vmatprep.subr.mxu0 0.0
    %1835 = vmatpush1.msra.mxu0 0.0
    %1836 = vmatprep.subr.mxu0 0.0
    %1837 = vmatpush1.msra.mxu0 0.0
    %1838 = vmatprep.subr.mxu0 0.0
    %1839 = vmatpush1.msra.mxu0 0.0
    %1840 = vmatprep.subr.mxu0 0.0
    %1841 = vmatpush1.msra.mxu0 0.0
    %1842 = vmatprep.subr.mxu0 0.0
    %1843 = vmatpush1.msra.mxu0 0.0
    %1844 = vmatprep.subr.mxu0 0.0
    %1845 = vmatpush1.msra.mxu0 0.0
    %1846 = vmatprep.subr.mxu0 0.0
    %1847 = vmatpush1.msra.mxu0 0.0
    %1848 = vmatprep.subr.mxu0 0.0
    %1849 = vmatpush1.msra.mxu0 0.0
    %1850 = vmatprep.subr.mxu0 0.0
    %1851 = vmatpush1.msra.mxu0 0.0
    %1852 = vmatprep.subr.mxu0 0.0
    %1853 = vmatpush1.msra.mxu0 0.0
    %1854 = vmatprep.subr.mxu0 0.0
    %1855 = vmatpush1.msra.mxu0 0.0
    %1856 = vmatprep.subr.mxu0 0.0
    %1857 = vmatpush1.msra.mxu0 0.0
    %1858 = vmatprep.subr.mxu0 0.0
    %1859 = vmatpush1.msra.mxu0 0.0
    %1860 = vmatprep.subr.mxu0 0.0
    %1861 = vmatpush1.msra.mxu0 0.0
    %1862 = vmatprep.subr.mxu0 0.0
    %1863 = vmatpush1.msra.mxu0 0.0
    %1864 = vmatprep.subr.mxu0 0.0
    %1865 = vmatpush1.msra.mxu0 0.0
    %1866 = vmatprep.subr.mxu0 0.0
    %1867 = vmatpush1.msra.mxu0 0.0
    %1868 = vmatprep.subr.mxu0 0.0
    %1869 = vmatpush1.msra.mxu0 0.0
    %1870 = vmatprep.subr.mxu0 0.0
    %1871 = vmatpush1.msra.mxu0 0.0
    %1872 = vmatprep.subr.mxu0 0.0
    %1873 = vmatpush1.msra.mxu0 0.0
    %1874 = vmatprep.subr.mxu0 0.0
    %1875 = vmatpush1.msra.mxu0 0.0
    %1876 = vmatprep.subr.mxu0 0.0
    %1877 = vmatpush1.msra.mxu0 0.0
    %1878 = vmatprep.mubr.f32.mxu0 0.0
    %1879 = vmatmul.mubr.f32.gmra.mrb[0].mxu0 %v684
    %v1880 = vpop.f32.mrb[0].mxu0
    %v1881 = vadd.f32 0.0, %v1880
    %v1882 = vpop.f32.mrb[0].mxu0
    %1883 = vmatprep.mubr.f32.mxu0 0.0
    %1884 = vmatmul.mubr.f32.gmra.mrb[0].mxu0 %v687
    %v1885 = vpop.f32.mrb[0].mxu0
    %v1886 = vadd.f32 0.0, %v1885
    %v1887 = vpop.f32.mrb[0].mxu0
    %1888 = vdwg.mxu0
    %1889 = vmatprep.subr.mxu0 0.0
    %1890 = vmatpush1.msra.mxu0 %v543
    %1891 = vmatprep.subr.mxu0 0.0
    %1892 = vmatpush1.msra.mxu0 %v548
    %1893 = vmatprep.subr.mxu0 0.0
    %1894 = vmatpush1.msra.mxu0 0.0
    %1895 = vmatprep.subr.mxu0 0.0
    %1896 = vmatpush1.msra.mxu0 0.0
    %1897 = vmatprep.subr.mxu0 0.0
    %1898 = vmatpush1.msra.mxu0 0.0
    %1899 = vmatprep.subr.mxu0 0.0
    %1900 = vmatpush1.msra.mxu0 0.0
    %1901 = vmatprep.subr.mxu0 0.0
    %1902 = vmatpush1.msra.mxu0 0.0
    %1903 = vmatprep.subr.mxu0 0.0
    %1904 = vmatpush1.msra.mxu0 0.0
    %1905 = vmatprep.subr.mxu0 0.0
    %1906 = vmatpush1.msra.mxu0 0.0
    %1907 = vmatprep.subr.mxu0 0.0
    %1908 = vmatpush1.msra.mxu0 0.0
    %1909 = vmatprep.subr.mxu0 0.0
    %1910 = vmatpush1.msra.mxu0 0.0
    %1911 = vmatprep.subr.mxu0 0.0
    %1912 = vmatpush1.msra.mxu0 0.0
    %1913 = vmatprep.subr.mxu0 0.0
    %1914 = vmatpush1.msra.mxu0 0.0
    %1915 = vmatprep.subr.mxu0 0.0
    %1916 = vmatpush1.msra.mxu0 0.0
    %1917 = vmatprep.subr.mxu0 0.0
    %1918 = vmatpush1.msra.mxu0 0.0
    %1919 = vmatprep.subr.mxu0 0.0
    %1920 = vmatpush1.msra.mxu0 0.0
    %1921 = vmatprep.subr.mxu0 0.0
    %1922 = vmatpush1.msra.mxu0 0.0
    %1923 = vmatprep.subr.mxu0 0.0
    %1924 = vmatpush1.msra.mxu0 0.0
    %1925 = vmatprep.subr.mxu0 0.0
    %1926 = vmatpush1.msra.mxu0 0.0
    %1927 = vmatprep.subr.mxu0 0.0
    %1928 = vmatpush1.msra.mxu0 0.0
    %1929 = vmatprep.subr.mxu0 0.0
    %1930 = vmatpush1.msra.mxu0 0.0
    %1931 = vmatprep.subr.mxu0 0.0
    %1932 = vmatpush1.msra.mxu0 0.0
    %1933 = vmatprep.subr.mxu0 0.0
    %1934 = vmatpush1.msra.mxu0 0.0
    %1935 = vmatprep.subr.mxu0 0.0
    %1936 = vmatpush1.msra.mxu0 0.0
    %1937 = vmatprep.subr.mxu0 0.0
    %1938 = vmatpush1.msra.mxu0 0.0
    %1939 = vmatprep.subr.mxu0 0.0
    %1940 = vmatpush1.msra.mxu0 0.0
    %1941 = vmatprep.subr.mxu0 0.0
    %1942 = vmatpush1.msra.mxu0 0.0
    %1943 = vmatprep.subr.mxu0 0.0
    %1944 = vmatpush1.msra.mxu0 0.0
    %1945 = vmatprep.subr.mxu0 0.0
    %1946 = vmatpush1.msra.mxu0 0.0
    %1947 = vmatprep.subr.mxu0 0.0
    %1948 = vmatpush1.msra.mxu0 0.0
    %1949 = vmatprep.subr.mxu0 0.0
    %1950 = vmatpush1.msra.mxu0 0.0
    %1951 = vmatprep.subr.mxu0 0.0
    %1952 = vmatpush1.msra.mxu0 0.0
    %1953 = vmatprep.mubr.f32.mxu0 0.0
    %1954 = vmatmul.mubr.f32.gmra.mrb[0].mxu0 %v684
    %v1955 = vpop.f32.mrb[0].mxu0
    %v1956 = vadd.f32 0.0, %v1955
    %v1957 = vpop.f32.mrb[0].mxu0
    %1958 = vmatprep.mubr.f32.mxu0 0.0
    %1959 = vmatmul.mubr.f32.gmra.mrb[0].mxu0 %v687
    %v1960 = vpop.f32.mrb[0].mxu0
    %v1961 = vadd.f32 0.0, %v1960
    %v1962 = vpop.f32.mrb[0].mxu0
    %1963 = vdwg.mxu0
    %1964 = vmatprep.subr.mxu0 0.0
    %1965 = vmatpush1.msra.mxu0 %v553
    %1966 = vmatprep.subr.mxu0 0.0
    %1967 = vmatpush1.msra.mxu0 %v558
    %1968 = vmatprep.subr.mxu0 0.0
    %1969 = vmatpush1.msra.mxu0 0.0
    %1970 = vmatprep.subr.mxu0 0.0
    %1971 = vmatpush1.msra.mxu0 0.0
    %1972 = vmatprep.subr.mxu0 0.0
    %1973 = vmatpush1.msra.mxu0 0.0
    %1974 = vmatprep.subr.mxu0 0.0
    %1975 = vmatpush1.msra.mxu0 0.0
    %1976 = vmatprep.subr.mxu0 0.0
    %1977 = vmatpush1.msra.mxu0 0.0
    %1978 = vmatprep.subr.mxu0 0.0
    %1979 = vmatpush1.msra.mxu0 0.0
    %1980 = vmatprep.subr.mxu0 0.0
    %1981 = vmatpush1.msra.mxu0 0.0
    %1982 = vmatprep.subr.mxu0 0.0
    %1983 = vmatpush1.msra.mxu0 0.0
    %1984 = vmatprep.subr.mxu0 0.0
    %1985 = vmatpush1.msra.mxu0 0.0
    %1986 = vmatprep.subr.mxu0 0.0
    %1987 = vmatpush1.msra.mxu0 0.0
    %1988 = vmatprep.subr.mxu0 0.0
    %1989 = vmatpush1.msra.mxu0 0.0
    %1990 = vmatprep.subr.mxu0 0.0
    %1991 = vmatpush1.msra.mxu0 0.0
    %1992 = vmatprep.subr.mxu0 0.0
    %1993 = vmatpush1.msra.mxu0 0.0
    %1994 = vmatprep.subr.mxu0 0.0
    %1995 = vmatpush1.msra.mxu0 0.0
    %1996 = vmatprep.subr.mxu0 0.0
    %1997 = vmatpush1.msra.mxu0 0.0
    %1998 = vmatprep.subr.mxu0 0.0
    %1999 = vmatpush1.msra.mxu0 0.0
    %2000 = vmatprep.subr.mxu0 0.0
    %2001 = vmatpush1.msra.mxu0 0.0
    %2002 = vmatprep.subr.mxu0 0.0
    %2003 = vmatpush1.msra.mxu0 0.0
    %2004 = vmatprep.subr.mxu0 0.0
    %2005 = vmatpush1.msra.mxu0 0.0
    %2006 = vmatprep.subr.mxu0 0.0
    %2007 = vmatpush1.msra.mxu0 0.0
    %2008 = vmatprep.subr.mxu0 0.0
    %2009 = vmatpush1.msra.mxu0 0.0
    %2010 = vmatprep.subr.mxu0 0.0
    %2011 = vmatpush1.msra.mxu0 0.0
    %2012 = vmatprep.subr.mxu0 0.0
    %2013 = vmatpush1.msra.mxu0 0.0
    %2014 = vmatprep.subr.mxu0 0.0
    %2015 = vmatpush1.msra.mxu0 0.0
    %2016 = vmatprep.subr.mxu0 0.0
    %2017 = vmatpush1.msra.mxu0 0.0
    %2018 = vmatprep.subr.mxu0 0.0
    %2019 = vmatpush1.msra.mxu0 0.0
    %2020 = vmatprep.subr.mxu0 0.0
    %2021 = vmatpush1.msra.mxu0 0.0
    %2022 = vmatprep.subr.mxu0 0.0
    %2023 = vmatpush1.msra.mxu0 0.0
    %2024 = vmatprep.subr.mxu0 0.0
    %2025 = vmatpush1.msra.mxu0 0.0
    %2026 = vmatprep.subr.mxu0 0.0
    %2027 = vmatpush1.msra.mxu0 0.0
    %2028 = vmatprep.mubr.f32.mxu0 0.0
    %2029 = vmatmul.mubr.f32.gmra.mrb[0].mxu0 %v684
    %v2030 = vpop.f32.mrb[0].mxu0
    %v2031 = vadd.f32 0.0, %v2030
    %v2032 = vpop.f32.mrb[0].mxu0
    %2033 = vmatprep.mubr.f32.mxu0 0.0
    %2034 = vmatmul.mubr.f32.gmra.mrb[0].mxu0 %v687
    %v2035 = vpop.f32.mrb[0].mxu0
    %v2036 = vadd.f32 0.0, %v2035
    %v2037 = vpop.f32.mrb[0].mxu0
    %2038 = vdwg.mxu0
    %2039 = vmatprep.subr.mxu0 0.0
    %2040 = vmatpush1.msra.mxu0 %v563
    %2041 = vmatprep.subr.mxu0 0.0
    %2042 = vmatpush1.msra.mxu0 %v568
    %2043 = vmatprep.subr.mxu0 0.0
    %2044 = vmatpush1.msra.mxu0 0.0
    %2045 = vmatprep.subr.mxu0 0.0
    %2046 = vmatpush1.msra.mxu0 0.0
    %2047 = vmatprep.subr.mxu0 0.0
    %2048 = vmatpush1.msra.mxu0 0.0
    %2049 = vmatprep.subr.mxu0 0.0
    %2050 = vmatpush1.msra.mxu0 0.0
    %2051 = vmatprep.subr.mxu0 0.0
    %2052 = vmatpush1.msra.mxu0 0.0
    %2053 = vmatprep.subr.mxu0 0.0
    %2054 = vmatpush1.msra.mxu0 0.0
    %2055 = vmatprep.subr.mxu0 0.0
    %2056 = vmatpush1.msra.mxu0 0.0
    %2057 = vmatprep.subr.mxu0 0.0
    %2058 = vmatpush1.msra.mxu0 0.0
    %2059 = vmatprep.subr.mxu0 0.0
    %2060 = vmatpush1.msra.mxu0 0.0
    %2061 = vmatprep.subr.mxu0 0.0
    %2062 = vmatpush1.msra.mxu0 0.0
    %2063 = vmatprep.subr.mxu0 0.0
    %2064 = vmatpush1.msra.mxu0 0.0
    %2065 = vmatprep.subr.mxu0 0.0
    %2066 = vmatpush1.msra.mxu0 0.0
    %2067 = vmatprep.subr.mxu0 0.0
    %2068 = vmatpush1.msra.mxu0 0.0
    %2069 = vmatprep.subr.mxu0 0.0
    %2070 = vmatpush1.msra.mxu0 0.0
    %2071 = vmatprep.subr.mxu0 0.0
    %2072 = vmatpush1.msra.mxu0 0.0
    %2073 = vmatprep.subr.mxu0 0.0
    %2074 = vmatpush1.msra.mxu0 0.0
    %2075 = vmatprep.subr.mxu0 0.0
    %2076 = vmatpush1.msra.mxu0 0.0
    %2077 = vmatprep.subr.mxu0 0.0
    %2078 = vmatpush1.msra.mxu0 0.0
    %2079 = vmatprep.subr.mxu0 0.0
    %2080 = vmatpush1.msra.mxu0 0.0
    %2081 = vmatprep.subr.mxu0 0.0
    %2082 = vmatpush1.msra.mxu0 0.0
    %2083 = vmatprep.subr.mxu0 0.0
    %2084 = vmatpush1.msra.mxu0 0.0
    %2085 = vmatprep.subr.mxu0 0.0
    %2086 = vmatpush1.msra.mxu0 0.0
    %2087 = vmatprep.subr.mxu0 0.0
    %2088 = vmatpush1.msra.mxu0 0.0
    %2089 = vmatprep.subr.mxu0 0.0
    %2090 = vmatpush1.msra.mxu0 0.0
    %2091 = vmatprep.subr.mxu0 0.0
    %2092 = vmatpush1.msra.mxu0 0.0
    %2093 = vmatprep.subr.mxu0 0.0
    %2094 = vmatpush1.msra.mxu0 0.0
    %2095 = vmatprep.subr.mxu0 0.0
    %2096 = vmatpush1.msra.mxu0 0.0
    %2097 = vmatprep.subr.mxu0 0.0
    %2098 = vmatpush1.msra.mxu0 0.0
    %2099 = vmatprep.subr.mxu0 0.0
    %2100 = vmatpush1.msra.mxu0 0.0
    %2101 = vmatprep.subr.mxu0 0.0
    %2102 = vmatpush1.msra.mxu0 0.0
    %2103 = vmatprep.mubr.f32.mxu0 0.0
    %2104 = vmatmul.mubr.f32.gmra.mrb[0].mxu0 %v684
    %v2105 = vpop.f32.mrb[0].mxu0
    %v2106 = vadd.f32 0.0, %v2105
    %v2107 = vpop.f32.mrb[0].mxu0
    %2108 = vmatprep.mubr.f32.mxu0 0.0
    %2109 = vmatmul.mubr.f32.gmra.mrb[0].mxu0 %v687
    %v2110 = vpop.f32.mrb[0].mxu0
    %v2111 = vadd.f32 0.0, %v2110
    %v2112 = vpop.f32.mrb[0].mxu0
    %2113 = vdwg.mxu0
    %2114 = vmatprep.subr.mxu0 0.0
    %2115 = vmatpush1.msra.mxu0 %v573
    %2116 = vmatprep.subr.mxu0 0.0
    %2117 = vmatpush1.msra.mxu0 %v578
    %2118 = vmatprep.subr.mxu0 0.0
    %2119 = vmatpush1.msra.mxu0 0.0
    %2120 = vmatprep.subr.mxu0 0.0
    %2121 = vmatpush1.msra.mxu0 0.0
    %2122 = vmatprep.subr.mxu0 0.0
    %2123 = vmatpush1.msra.mxu0 0.0
    %2124 = vmatprep.subr.mxu0 0.0
    %2125 = vmatpush1.msra.mxu0 0.0
    %2126 = vmatprep.subr.mxu0 0.0
    %2127 = vmatpush1.msra.mxu0 0.0
    %2128 = vmatprep.subr.mxu0 0.0
    %2129 = vmatpush1.msra.mxu0 0.0
    %2130 = vmatprep.subr.mxu0 0.0
    %2131 = vmatpush1.msra.mxu0 0.0
    %2132 = vmatprep.subr.mxu0 0.0
    %2133 = vmatpush1.msra.mxu0 0.0
    %2134 = vmatprep.subr.mxu0 0.0
    %2135 = vmatpush1.msra.mxu0 0.0
    %2136 = vmatprep.subr.mxu0 0.0
    %2137 = vmatpush1.msra.mxu0 0.0
    %2138 = vmatprep.subr.mxu0 0.0
    %2139 = vmatpush1.msra.mxu0 0.0
    %2140 = vmatprep.subr.mxu0 0.0
    %2141 = vmatpush1.msra.mxu0 0.0
    %2142 = vmatprep.subr.mxu0 0.0
    %2143 = vmatpush1.msra.mxu0 0.0
    %2144 = vmatprep.subr.mxu0 0.0
    %2145 = vmatpush1.msra.mxu0 0.0
    %2146 = vmatprep.subr.mxu0 0.0
    %2147 = vmatpush1.msra.mxu0 0.0
    %2148 = vmatprep.subr.mxu0 0.0
    %2149 = vmatpush1.msra.mxu0 0.0
    %2150 = vmatprep.subr.mxu0 0.0
    %2151 = vmatpush1.msra.mxu0 0.0
    %2152 = vmatprep.subr.mxu0 0.0
    %2153 = vmatpush1.msra.mxu0 0.0
    %2154 = vmatprep.subr.mxu0 0.0
    %2155 = vmatpush1.msra.mxu0 0.0
    %2156 = vmatprep.subr.mxu0 0.0
    %2157 = vmatpush1.msra.mxu0 0.0
    %2158 = vmatprep.subr.mxu0 0.0
    %2159 = vmatpush1.msra.mxu0 0.0
    %2160 = vmatprep.subr.mxu0 0.0
    %2161 = vmatpush1.msra.mxu0 0.0
    %2162 = vmatprep.subr.mxu0 0.0
    %2163 = vmatpush1.msra.mxu0 0.0
    %2164 = vmatprep.subr.mxu0 0.0
    %2165 = vmatpush1.msra.mxu0 0.0
    %2166 = vmatprep.subr.mxu0 0.0
    %2167 = vmatpush1.msra.mxu0 0.0
    %2168 = vmatprep.subr.mxu0 0.0
    %2169 = vmatpush1.msra.mxu0 0.0
    %2170 = vmatprep.subr.mxu0 0.0
    %2171 = vmatpush1.msra.mxu0 0.0
    %2172 = vmatprep.subr.mxu0 0.0
    %2173 = vmatpush1.msra.mxu0 0.0
    %2174 = vmatprep.subr.mxu0 0.0
    %2175 = vmatpush1.msra.mxu0 0.0
    %2176 = vmatprep.subr.mxu0 0.0
    %2177 = vmatpush1.msra.mxu0 0.0
    %2178 = vmatprep.mubr.f32.mxu0 0.0
    %2179 = vmatmul.mubr.f32.gmra.mrb[0].mxu0 %v684
    %v2180 = vpop.f32.mrb[0].mxu0
    %v2181 = vadd.f32 0.0, %v2180
    %v2182 = vpop.f32.mrb[0].mxu0
    %2183 = vmatprep.mubr.f32.mxu0 0.0
    %2184 = vmatmul.mubr.f32.gmra.mrb[0].mxu0 %v687
    %v2185 = vpop.f32.mrb[0].mxu0
    %v2186 = vadd.f32 0.0, %v2185
    %v2187 = vpop.f32.mrb[0].mxu0
    %2188 = vdwg.mxu0
    %2189 = vmatprep.subr.mxu0 0.0
    %2190 = vmatpush1.msra.mxu0 %v583
    %2191 = vmatprep.subr.mxu0 0.0
    %2192 = vmatpush1.msra.mxu0 %v588
    %2193 = vmatprep.subr.mxu0 0.0
    %2194 = vmatpush1.msra.mxu0 0.0
    %2195 = vmatprep.subr.mxu0 0.0
    %2196 = vmatpush1.msra.mxu0 0.0
    %2197 = vmatprep.subr.mxu0 0.0
    %2198 = vmatpush1.msra.mxu0 0.0
    %2199 = vmatprep.subr.mxu0 0.0
    %2200 = vmatpush1.msra.mxu0 0.0
    %2201 = vmatprep.subr.mxu0 0.0
    %2202 = vmatpush1.msra.mxu0 0.0
    %2203 = vmatprep.subr.mxu0 0.0
    %2204 = vmatpush1.msra.mxu0 0.0
    %2205 = vmatprep.subr.mxu0 0.0
    %2206 = vmatpush1.msra.mxu0 0.0
    %2207 = vmatprep.subr.mxu0 0.0
    %2208 = vmatpush1.msra.mxu0 0.0
    %2209 = vmatprep.subr.mxu0 0.0
    %2210 = vmatpush1.msra.mxu0 0.0
    %2211 = vmatprep.subr.mxu0 0.0
    %2212 = vmatpush1.msra.mxu0 0.0
    %2213 = vmatprep.subr.mxu0 0.0
    %2214 = vmatpush1.msra.mxu0 0.0
    %2215 = vmatprep.subr.mxu0 0.0
    %2216 = vmatpush1.msra.mxu0 0.0
    %2217 = vmatprep.subr.mxu0 0.0
    %2218 = vmatpush1.msra.mxu0 0.0
    %2219 = vmatprep.subr.mxu0 0.0
    %2220 = vmatpush1.msra.mxu0 0.0
    %2221 = vmatprep.subr.mxu0 0.0
    %2222 = vmatpush1.msra.mxu0 0.0
    %2223 = vmatprep.subr.mxu0 0.0
    %2224 = vmatpush1.msra.mxu0 0.0
    %2225 = vmatprep.subr.mxu0 0.0
    %2226 = vmatpush1.msra.mxu0 0.0
    %2227 = vmatprep.subr.mxu0 0.0
    %2228 = vmatpush1.msra.mxu0 0.0
    %2229 = vmatprep.subr.mxu0 0.0
    %2230 = vmatpush1.msra.mxu0 0.0
    %2231 = vmatprep.subr.mxu0 0.0
    %2232 = vmatpush1.msra.mxu0 0.0
    %2233 = vmatprep.subr.mxu0 0.0
    %2234 = vmatpush1.msra.mxu0 0.0
    %2235 = vmatprep.subr.mxu0 0.0
    %2236 = vmatpush1.msra.mxu0 0.0
    %2237 = vmatprep.subr.mxu0 0.0
    %2238 = vmatpush1.msra.mxu0 0.0
    %2239 = vmatprep.subr.mxu0 0.0
    %2240 = vmatpush1.msra.mxu0 0.0
    %2241 = vmatprep.subr.mxu0 0.0
    %2242 = vmatpush1.msra.mxu0 0.0
    %2243 = vmatprep.subr.mxu0 0.0
    %2244 = vmatpush1.msra.mxu0 0.0
    %2245 = vmatprep.subr.mxu0 0.0
    %2246 = vmatpush1.msra.mxu0 0.0
    %2247 = vmatprep.subr.mxu0 0.0
    %2248 = vmatpush1.msra.mxu0 0.0
    %2249 = vmatprep.subr.mxu0 0.0
    %2250 = vmatpush1.msra.mxu0 0.0
    %2251 = vmatprep.subr.mxu0 0.0
    %2252 = vmatpush1.msra.mxu0 0.0
    %2253 = vmatprep.mubr.f32.mxu0 0.0
    %2254 = vmatmul.mubr.f32.gmra.mrb[0].mxu0 %v684
    %v2255 = vpop.f32.mrb[0].mxu0
    %v2256 = vadd.f32 0.0, %v2255
    %v2257 = vpop.f32.mrb[0].mxu0
    %2258 = vmatprep.mubr.f32.mxu0 0.0
    %2259 = vmatmul.mubr.f32.gmra.mrb[0].mxu0 %v687
    %v2260 = vpop.f32.mrb[0].mxu0
    %v2261 = vadd.f32 0.0, %v2260
    %v2262 = vpop.f32.mrb[0].mxu0
    %2263 = vdwg.mxu0
    %2264 = vmatprep.subr.mxu0 0.0
    %2265 = vmatpush1.msra.mxu0 %v593
    %2266 = vmatprep.subr.mxu0 0.0
    %2267 = vmatpush1.msra.mxu0 %v598
    %2268 = vmatprep.subr.mxu0 0.0
    %2269 = vmatpush1.msra.mxu0 0.0
    %2270 = vmatprep.subr.mxu0 0.0
    %2271 = vmatpush1.msra.mxu0 0.0
    %2272 = vmatprep.subr.mxu0 0.0
    %2273 = vmatpush1.msra.mxu0 0.0
    %2274 = vmatprep.subr.mxu0 0.0
    %2275 = vmatpush1.msra.mxu0 0.0
    %2276 = vmatprep.subr.mxu0 0.0
    %2277 = vmatpush1.msra.mxu0 0.0
    %2278 = vmatprep.subr.mxu0 0.0
    %2279 = vmatpush1.msra.mxu0 0.0
    %2280 = vmatprep.subr.mxu0 0.0
    %2281 = vmatpush1.msra.mxu0 0.0
    %2282 = vmatprep.subr.mxu0 0.0
    %2283 = vmatpush1.msra.mxu0 0.0
    %2284 = vmatprep.subr.mxu0 0.0
    %2285 = vmatpush1.msra.mxu0 0.0
    %2286 = vmatprep.subr.mxu0 0.0
    %2287 = vmatpush1.msra.mxu0 0.0
    %2288 = vmatprep.subr.mxu0 0.0
    %2289 = vmatpush1.msra.mxu0 0.0
    %2290 = vmatprep.subr.mxu0 0.0
    %2291 = vmatpush1.msra.mxu0 0.0
    %2292 = vmatprep.subr.mxu0 0.0
    %2293 = vmatpush1.msra.mxu0 0.0
    %2294 = vmatprep.subr.mxu0 0.0
    %2295 = vmatpush1.msra.mxu0 0.0
    %2296 = vmatprep.subr.mxu0 0.0
    %2297 = vmatpush1.msra.mxu0 0.0
    %2298 = vmatprep.subr.mxu0 0.0
    %2299 = vmatpush1.msra.mxu0 0.0
    %2300 = vmatprep.subr.mxu0 0.0
    %2301 = vmatpush1.msra.mxu0 0.0
    %2302 = vmatprep.subr.mxu0 0.0
    %2303 = vmatpush1.msra.mxu0 0.0
    %2304 = vmatprep.subr.mxu0 0.0
    %2305 = vmatpush1.msra.mxu0 0.0
    %2306 = vmatprep.subr.mxu0 0.0
    %2307 = vmatpush1.msra.mxu0 0.0
    %2308 = vmatprep.subr.mxu0 0.0
    %2309 = vmatpush1.msra.mxu0 0.0
    %2310 = vmatprep.subr.mxu0 0.0
    %2311 = vmatpush1.msra.mxu0 0.0
    %2312 = vmatprep.subr.mxu0 0.0
    %2313 = vmatpush1.msra.mxu0 0.0
    %2314 = vmatprep.subr.mxu0 0.0
    %2315 = vmatpush1.msra.mxu0 0.0
    %2316 = vmatprep.subr.mxu0 0.0
    %2317 = vmatpush1.msra.mxu0 0.0
    %2318 = vmatprep.subr.mxu0 0.0
    %2319 = vmatpush1.msra.mxu0 0.0
    %2320 = vmatprep.subr.mxu0 0.0
    %2321 = vmatpush1.msra.mxu0 0.0
    %2322 = vmatprep.subr.mxu0 0.0
    %2323 = vmatpush1.msra.mxu0 0.0
    %2324 = vmatprep.subr.mxu0 0.0
    %2325 = vmatpush1.msra.mxu0 0.0
    %2326 = vmatprep.subr.mxu0 0.0
    %2327 = vmatpush1.msra.mxu0 0.0
    %2328 = vmatprep.mubr.f32.mxu0 0.0
    %2329 = vmatmul.mubr.f32.gmra.mrb[0].mxu0 %v684
    %v2330 = vpop.f32.mrb[0].mxu0
    %v2331 = vadd.f32 0.0, %v2330
    %v2332 = vpop.f32.mrb[0].mxu0
    %2333 = vmatprep.mubr.f32.mxu0 0.0
    %2334 = vmatmul.mubr.f32.gmra.mrb[0].mxu0 %v687
    %v2335 = vpop.f32.mrb[0].mxu0
    %v2336 = vadd.f32 0.0, %v2335
    %v2337 = vpop.f32.mrb[0].mxu0
    %2338 = vdwg.mxu0
    %2339 = vmatprep.subr.mxu0 0.0
    %2340 = vmatpush1.msra.mxu0 %v603
    %2341 = vmatprep.subr.mxu0 0.0
    %2342 = vmatpush1.msra.mxu0 %v608
    %2343 = vmatprep.subr.mxu0 0.0
    %2344 = vmatpush1.msra.mxu0 0.0
    %2345 = vmatprep.subr.mxu0 0.0
    %2346 = vmatpush1.msra.mxu0 0.0
    %2347 = vmatprep.subr.mxu0 0.0
    %2348 = vmatpush1.msra.mxu0 0.0
    %2349 = vmatprep.subr.mxu0 0.0
    %2350 = vmatpush1.msra.mxu0 0.0
    %2351 = vmatprep.subr.mxu0 0.0
    %2352 = vmatpush1.msra.mxu0 0.0
    %2353 = vmatprep.subr.mxu0 0.0
    %2354 = vmatpush1.msra.mxu0 0.0
    %2355 = vmatprep.subr.mxu0 0.0
    %2356 = vmatpush1.msra.mxu0 0.0
    %2357 = vmatprep.subr.mxu0 0.0
    %2358 = vmatpush1.msra.mxu0 0.0
    %2359 = vmatprep.subr.mxu0 0.0
    %2360 = vmatpush1.msra.mxu0 0.0
    %2361 = vmatprep.subr.mxu0 0.0
    %2362 = vmatpush1.msra.mxu0 0.0
    %2363 = vmatprep.subr.mxu0 0.0
    %2364 = vmatpush1.msra.mxu0 0.0
    %2365 = vmatprep.subr.mxu0 0.0
    %2366 = vmatpush1.msra.mxu0 0.0
    %2367 = vmatprep.subr.mxu0 0.0
    %2368 = vmatpush1.msra.mxu0 0.0
    %2369 = vmatprep.subr.mxu0 0.0
    %2370 = vmatpush1.msra.mxu0 0.0
    %2371 = vmatprep.subr.mxu0 0.0
    %2372 = vmatpush1.msra.mxu0 0.0
    %2373 = vmatprep.subr.mxu0 0.0
    %2374 = vmatpush1.msra.mxu0 0.0
    %2375 = vmatprep.subr.mxu0 0.0
    %2376 = vmatpush1.msra.mxu0 0.0
    %2377 = vmatprep.subr.mxu0 0.0
    %2378 = vmatpush1.msra.mxu0 0.0
    %2379 = vmatprep.subr.mxu0 0.0
    %2380 = vmatpush1.msra.mxu0 0.0
    %2381 = vmatprep.subr.mxu0 0.0
    %2382 = vmatpush1.msra.mxu0 0.0
    %2383 = vmatprep.subr.mxu0 0.0
    %2384 = vmatpush1.msra.mxu0 0.0
    %2385 = vmatprep.subr.mxu0 0.0
    %2386 = vmatpush1.msra.mxu0 0.0
    %2387 = vmatprep.subr.mxu0 0.0
    %2388 = vmatpush1.msra.mxu0 0.0
    %2389 = vmatprep.subr.mxu0 0.0
    %2390 = vmatpush1.msra.mxu0 0.0
    %2391 = vmatprep.subr.mxu0 0.0
    %2392 = vmatpush1.msra.mxu0 0.0
    %2393 = vmatprep.subr.mxu0 0.0
    %2394 = vmatpush1.msra.mxu0 0.0
    %2395 = vmatprep.subr.mxu0 0.0
    %2396 = vmatpush1.msra.mxu0 0.0
    %2397 = vmatprep.subr.mxu0 0.0
    %2398 = vmatpush1.msra.mxu0 0.0
    %2399 = vmatprep.subr.mxu0 0.0
    %2400 = vmatpush1.msra.mxu0 0.0
    %2401 = vmatprep.subr.mxu0 0.0
    %2402 = vmatpush1.msra.mxu0 0.0
    %2403 = vmatprep.mubr.f32.mxu0 0.0
    %2404 = vmatmul.mubr.f32.gmra.mrb[0].mxu0 %v684
    %v2405 = vpop.f32.mrb[0].mxu0
    %v2406 = vadd.f32 0.0, %v2405
    %v2407 = vpop.f32.mrb[0].mxu0
    %2408 = vmatprep.mubr.f32.mxu0 0.0
    %2409 = vmatmul.mubr.f32.gmra.mrb[0].mxu0 %v687
    %v2410 = vpop.f32.mrb[0].mxu0
    %v2411 = vadd.f32 0.0, %v2410
    %v2412 = vpop.f32.mrb[0].mxu0
    %2413 = vdwg.mxu0
    %2414 = vmatprep.subr.mxu0 0.0
    %2415 = vmatpush1.msra.mxu0 %v613
    %2416 = vmatprep.subr.mxu0 0.0
    %2417 = vmatpush1.msra.mxu0 %v618
    %2418 = vmatprep.subr.mxu0 0.0
    %2419 = vmatpush1.msra.mxu0 0.0
    %2420 = vmatprep.subr.mxu0 0.0
    %2421 = vmatpush1.msra.mxu0 0.0
    %2422 = vmatprep.subr.mxu0 0.0
    %2423 = vmatpush1.msra.mxu0 0.0
    %2424 = vmatprep.subr.mxu0 0.0
    %2425 = vmatpush1.msra.mxu0 0.0
    %2426 = vmatprep.subr.mxu0 0.0
    %2427 = vmatpush1.msra.mxu0 0.0
    %2428 = vmatprep.subr.mxu0 0.0
    %2429 = vmatpush1.msra.mxu0 0.0
    %2430 = vmatprep.subr.mxu0 0.0
    %2431 = vmatpush1.msra.mxu0 0.0
    %2432 = vmatprep.subr.mxu0 0.0
    %2433 = vmatpush1.msra.mxu0 0.0
    %2434 = vmatprep.subr.mxu0 0.0
    %2435 = vmatpush1.msra.mxu0 0.0
    %2436 = vmatprep.subr.mxu0 0.0
    %2437 = vmatpush1.msra.mxu0 0.0
    %2438 = vmatprep.subr.mxu0 0.0
    %2439 = vmatpush1.msra.mxu0 0.0
    %2440 = vmatprep.subr.mxu0 0.0
    %2441 = vmatpush1.msra.mxu0 0.0
    %2442 = vmatprep.subr.mxu0 0.0
    %2443 = vmatpush1.msra.mxu0 0.0
    %2444 = vmatprep.subr.mxu0 0.0
    %2445 = vmatpush1.msra.mxu0 0.0
    %2446 = vmatprep.subr.mxu0 0.0
    %2447 = vmatpush1.msra.mxu0 0.0
    %2448 = vmatprep.subr.mxu0 0.0
    %2449 = vmatpush1.msra.mxu0 0.0
    %2450 = vmatprep.subr.mxu0 0.0
    %2451 = vmatpush1.msra.mxu0 0.0
    %2452 = vmatprep.subr.mxu0 0.0
    %2453 = vmatpush1.msra.mxu0 0.0
    %2454 = vmatprep.subr.mxu0 0.0
    %2455 = vmatpush1.msra.mxu0 0.0
    %2456 = vmatprep.subr.mxu0 0.0
    %2457 = vmatpush1.msra.mxu0 0.0
    %2458 = vmatprep.subr.mxu0 0.0
    %2459 = vmatpush1.msra.mxu0 0.0
    %2460 = vmatprep.subr.mxu0 0.0
    %2461 = vmatpush1.msra.mxu0 0.0
    %2462 = vmatprep.subr.mxu0 0.0
    %2463 = vmatpush1.msra.mxu0 0.0
    %2464 = vmatprep.subr.mxu0 0.0
    %2465 = vmatpush1.msra.mxu0 0.0
    %2466 = vmatprep.subr.mxu0 0.0
    %2467 = vmatpush1.msra.mxu0 0.0
    %2468 = vmatprep.subr.mxu0 0.0
    %2469 = vmatpush1.msra.mxu0 0.0
    %2470 = vmatprep.subr.mxu0 0.0
    %2471 = vmatpush1.msra.mxu0 0.0
    %2472 = vmatprep.subr.mxu0 0.0
    %2473 = vmatpush1.msra.mxu0 0.0
    %2474 = vmatprep.subr.mxu0 0.0
    %2475 = vmatpush1.msra.mxu0 0.0
    %2476 = vmatprep.subr.mxu0 0.0
    %2477 = vmatpush1.msra.mxu0 0.0
    %2478 = vmatprep.mubr.f32.mxu0 0.0
    %2479 = vmatmul.mubr.f32.gmra.mrb[0].mxu0 %v684
    %v2480 = vpop.f32.mrb[0].mxu0
    %v2481 = vadd.f32 0.0, %v2480
    %v2482 = vpop.f32.mrb[0].mxu0
    %2483 = vmatprep.mubr.f32.mxu0 0.0
    %2484 = vmatmul.mubr.f32.gmra.mrb[0].mxu0 %v687
    %v2485 = vpop.f32.mrb[0].mxu0
    %v2486 = vadd.f32 0.0, %v2485
    %v2487 = vpop.f32.mrb[0].mxu0
    %2488 = vdwg.mxu0
    %2489 = vmatprep.subr.mxu0 0.0
    %2490 = vmatpush1.msra.mxu0 %v623
    %2491 = vmatprep.subr.mxu0 0.0
    %2492 = vmatpush1.msra.mxu0 %v628
    %2493 = vmatprep.subr.mxu0 0.0
    %2494 = vmatpush1.msra.mxu0 0.0
    %2495 = vmatprep.subr.mxu0 0.0
    %2496 = vmatpush1.msra.mxu0 0.0
    %2497 = vmatprep.subr.mxu0 0.0
    %2498 = vmatpush1.msra.mxu0 0.0
    %2499 = vmatprep.subr.mxu0 0.0
    %2500 = vmatpush1.msra.mxu0 0.0
    %2501 = vmatprep.subr.mxu0 0.0
    %2502 = vmatpush1.msra.mxu0 0.0
    %2503 = vmatprep.subr.mxu0 0.0
    %2504 = vmatpush1.msra.mxu0 0.0
    %2505 = vmatprep.subr.mxu0 0.0
    %2506 = vmatpush1.msra.mxu0 0.0
    %2507 = vmatprep.subr.mxu0 0.0
    %2508 = vmatpush1.msra.mxu0 0.0
    %2509 = vmatprep.subr.mxu0 0.0
    %2510 = vmatpush1.msra.mxu0 0.0
    %2511 = vmatprep.subr.mxu0 0.0
    %2512 = vmatpush1.msra.mxu0 0.0
    %2513 = vmatprep.subr.mxu0 0.0
    %2514 = vmatpush1.msra.mxu0 0.0
    %2515 = vmatprep.subr.mxu0 0.0
    %2516 = vmatpush1.msra.mxu0 0.0
    %2517 = vmatprep.subr.mxu0 0.0
    %2518 = vmatpush1.msra.mxu0 0.0
    %2519 = vmatprep.subr.mxu0 0.0
    %2520 = vmatpush1.msra.mxu0 0.0
    %2521 = vmatprep.subr.mxu0 0.0
    %2522 = vmatpush1.msra.mxu0 0.0
    %2523 = vmatprep.subr.mxu0 0.0
    %2524 = vmatpush1.msra.mxu0 0.0
    %2525 = vmatprep.subr.mxu0 0.0
    %2526 = vmatpush1.msra.mxu0 0.0
    %2527 = vmatprep.subr.mxu0 0.0
    %2528 = vmatpush1.msra.mxu0 0.0
    %2529 = vmatprep.subr.mxu0 0.0
    %2530 = vmatpush1.msra.mxu0 0.0
    %2531 = vmatprep.subr.mxu0 0.0
    %2532 = vmatpush1.msra.mxu0 0.0
    %2533 = vmatprep.subr.mxu0 0.0
    %2534 = vmatpush1.msra.mxu0 0.0
    %2535 = vmatprep.subr.mxu0 0.0
    %2536 = vmatpush1.msra.mxu0 0.0
    %2537 = vmatprep.subr.mxu0 0.0
    %2538 = vmatpush1.msra.mxu0 0.0
    %2539 = vmatprep.subr.mxu0 0.0
    %2540 = vmatpush1.msra.mxu0 0.0
    %2541 = vmatprep.subr.mxu0 0.0
    %2542 = vmatpush1.msra.mxu0 0.0
    %2543 = vmatprep.subr.mxu0 0.0
    %2544 = vmatpush1.msra.mxu0 0.0
    %2545 = vmatprep.subr.mxu0 0.0
    %2546 = vmatpush1.msra.mxu0 0.0
    %2547 = vmatprep.subr.mxu0 0.0
    %2548 = vmatpush1.msra.mxu0 0.0
    %2549 = vmatprep.subr.mxu0 0.0
    %2550 = vmatpush1.msra.mxu0 0.0
    %2551 = vmatprep.subr.mxu0 0.0
    %2552 = vmatpush1.msra.mxu0 0.0
    %2553 = vmatprep.mubr.f32.mxu0 0.0
    %2554 = vmatmul.mubr.f32.gmra.mrb[0].mxu0 %v684
    %v2555 = vpop.f32.mrb[0].mxu0
    %v2556 = vadd.f32 0.0, %v2555
    %v2557 = vpop.f32.mrb[0].mxu0
    %2558 = vmatprep.mubr.f32.mxu0 0.0
    %2559 = vmatmul.mubr.f32.gmra.mrb[0].mxu0 %v687
    %v2560 = vpop.f32.mrb[0].mxu0
    %v2561 = vadd.f32 0.0, %v2560
    %v2562 = vpop.f32.mrb[0].mxu0
    %2563 = vdwg.mxu0
    %2564 = vmatprep.subr.mxu0 0.0
    %2565 = vmatpush1.msra.mxu0 %v633
    %2566 = vmatprep.subr.mxu0 0.0
    %2567 = vmatpush1.msra.mxu0 %v638
    %2568 = vmatprep.subr.mxu0 0.0
    %2569 = vmatpush1.msra.mxu0 0.0
    %2570 = vmatprep.subr.mxu0 0.0
    %2571 = vmatpush1.msra.mxu0 0.0
    %2572 = vmatprep.subr.mxu0 0.0
    %2573 = vmatpush1.msra.mxu0 0.0
    %2574 = vmatprep.subr.mxu0 0.0
    %2575 = vmatpush1.msra.mxu0 0.0
    %2576 = vmatprep.subr.mxu0 0.0
    %2577 = vmatpush1.msra.mxu0 0.0
    %2578 = vmatprep.subr.mxu0 0.0
    %2579 = vmatpush1.msra.mxu0 0.0
    %2580 = vmatprep.subr.mxu0 0.0
    %2581 = vmatpush1.msra.mxu0 0.0
    %2582 = vmatprep.subr.mxu0 0.0
    %2583 = vmatpush1.msra.mxu0 0.0
    %2584 = vmatprep.subr.mxu0 0.0
    %2585 = vmatpush1.msra.mxu0 0.0
    %2586 = vmatprep.subr.mxu0 0.0
    %2587 = vmatpush1.msra.mxu0 0.0
    %2588 = vmatprep.subr.mxu0 0.0
    %2589 = vmatpush1.msra.mxu0 0.0
    %2590 = vmatprep.subr.mxu0 0.0
    %2591 = vmatpush1.msra.mxu0 0.0
    %2592 = vmatprep.subr.mxu0 0.0
    %2593 = vmatpush1.msra.mxu0 0.0
    %2594 = vmatprep.subr.mxu0 0.0
    %2595 = vmatpush1.msra.mxu0 0.0
    %2596 = vmatprep.subr.mxu0 0.0
    %2597 = vmatpush1.msra.mxu0 0.0
    %2598 = vmatprep.subr.mxu0 0.0
    %2599 = vmatpush1.msra.mxu0 0.0
    %2600 = vmatprep.subr.mxu0 0.0
    %2601 = vmatpush1.msra.mxu0 0.0
    %2602 = vmatprep.subr.mxu0 0.0
    %2603 = vmatpush1.msra.mxu0 0.0
    %2604 = vmatprep.subr.mxu0 0.0
    %2605 = vmatpush1.msra.mxu0 0.0
    %2606 = vmatprep.subr.mxu0 0.0
    %2607 = vmatpush1.msra.mxu0 0.0
    %2608 = vmatprep.subr.mxu0 0.0
    %2609 = vmatpush1.msra.mxu0 0.0
    %2610 = vmatprep.subr.mxu0 0.0
    %2611 = vmatpush1.msra.mxu0 0.0
    %2612 = vmatprep.subr.mxu0 0.0
    %2613 = vmatpush1.msra.mxu0 0.0
    %2614 = vmatprep.subr.mxu0 0.0
    %2615 = vmatpush1.msra.mxu0 0.0
    %2616 = vmatprep.subr.mxu0 0.0
    %2617 = vmatpush1.msra.mxu0 0.0
    %2618 = vmatprep.subr.mxu0 0.0
    %2619 = vmatpush1.msra.mxu0 0.0
    %2620 = vmatprep.subr.mxu0 0.0
    %2621 = vmatpush1.msra.mxu0 0.0
    %2622 = vmatprep.subr.mxu0 0.0
    %2623 = vmatpush1.msra.mxu0 0.0
    %2624 = vmatprep.subr.mxu0 0.0
    %2625 = vmatpush1.msra.mxu0 0.0
    %2626 = vmatprep.subr.mxu0 0.0
    %2627 = vmatpush1.msra.mxu0 0.0
    %2628 = vmatprep.mubr.f32.mxu0 0.0
    %2629 = vmatmul.mubr.f32.gmra.mrb[0].mxu0 %v684
    %v2630 = vpop.f32.mrb[0].mxu0
    %v2631 = vadd.f32 0.0, %v2630
    %v2632 = vpop.f32.mrb[0].mxu0
    %2633 = vmatprep.mubr.f32.mxu0 0.0
    %2634 = vmatmul.mubr.f32.gmra.mrb[0].mxu0 %v687
    %v2635 = vpop.f32.mrb[0].mxu0
    %v2636 = vadd.f32 0.0, %v2635
    %v2637 = vpop.f32.mrb[0].mxu0
    %2638 = vdwg.mxu0
    %2639 = vmatprep.subr.mxu0 0.0
    %2640 = vmatpush1.msra.mxu0 %v643
    %2641 = vmatprep.subr.mxu0 0.0
    %2642 = vmatpush1.msra.mxu0 %v648
    %2643 = vmatprep.subr.mxu0 0.0
    %2644 = vmatpush1.msra.mxu0 0.0
    %2645 = vmatprep.subr.mxu0 0.0
    %2646 = vmatpush1.msra.mxu0 0.0
    %2647 = vmatprep.subr.mxu0 0.0
    %2648 = vmatpush1.msra.mxu0 0.0
    %2649 = vmatprep.subr.mxu0 0.0
    %2650 = vmatpush1.msra.mxu0 0.0
    %2651 = vmatprep.subr.mxu0 0.0
    %2652 = vmatpush1.msra.mxu0 0.0
    %2653 = vmatprep.subr.mxu0 0.0
    %2654 = vmatpush1.msra.mxu0 0.0
    %2655 = vmatprep.subr.mxu0 0.0
    %2656 = vmatpush1.msra.mxu0 0.0
    %2657 = vmatprep.subr.mxu0 0.0
    %2658 = vmatpush1.msra.mxu0 0.0
    %2659 = vmatprep.subr.mxu0 0.0
    %2660 = vmatpush1.msra.mxu0 0.0
    %2661 = vmatprep.subr.mxu0 0.0
    %2662 = vmatpush1.msra.mxu0 0.0
    %2663 = vmatprep.subr.mxu0 0.0
    %2664 = vmatpush1.msra.mxu0 0.0
    %2665 = vmatprep.subr.mxu0 0.0
    %2666 = vmatpush1.msra.mxu0 0.0
    %2667 = vmatprep.subr.mxu0 0.0
    %2668 = vmatpush1.msra.mxu0 0.0
    %2669 = vmatprep.subr.mxu0 0.0
    %2670 = vmatpush1.msra.mxu0 0.0
    %2671 = vmatprep.subr.mxu0 0.0
    %2672 = vmatpush1.msra.mxu0 0.0
    %2673 = vmatprep.subr.mxu0 0.0
    %2674 = vmatpush1.msra.mxu0 0.0
    %2675 = vmatprep.subr.mxu0 0.0
    %2676 = vmatpush1.msra.mxu0 0.0
    %2677 = vmatprep.subr.mxu0 0.0
    %2678 = vmatpush1.msra.mxu0 0.0
    %2679 = vmatprep.subr.mxu0 0.0
    %2680 = vmatpush1.msra.mxu0 0.0
    %2681 = vmatprep.subr.mxu0 0.0
    %2682 = vmatpush1.msra.mxu0 0.0
    %2683 = vmatprep.subr.mxu0 0.0
    %2684 = vmatpush1.msra.mxu0 0.0
    %2685 = vmatprep.subr.mxu0 0.0
    %2686 = vmatpush1.msra.mxu0 0.0
    %2687 = vmatprep.subr.mxu0 0.0
    %2688 = vmatpush1.msra.mxu0 0.0
    %2689 = vmatprep.subr.mxu0 0.0
    %2690 = vmatpush1.msra.mxu0 0.0
    %2691 = vmatprep.subr.mxu0 0.0
    %2692 = vmatpush1.msra.mxu0 0.0
    %2693 = vmatprep.subr.mxu0 0.0
    %2694 = vmatpush1.msra.mxu0 0.0
    %2695 = vmatprep.subr.mxu0 0.0
    %2696 = vmatpush1.msra.mxu0 0.0
    %2697 = vmatprep.subr.mxu0 0.0
    %2698 = vmatpush1.msra.mxu0 0.0
    %2699 = vmatprep.subr.mxu0 0.0
    %2700 = vmatpush1.msra.mxu0 0.0
    %2701 = vmatprep.subr.mxu0 0.0
    %2702 = vmatpush1.msra.mxu0 0.0
    %2703 = vmatprep.mubr.f32.mxu0 0.0
    %2704 = vmatmul.mubr.f32.gmra.mrb[0].mxu0 %v684
    %v2705 = vpop.f32.mrb[0].mxu0
    %v2706 = vadd.f32 0.0, %v2705
    %v2707 = vpop.f32.mrb[0].mxu0
    %2708 = vmatprep.mubr.f32.mxu0 0.0
    %2709 = vmatmul.mubr.f32.gmra.mrb[0].mxu0 %v687
    %v2710 = vpop.f32.mrb[0].mxu0
    %v2711 = vadd.f32 0.0, %v2710
    %v2712 = vpop.f32.mrb[0].mxu0
    %2713 = vdwg.mxu0
    %2714 = vmatprep.subr.mxu0 0.0
    %2715 = vmatpush1.msra.mxu0 %v653
    %2716 = vmatprep.subr.mxu0 0.0
    %2717 = vmatpush1.msra.mxu0 %v658
    %2718 = vmatprep.subr.mxu0 0.0
    %2719 = vmatpush1.msra.mxu0 0.0
    %2720 = vmatprep.subr.mxu0 0.0
    %2721 = vmatpush1.msra.mxu0 0.0
    %2722 = vmatprep.subr.mxu0 0.0
    %2723 = vmatpush1.msra.mxu0 0.0
    %2724 = vmatprep.subr.mxu0 0.0
    %2725 = vmatpush1.msra.mxu0 0.0
    %2726 = vmatprep.subr.mxu0 0.0
    %2727 = vmatpush1.msra.mxu0 0.0
    %2728 = vmatprep.subr.mxu0 0.0
    %2729 = vmatpush1.msra.mxu0 0.0
    %2730 = vmatprep.subr.mxu0 0.0
    %2731 = vmatpush1.msra.mxu0 0.0
    %2732 = vmatprep.subr.mxu0 0.0
    %2733 = vmatpush1.msra.mxu0 0.0
    %2734 = vmatprep.subr.mxu0 0.0
    %2735 = vmatpush1.msra.mxu0 0.0
    %2736 = vmatprep.subr.mxu0 0.0
    %2737 = vmatpush1.msra.mxu0 0.0
    %2738 = vmatprep.subr.mxu0 0.0
    %2739 = vmatpush1.msra.mxu0 0.0
    %2740 = vmatprep.subr.mxu0 0.0
    %2741 = vmatpush1.msra.mxu0 0.0
    %2742 = vmatprep.subr.mxu0 0.0
    %2743 = vmatpush1.msra.mxu0 0.0
    %2744 = vmatprep.subr.mxu0 0.0
    %2745 = vmatpush1.msra.mxu0 0.0
    %2746 = vmatprep.subr.mxu0 0.0
    %2747 = vmatpush1.msra.mxu0 0.0
    %2748 = vmatprep.subr.mxu0 0.0
    %2749 = vmatpush1.msra.mxu0 0.0
    %2750 = vmatprep.subr.mxu0 0.0
    %2751 = vmatpush1.msra.mxu0 0.0
    %2752 = vmatprep.subr.mxu0 0.0
    %2753 = vmatpush1.msra.mxu0 0.0
    %2754 = vmatprep.subr.mxu0 0.0
    %2755 = vmatpush1.msra.mxu0 0.0
    %2756 = vmatprep.subr.mxu0 0.0
    %2757 = vmatpush1.msra.mxu0 0.0
    %2758 = vmatprep.subr.mxu0 0.0
    %2759 = vmatpush1.msra.mxu0 0.0
    %2760 = vmatprep.subr.mxu0 0.0
    %2761 = vmatpush1.msra.mxu0 0.0
    %2762 = vmatprep.subr.mxu0 0.0
    %2763 = vmatpush1.msra.mxu0 0.0
    %2764 = vmatprep.subr.mxu0 0.0
    %2765 = vmatpush1.msra.mxu0 0.0
    %2766 = vmatprep.subr.mxu0 0.0
    %2767 = vmatpush1.msra.mxu0 0.0
    %2768 = vmatprep.subr.mxu0 0.0
    %2769 = vmatpush1.msra.mxu0 0.0
    %2770 = vmatprep.subr.mxu0 0.0
    %2771 = vmatpush1.msra.mxu0 0.0
    %2772 = vmatprep.subr.mxu0 0.0
    %2773 = vmatpush1.msra.mxu0 0.0
    %2774 = vmatprep.subr.mxu0 0.0
    %2775 = vmatpush1.msra.mxu0 0.0
    %2776 = vmatprep.subr.mxu0 0.0
    %2777 = vmatpush1.msra.mxu0 0.0
    %2778 = vmatprep.mubr.f32.mxu0 0.0
    %2779 = vmatmul.mubr.f32.gmra.mrb[0].mxu0 %v684
    %v2780 = vpop.f32.mrb[0].mxu0
    %v2781 = vadd.f32 0.0, %v2780
    %v2782 = vpop.f32.mrb[0].mxu0
    %2783 = vmatprep.mubr.f32.mxu0 0.0
    %2784 = vmatmul.mubr.f32.gmra.mrb[0].mxu0 %v687
    %v2785 = vpop.f32.mrb[0].mxu0
    %v2786 = vadd.f32 0.0, %v2785
    %v2787 = vpop.f32.mrb[0].mxu0
    %2788 = vdwg.mxu0
    %2789 = vmatprep.subr.mxu0 0.0
    %2790 = vmatpush1.msra.mxu0 %v663
    %2791 = vmatprep.subr.mxu0 0.0
    %2792 = vmatpush1.msra.mxu0 %v668
    %2793 = vmatprep.subr.mxu0 0.0
    %2794 = vmatpush1.msra.mxu0 0.0
    %2795 = vmatprep.subr.mxu0 0.0
    %2796 = vmatpush1.msra.mxu0 0.0
    %2797 = vmatprep.subr.mxu0 0.0
    %2798 = vmatpush1.msra.mxu0 0.0
    %2799 = vmatprep.subr.mxu0 0.0
    %2800 = vmatpush1.msra.mxu0 0.0
    %2801 = vmatprep.subr.mxu0 0.0
    %2802 = vmatpush1.msra.mxu0 0.0
    %2803 = vmatprep.subr.mxu0 0.0
    %2804 = vmatpush1.msra.mxu0 0.0
    %2805 = vmatprep.subr.mxu0 0.0
    %2806 = vmatpush1.msra.mxu0 0.0
    %2807 = vmatprep.subr.mxu0 0.0
    %2808 = vmatpush1.msra.mxu0 0.0
    %2809 = vmatprep.subr.mxu0 0.0
    %2810 = vmatpush1.msra.mxu0 0.0
    %2811 = vmatprep.subr.mxu0 0.0
    %2812 = vmatpush1.msra.mxu0 0.0
    %2813 = vmatprep.subr.mxu0 0.0
    %2814 = vmatpush1.msra.mxu0 0.0
    %2815 = vmatprep.subr.mxu0 0.0
    %2816 = vmatpush1.msra.mxu0 0.0
    %2817 = vmatprep.subr.mxu0 0.0
    %2818 = vmatpush1.msra.mxu0 0.0
    %2819 = vmatprep.subr.mxu0 0.0
    %2820 = vmatpush1.msra.mxu0 0.0
    %2821 = vmatprep.subr.mxu0 0.0
    %2822 = vmatpush1.msra.mxu0 0.0
    %2823 = vmatprep.subr.mxu0 0.0
    %2824 = vmatpush1.msra.mxu0 0.0
    %2825 = vmatprep.subr.mxu0 0.0
    %2826 = vmatpush1.msra.mxu0 0.0
    %2827 = vmatprep.subr.mxu0 0.0
    %2828 = vmatpush1.msra.mxu0 0.0
    %2829 = vmatprep.subr.mxu0 0.0
    %2830 = vmatpush1.msra.mxu0 0.0
    %2831 = vmatprep.subr.mxu0 0.0
    %2832 = vmatpush1.msra.mxu0 0.0
    %2833 = vmatprep.subr.mxu0 0.0
    %2834 = vmatpush1.msra.mxu0 0.0
    %2835 = vmatprep.subr.mxu0 0.0
    %2836 = vmatpush1.msra.mxu0 0.0
    %2837 = vmatprep.subr.mxu0 0.0
    %2838 = vmatpush1.msra.mxu0 0.0
    %2839 = vmatprep.subr.mxu0 0.0
    %2840 = vmatpush1.msra.mxu0 0.0
    %2841 = vmatprep.subr.mxu0 0.0
    %2842 = vmatpush1.msra.mxu0 0.0
    %2843 = vmatprep.subr.mxu0 0.0
    %2844 = vmatpush1.msra.mxu0 0.0
    %2845 = vmatprep.subr.mxu0 0.0
    %2846 = vmatpush1.msra.mxu0 0.0
    %2847 = vmatprep.subr.mxu0 0.0
    %2848 = vmatpush1.msra.mxu0 0.0
    %2849 = vmatprep.subr.mxu0 0.0
    %2850 = vmatpush1.msra.mxu0 0.0
    %2851 = vmatprep.subr.mxu0 0.0
    %2852 = vmatpush1.msra.mxu0 0.0
    %2853 = vmatprep.mubr.f32.mxu0 0.0
    %2854 = vmatmul.mubr.f32.gmra.mrb[0].mxu0 %v684
    %v2855 = vpop.f32.mrb[0].mxu0
    %v2856 = vadd.f32 0.0, %v2855
    %v2857 = vpop.f32.mrb[0].mxu0
    %2858 = vmatprep.mubr.f32.mxu0 0.0
    %2859 = vmatmul.mubr.f32.gmra.mrb[0].mxu0 %v687
    %v2860 = vpop.f32.mrb[0].mxu0
    %v2861 = vadd.f32 0.0, %v2860
    %v2862 = vpop.f32.mrb[0].mxu0
    %2863 = vdwg.mxu0
    %2864 = vmatprep.subr.mxu0 0.0
    %2865 = vmatpush1.msra.mxu0 %v673
    %2866 = vmatprep.subr.mxu0 0.0
    %2867 = vmatpush1.msra.mxu0 %v678
    %2868 = vmatprep.subr.mxu0 0.0
    %2869 = vmatpush1.msra.mxu0 0.0
    %2870 = vmatprep.subr.mxu0 0.0
    %2871 = vmatpush1.msra.mxu0 0.0
    %2872 = vmatprep.subr.mxu0 0.0
    %2873 = vmatpush1.msra.mxu0 0.0
    %2874 = vmatprep.subr.mxu0 0.0
    %2875 = vmatpush1.msra.mxu0 0.0
    %2876 = vmatprep.subr.mxu0 0.0
    %2877 = vmatpush1.msra.mxu0 0.0
    %2878 = vmatprep.subr.mxu0 0.0
    %2879 = vmatpush1.msra.mxu0 0.0
    %2880 = vmatprep.subr.mxu0 0.0
    %2881 = vmatpush1.msra.mxu0 0.0
    %2882 = vmatprep.subr.mxu0 0.0
    %2883 = vmatpush1.msra.mxu0 0.0
    %2884 = vmatprep.subr.mxu0 0.0
    %2885 = vmatpush1.msra.mxu0 0.0
    %2886 = vmatprep.subr.mxu0 0.0
    %2887 = vmatpush1.msra.mxu0 0.0
    %2888 = vmatprep.subr.mxu0 0.0
    %2889 = vmatpush1.msra.mxu0 0.0
    %2890 = vmatprep.subr.mxu0 0.0
    %2891 = vmatpush1.msra.mxu0 0.0
    %2892 = vmatprep.subr.mxu0 0.0
    %2893 = vmatpush1.msra.mxu0 0.0
    %2894 = vmatprep.subr.mxu0 0.0
    %2895 = vmatpush1.msra.mxu0 0.0
    %2896 = vmatprep.subr.mxu0 0.0
    %2897 = vmatpush1.msra.mxu0 0.0
    %2898 = vmatprep.subr.mxu0 0.0
    %2899 = vmatpush1.msra.mxu0 0.0
    %2900 = vmatprep.subr.mxu0 0.0
    %2901 = vmatpush1.msra.mxu0 0.0
    %2902 = vmatprep.subr.mxu0 0.0
    %2903 = vmatpush1.msra.mxu0 0.0
    %2904 = vmatprep.subr.mxu0 0.0
    %2905 = vmatpush1.msra.mxu0 0.0
    %2906 = vmatprep.subr.mxu0 0.0
    %2907 = vmatpush1.msra.mxu0 0.0
    %2908 = vmatprep.subr.mxu0 0.0
    %2909 = vmatpush1.msra.mxu0 0.0
    %2910 = vmatprep.subr.mxu0 0.0
    %2911 = vmatpush1.msra.mxu0 0.0
    %2912 = vmatprep.subr.mxu0 0.0
    %2913 = vmatpush1.msra.mxu0 0.0
    %2914 = vmatprep.subr.mxu0 0.0
    %2915 = vmatpush1.msra.mxu0 0.0
    %2916 = vmatprep.subr.mxu0 0.0
    %2917 = vmatpush1.msra.mxu0 0.0
    %2918 = vmatprep.subr.mxu0 0.0
    %2919 = vmatpush1.msra.mxu0 0.0
    %2920 = vmatprep.subr.mxu0 0.0
    %2921 = vmatpush1.msra.mxu0 0.0
    %2922 = vmatprep.subr.mxu0 0.0
    %2923 = vmatpush1.msra.mxu0 0.0
    %2924 = vmatprep.subr.mxu0 0.0
    %2925 = vmatpush1.msra.mxu0 0.0
    %2926 = vmatprep.subr.mxu0 0.0
    %2927 = vmatpush1.msra.mxu0 0.0
    %2928 = vmatprep.mubr.f32.mxu0 0.0
    %2929 = vmatmul.mubr.f32.gmra.mrb[0].mxu0 %v684
    %v2930 = vpop.f32.mrb[0].mxu0
    %v2931 = vadd.f32 0.0, %v2930
    %v2932 = vpop.f32.mrb[0].mxu0
    %2933 = vmatprep.mubr.f32.mxu0 0.0
    %2934 = vmatmul.mubr.f32.gmra.mrb[0].mxu0 %v687
    %v2935 = vpop.f32.mrb[0].mxu0
    %v2936 = vadd.f32 0.0, %v2935
    %v2937 = vpop.f32.mrb[0].mxu0
    %2938 = vdwg.mxu0
    %v2939 = vmul.f32 %v756, %v756
    %v2940 = vmul.f32 %v761, %v761
    %v2941 = vmul.f32 %v831, %v831
    %v2942 = vmul.f32 %v836, %v836
    %v2943 = vmul.f32 %v906, %v906
    %v2944 = vmul.f32 %v911, %v911
    %v2945 = vmul.f32 %v981, %v981
    %v2946 = vmul.f32 %v986, %v986
    %v2947 = vmul.f32 %v1056, %v1056
    %v2948 = vmul.f32 %v1061, %v1061
    %v2949 = vmul.f32 %v1131, %v1131
    %v2950 = vmul.f32 %v1136, %v1136
    %v2951 = vmul.f32 %v1206, %v1206
    %v2952 = vmul.f32 %v1211, %v1211
    %v2953 = vmul.f32 %v1281, %v1281
    %v2954 = vmul.f32 %v1286, %v1286
    %v2955 = vmul.f32 %v1356, %v1356
    %v2956 = vmul.f32 %v1361, %v1361
    %v2957 = vmul.f32 %v1431, %v1431
    %v2958 = vmul.f32 %v1436, %v1436
    %v2959 = vmul.f32 %v1506, %v1506
    %v2960 = vmul.f32 %v1511, %v1511
    %v2961 = vmul.f32 %v1581, %v1581
    %v2962 = vmul.f32 %v1586, %v1586
    %v2963 = vmul.f32 %v756, %v1206
    %v2964 = vmul.f32 %v761, %v1211
    %v2965 = vmul.f32 %v831, %v1281
    %v2966 = vmul.f32 %v836, %v1286
    %v2967 = vmul.f32 %v906, %v1356
    %v2968 = vmul.f32 %v911, %v1361
    %v2969 = vmul.f32 %v981, %v1431
    %v2970 = vmul.f32 %v986, %v1436
    %v2971 = vmul.f32 %v1056, %v1506
    %v2972 = vmul.f32 %v1061, %v1511
    %v2973 = vmul.f32 %v1131, %v1581
    %v2974 = vmul.f32 %v1136, %v1586
    %v2975 = vsub.f32 %v1656, %v2939
    %v2976 = vsub.f32 %v1661, %v2940
    %v2977 = vsub.f32 %v1731, %v2941
    %v2978 = vsub.f32 %v1736, %v2942
    %v2979 = vsub.f32 %v1806, %v2943
    %v2980 = vsub.f32 %v1811, %v2944
    %v2981 = vsub.f32 %v1881, %v2945
    %v2982 = vsub.f32 %v1886, %v2946
    %v2983 = vsub.f32 %v1956, %v2947
    %v2984 = vsub.f32 %v1961, %v2948
    %v2985 = vsub.f32 %v2031, %v2949
    %v2986 = vsub.f32 %v2036, %v2950
    %v2987 = vsub.f32 %v2106, %v2951
    %v2988 = vsub.f32 %v2111, %v2952
    %v2989 = vsub.f32 %v2181, %v2953
    %v2990 = vsub.f32 %v2186, %v2954
    %v2991 = vsub.f32 %v2256, %v2955
    %v2992 = vsub.f32 %v2261, %v2956
    %v2993 = vsub.f32 %v2331, %v2957
    %v2994 = vsub.f32 %v2336, %v2958
    %v2995 = vsub.f32 %v2406, %v2959
    %v2996 = vsub.f32 %v2411, %v2960
    %v2997 = vsub.f32 %v2481, %v2961
    %v2998 = vsub.f32 %v2486, %v2962
    %v2999 = vsub.f32 %v2556, %v2963
    %v3000 = vsub.f32 %v2561, %v2964
    %v3001 = vsub.f32 %v2631, %v2965
    %v3002 = vsub.f32 %v2636, %v2966
    %v3003 = vsub.f32 %v2706, %v2967
    %v3004 = vsub.f32 %v2711, %v2968
    %v3005 = vsub.f32 %v2781, %v2969
    %v3006 = vsub.f32 %v2786, %v2970
    %v3007 = vsub.f32 %v2856, %v2971
    %v3008 = vsub.f32 %v2861, %v2972
    %v3009 = vsub.f32 %v2931, %v2973
    %v3010 = vsub.f32 %v2936, %v2974
    %v3011 = vmul.f32 %v2963, 2.0
    %v3012 = vmul.f32 %v2964, 2.0
    %v3013 = vmul.f32 %v2965, 2.0
    %v3014 = vmul.f32 %v2966, 2.0
    %v3015 = vmul.f32 %v2967, 2.0
    %v3016 = vmul.f32 %v2968, 2.0
    %v3017 = vmul.f32 %v2969, 2.0
    %v3018 = vmul.f32 %v2970, 2.0
    %v3019 = vmul.f32 %v2971, 2.0
    %v3020 = vmul.f32 %v2972, 2.0
    %v3021 = vmul.f32 %v2973, 2.0
    %v3022 = vmul.f32 %v2974, 2.0
    %v3023 = vadd.f32 %v3011, 0.0001
    %v3024 = vadd.f32 %v3012, 0.0001
    %v3025 = vadd.f32 %v3013, 0.0001
    %v3026 = vadd.f32 %v3014, 0.0001
    %v3027 = vadd.f32 %v3015, 0.0001
    %v3028 = vadd.f32 %v3016, 0.0001
    %v3029 = vadd.f32 %v3017, 0.0001
    %v3030 = vadd.f32 %v3018, 0.0001
    %v3031 = vadd.f32 %v3019, 0.0001
    %v3032 = vadd.f32 %v3020, 0.0001
    %v3033 = vadd.f32 %v3021, 0.0001
    %v3034 = vadd.f32 %v3022, 0.0001
    %v3035 = vmul.f32 %v2999, 2.0
    %v3036 = vmul.f32 %v3000, 2.0
    %v3037 = vmul.f32 %v3001, 2.0
    %v3038 = vmul.f32 %v3002, 2.0
    %v3039 = vmul.f32 %v3003, 2.0
    %v3040 = vmul.f32 %v3004, 2.0
    %v3041 = vmul.f32 %v3005, 2.0
    %v3042 = vmul.f32 %v3006, 2.0
    %v3043 = vmul.f32 %v3007, 2.0
    %v3044 = vmul.f32 %v3008, 2.0
    %v3045 = vmul.f32 %v3009, 2.0
    %v3046 = vmul.f32 %v3010, 2.0
    %v3047 = vadd.f32 %v3035, 0.0009
    %v3048 = vadd.f32 %v3036, 0.0009
    %v3049 = vadd.f32 %v3037, 0.0009
    %v3050 = vadd.f32 %v3038, 0.0009
    %v3051 = vadd.f32 %v3039, 0.0009
    %v3052 = vadd.f32 %v3040, 0.0009
    %v3053 = vadd.f32 %v3041, 0.0009
    %v3054 = vadd.f32 %v3042, 0.0009
    %v3055 = vadd.f32 %v3043, 0.0009
    %v3056 = vadd.f32 %v3044, 0.0009
    %v3057 = vadd.f32 %v3045, 0.0009
    %v3058 = vadd.f32 %v3046, 0.0009
    %v3059 = vmul.f32 %v3023, %v3047
    %v3060 = vmul.f32 %v3024, %v3048
    %v3061 = vmul.f32 %v3025, %v3049
    %v3062 = vmul.f32 %v3026, %v3050
    %v3063 = vmul.f32 %v3027, %v3051
    %v3064 = vmul.f32 %v3028, %v3052
    %v3065 = vmul.f32 %v3029, %v3053
    %v3066 = vmul.f32 %v3030, %v3054
    %v3067 = vmul.f32 %v3031, %v3055
    %v3068 = vmul.f32 %v3032, %v3056
    %v3069 = vmul.f32 %v3033, %v3057
    %v3070 = vmul.f32 %v3034, %v3058
    %v3071 = vadd.f32 %v2939, %v2951
    %v3072 = vadd.f32 %v2940, %v2952
    %v3073 = vadd.f32 %v2941, %v2953
    %v3074 = vadd.f32 %v2942, %v2954
    %v3075 = vadd.f32 %v2943, %v2955
    %v3076 = vadd.f32 %v2944, %v2956
    %v3077 = vadd.f32 %v2945, %v2957
    %v3078 = vadd.f32 %v2946, %v2958
    %v3079 = vadd.f32 %v2947, %v2959
    %v3080 = vadd.f32 %v2948, %v2960
    %v3081 = vadd.f32 %v2949, %v2961
    %v3082 = vadd.f32 %v2950, %v2962
    %v3083 = vadd.f32 %v3071, 0.0001
    %v3084 = vadd.f32 %v3072, 0.0001
    %v3085 = vadd.f32 %v3073, 0.0001
    %v3086 = vadd.f32 %v3074, 0.0001
    %v3087 = vadd.f32 %v3075, 0.0001
    %v3088 = vadd.f32 %v3076, 0.0001
    %v3089 = vadd.f32 %v3077, 0.0001
    %v3090 = vadd.f32 %v3078, 0.0001
    %v3091 = vadd.f32 %v3079, 0.0001
    %v3092 = vadd.f32 %v3080, 0.0001
    %v3093 = vadd.f32 %v3081, 0.0001
    %v3094 = vadd.f32 %v3082, 0.0001
    %v3095 = vadd.f32 %v2975, %v2987
    %v3096 = vadd.f32 %v2976, %v2988
    %v3097 = vadd.f32 %v2977, %v2989
    %v3098 = vadd.f32 %v2978, %v2990
    %v3099 = vadd.f32 %v2979, %v2991
    %v3100 = vadd.f32 %v2980, %v2992
    %v3101 = vadd.f32 %v2981, %v2993
    %v3102 = vadd.f32 %v2982, %v2994
    %v3103 = vadd.f32 %v2983, %v2995
    %v3104 = vadd.f32 %v2984, %v2996
    %v3105 = vadd.f32 %v2985, %v2997
    %v3106 = vadd.f32 %v2986, %v2998
    %v3107 = vadd.f32 %v3095, 0.0009
    %v3108 = vadd.f32 %v3096, 0.0009
    %v3109 = vadd.f32 %v3097, 0.0009
    %v3110 = vadd.f32 %v3098, 0.0009
    %v3111 = vadd.f32 %v3099, 0.0009
    %v3112 = vadd.f32 %v3100, 0.0009
    %v3113 = vadd.f32 %v3101, 0.0009
    %v3114 = vadd.f32 %v3102, 0.0009
    %v3115 = vadd.f32 %v3103, 0.0009
    %v3116 = vadd.f32 %v3104, 0.0009
    %v3117 = vadd.f32 %v3105, 0.0009
    %v3118 = vadd.f32 %v3106, 0.0009
    %v3119 = vmul.f32 %v3083, %v3107
    %v3120 = vmul.f32 %v3084, %v3108
    %v3121 = vmul.f32 %v3085, %v3109
    %v3122 = vmul.f32 %v3086, %v3110
    %v3123 = vmul.f32 %v3087, %v3111
    %v3124 = vmul.f32 %v3088, %v3112
    %v3125 = vmul.f32 %v3089, %v3113
    %v3126 = vmul.f32 %v3090, %v3114
    %v3127 = vmul.f32 %v3091, %v3115
    %v3128 = vmul.f32 %v3092, %v3116
    %v3129 = vmul.f32 %v3093, %v3117
    %v3130 = vmul.f32 %v3094, %v3118
    %v3131 = vrcp.pop %v3119
    %v3132 = vmul.f32 %v3059, %v3131
    %v3133 = vrcp.pop %v3120
    %v3134 = vmul.f32 %v3060, %v3133
    %v3135 = vrcp.pop %v3121
    %v3136 = vmul.f32 %v3061, %v3135
    %v3137 = vrcp.pop %v3122
    %v3138 = vmul.f32 %v3062, %v3137
    %v3139 = vrcp.pop %v3123
    %v3140 = vmul.f32 %v3063, %v3139
    %v3141 = vrcp.pop %v3124
    %v3142 = vmul.f32 %v3064, %v3141
    %v3143 = vrcp.pop %v3125
    %v3144 = vmul.f32 %v3065, %v3143
    %v3145 = vrcp.pop %v3126
    %v3146 = vmul.f32 %v3066, %v3145
    %v3147 = vrcp.pop %v3127
    %v3148 = vmul.f32 %v3067, %v3147
    %v3149 = vrcp.pop %v3128
    %v3150 = vmul.f32 %v3068, %v3149
    %v3151 = vrcp.pop %v3129
    %v3152 = vmul.f32 %v3069, %v3151
    %v3153 = vrcp.pop %v3130
    %v3154 = vmul.f32 %v3070, %v3153
    %v3155 = vsel %vm135, %v3132, 0.0
    %v3156 = vsel %vm135, %v3134, 0.0
    %v3157 = vadd.f32 %v3155, %v3156
    %v3158 = vsel %vm135, %v3136, 0.0
    %v3159 = vadd.f32 %v3157, %v3158
    %v3160 = vsel %vm135, %v3138, 0.0
    %v3161 = vadd.f32 %v3159, %v3160
    %v3162 = vsel %vm135, %v3140, 0.0
    %v3163 = vadd.f32 %v3161, %v3162
    %v3164 = vsel %vm135, %v3142, 0.0
    %v3165 = vadd.f32 %v3163, %v3164
    %v3166 = vsel %vm135, %v3144, 0.0
    %v3167 = vadd.f32 %v3165, %v3166
    %v3168 = vsel %vm135, %v3146, 0.0
    %v3169 = vadd.f32 %v3167, %v3168
    %v3170 = vsel %vm135, %v3148, 0.0
    %v3171 = vadd.f32 %v3169, %v3170
    %v3172 = vsel %vm135, %v3150, 0.0
    %v3173 = vadd.f32 %v3171, %v3172
    %v3174 = vsel %vm135, %v3152, 0.0
    %v3175 = vadd.f32 %v3173, %v3174
    %v3176 = vsel %vm135, %v3154, 0.0
    %v3177 = vadd.f32 %v3175, %v3176
    %3178 = vadd.xlane.f32.xlu0 %v3177
    %v3179 = vpop.xlane.xlu0 %3178
    %v3180 = vrot.slane %v3179, 4
    %v3181 = vadd.f32 %v3179, %v3180
    %v3182 = vrot.slane %v3181, 2
    %v3183 = vadd.f32 %v3181, %v3182
    %v3184 = vrot.slane %v3183, 1
    %v3185 = vadd.f32 %v3183, %v3184
    %s3186 = vtos %v3185
    %v3187 = vstv %s3186
    %3188 = vst [vmem:[#allocation10] sm:$0xff] %v3187
    // Predicated region
    $region34: #{tpu_custom_call.1} parent=1 // pred_check
      _
    $region35: #{tpu_custom_call.1} parent=1 // pred_check_branch
      %3190 = sbr.rel (0) target = $region37
    $region36: #{tpu_custom_call.1} parent=1 // pred_region
      %s3192 = ssub.s32 128, 128
      %3193 = vsyncadd [#allocation4], %s3192
      %s3195 = sshll.u32 [#allocation10], 4
      %s3196 = int_to_ptr.vmem [resolvable:$true] %s3195
      %3198 = dma.vmem_to_hbm [thread:$0]  %s3196, 128, %s4, [#allocation4]
    $region37: #{tpu_custom_call.1} parent=1 // pred_fallthru
      _
    // Predicated region
    $region38: #{tpu_custom_call.1} parent=1 // pred_check
      _
    $region39: #{tpu_custom_call.1} parent=1 // pred_check_branch
      %3200 = sbr.rel (0) target = $region41
    $region40: #{tpu_custom_call.1} parent=1 // pred_region
      %3201 = dma.done [#allocation4], 128
    $region41: #{tpu_custom_call.1} parent=1 // pred_fallthru
      _
    %3202 = vsyncpa [#allocation3], 1
    %3203 = vsyncpa [#allocation6], 1
    %3204 = vsyncpa [#allocation9], 1
    %3205 = vsyncpa [#allocation4], 1

</llo_original>
